<compile_context>
chip_gen: v5e
topology: v5e:2x2
jax: 0.10.0
libtpu: 0.0.40
codegen_flags: <defaults>
</compile_context>

<pallas_src>
import functools

import jax
import jax.numpy as jnp
from jax.experimental import pallas as pl
from jax.experimental.pallas import tpu as pltpu

LANE = 128


def _round_up(x, m):
    return (x + m - 1) // m * m


def _pad2(a, rows, cols):
    return jnp.pad(a, ((0, rows - a.shape[0]), (0, cols - a.shape[1])))


def _pad1(a, n):
    return jnp.pad(a, (0, n - a.shape[0]))


def _pick_hw_tile(hw, pref=256):
    """Largest multiple-of-8 divisor of hw that is <= pref (fallback: hw)."""
    if hw <= pref:
        return hw
    for t in range(pref, 7, -8):
        if hw % t == 0:
            return t
    return hw  # TODO(synk): pad + mask awkward HW sizes instead


# ----------------------------------------------------------------------------
# Kernel 1: (im2col / 1x1-conv) matmul + bias (+ optional SiLU).
#           BN scale pre-folded, weights bf16, bf16xbf16->f32 MXU path.
# ----------------------------------------------------------------------------
def _mm_bias_act_kernel(x_ref, w_ref, b_ref, o_ref, *, act):
    y = jnp.dot(x_ref[...], w_ref[...],
                preferred_element_type=jnp.float32) + b_ref[...]
    if act == "silu":
        y = y * jax.nn.sigmoid(y)
    o_ref[...] = y.astype(o_ref.dtype)


def matmul_bias_act(x, w, b, act="none", tm=512, out_dtype=jnp.bfloat16):
    M, K = x.shape
    N = w.shape[1]
    tm = min(tm, _round_up(M, 128))
    Mp = _round_up(M, tm)
    if Mp != M:
        # TODO(synk): carry padded M through the chain instead of pad+slice
        # when shapes force it (not hit at these test shapes).
        x = jnp.pad(x, ((0, Mp - M), (0, 0)))
    # double-buffered bf16 blocks + f32 bias + headroom
    need = 2 * (tm * K + K * N + tm * N) * 2 + 2 * N * 4
    vmem_limit = int(min(64 * 2**20, max(2 * need, 16 * 2**20)))
    out = pl.pallas_call(
        functools.partial(_mm_bias_act_kernel, act=act),
        out_shape=jax.ShapeDtypeStruct((Mp, N), out_dtype),
        grid=(Mp // tm,),
        in_specs=[
            pl.BlockSpec((tm, K), lambda i: (i, 0)),
            pl.BlockSpec((K, N), lambda i: (0, 0)),
            pl.BlockSpec((1, N), lambda i: (0, 0)),
        ],
        out_specs=pl.BlockSpec((tm, N), lambda i: (i, 0)),
        compiler_params=pltpu.CompilerParams(
            dimension_semantics=("parallel",), vmem_limit_bytes=vmem_limit),
    )(x, w, b)
    return out[:M] if Mp != M else out


# ----------------------------------------------------------------------------
# Kernel 2: depthwise 3x3 (stride 1) + bias + SiLU with in-VMEM zero halo,
#           fused with the SE global-average-pool AND the two SE gate FCs.
#           Emits the activation and the per-batch sigmoid gate (bf16).
# ----------------------------------------------------------------------------
def _dw_se_kernel(x_ref, w_ref, b_ref, w1_ref, b1_ref, w2_ref, b2_ref,
                  o_ref, g_ref, xpad_ref, *, H, W):
    C = o_ref.shape[-1]
    dt = x_ref.dtype
    # Build the 1-px zero halo entirely in VMEM (no HBM pad round trip).
    zcol = jnp.zeros((H, 1, C), dt)
    xpad_ref[1:H + 1, :, :] = jnp.concatenate([zcol, x_ref[...], zcol], axis=1)
    zrow = jnp.zeros((1, W + 2, C), dt)
    xpad_ref[0:1, :, :] = zrow
    xpad_ref[H + 1:H + 2, :, :] = zrow

    # 9-tap multiply in bf16, accumulate in f32.
    # TODO(synk): on v6e consider full bf16 accumulation (VALU-bound) after
    # validating 9-tap accumulation error; keep f32 on v5e.
    acc = jnp.zeros((H, W, C), jnp.float32)
    for dh in range(3):
        for dw in range(3):
            tap = xpad_ref[dh:dh + H, dw:dw + W, :]
            acc = acc + (tap * w_ref[dh * 3 + dw]).astype(jnp.float32)
    y = acc + b_ref[...]
    y = y * jax.nn.sigmoid(y)
    o_ref[...] = y.astype(o_ref.dtype)

    # SE: global average pool + two tiny FCs, fused in the epilogue.
    pooled = jnp.mean(y, axis=(0, 1)).reshape(1, C)
    s = jnp.dot(pooled.astype(jnp.bfloat16), w1_ref[...],
                preferred_element_type=jnp.float32) + b1_ref[...]
    s = s * jax.nn.sigmoid(s)
    s = jnp.dot(s.astype(jnp.bfloat16), w2_ref[...],
                preferred_element_type=jnp.float32) + b2_ref[...]
    g_ref[...] = jax.nn.sigmoid(s).astype(g_ref.dtype)


def depthwise_conv_se(x, dw_w, dw_b, se_w1, se_b1, se_w2, se_b2, H, W):
    B, _, _, C = x.shape
    Cr = se_w1.shape[1]
    return pl.pallas_call(
        functools.partial(_dw_se_kernel, H=H, W=W),
        out_shape=(jax.ShapeDtypeStruct((B, H, W, C), jnp.bfloat16),
                   jax.ShapeDtypeStruct((B, 1, C), jnp.bfloat16)),
        grid=(B,),
        in_specs=[
            pl.BlockSpec((None, H, W, C), lambda i: (i, 0, 0, 0)),
            pl.BlockSpec((9, 1, 1, C), lambda i: (0, 0, 0, 0)),
            pl.BlockSpec((1, 1, C), lambda i: (0, 0, 0)),
            pl.BlockSpec((C, Cr), lambda i: (0, 0)),
            pl.BlockSpec((1, Cr), lambda i: (0, 0)),
            pl.BlockSpec((Cr, C), lambda i: (0, 0)),
            pl.BlockSpec((1, C), lambda i: (0, 0)),
        ],
        out_specs=(pl.BlockSpec((None, H, W, C), lambda i: (i, 0, 0, 0)),
                   pl.BlockSpec((None, 1, C), lambda i: (i, 0, 0))),
        scratch_shapes=[pltpu.VMEM((H + 2, W + 2, C), jnp.bfloat16)],
        compiler_params=pltpu.CompilerParams(dimension_semantics=("parallel",)),
    )(x, dw_w, dw_b, se_w1, se_b1, se_w2, se_b2)


# ----------------------------------------------------------------------------
# Kernel 3: fused SE-gate apply (bf16) + project 1x1 conv (+bias) + residual.
# ----------------------------------------------------------------------------
def _se_proj_res_kernel(d_ref, g_ref, w_ref, b_ref, y_ref, o_ref):
    x = d_ref[...] * g_ref[...]                       # bf16 gate apply
    p = jnp.dot(x, w_ref[...], preferred_element_type=jnp.float32) + b_ref[...]
    o_ref[...] = (p + y_ref[...].astype(jnp.float32)).astype(o_ref.dtype)


def se_project_residual(d, gate, w, b, y, thw):
    B, HW, Ce = d.shape
    C0 = w.shape[1]
    return pl.pallas_call(
        _se_proj_res_kernel,
        out_shape=jax.ShapeDtypeStruct((B, HW, C0), jnp.bfloat16),
        grid=(B, HW // thw),
        in_specs=[
            pl.BlockSpec((None, thw, Ce), lambda b_, t: (b_, t, 0)),
            pl.BlockSpec((None, 1, Ce), lambda b_, t: (b_, 0, 0)),
            pl.BlockSpec((Ce, C0), lambda b_, t: (0, 0)),
            pl.BlockSpec((1, C0), lambda b_, t: (0, 0)),
            pl.BlockSpec((None, thw, C0), lambda b_, t: (b_, t, 0)),
        ],
        out_specs=pl.BlockSpec((None, thw, C0), lambda b_, t: (b_, t, 0)),
        compiler_params=pltpu.CompilerParams(
            dimension_semantics=("parallel", "parallel")),
    )(d, gate, w, b, y)


# ----------------------------------------------------------------------------
# Kernel 4: fused head 1x1 conv + SiLU + global-avg-pool + Linear classifier.
#           (8, Ch) partial-sum scratch; cross-sublane reduce only at finalize.
# ----------------------------------------------------------------------------
def _head_pool_cls_kernel(y_ref, wh_ref, bh_ref, wc_ref, bc_ref, o_ref,
                          acc_ref, *, inv_hw, rows):
    t = pl.program_id(1)

    @pl.when(t == 0)
    def _():
        acc_ref[...] = jnp.zeros_like(acc_ref)

    h = jnp.dot(y_ref[...], wh_ref[...],
                preferred_element_type=jnp.float32) + bh_ref[...]
    h = h * jax.nn.sigmoid(h)
    # Partial sums of `rows`-row groups: hot loop stays MXU + VPU adds.
    acc_ref[...] += jnp.sum(h.reshape(-1, rows, h.shape[-1]), axis=0)

    @pl.when(t == pl.num_programs(1) - 1)
    def _():
        pooled = jnp.sum(acc_ref[...], axis=0, keepdims=True) * inv_hw
        o_ref[...] = (jnp.dot(pooled.astype(jnp.bfloat16), wc_ref[...],
                              preferred_element_type=jnp.float32)
                      + bc_ref[...]).astype(o_ref.dtype)


def head_pool_classifier(y, wh, bh, wc, bc, HW, thw):
    B, _, C0 = y.shape
    Ch = wh.shape[1]
    Nc = wc.shape[1]
    rows = 8 if thw % 8 == 0 else 1
    out = pl.pallas_call(
        functools.partial(_head_pool_cls_kernel, inv_hw=1.0 / HW, rows=rows),
        out_shape=jax.ShapeDtypeStruct((B, 1, Nc), jnp.float32),
        grid=(B, HW // thw),
        in_specs=[
            pl.BlockSpec((None, thw, C0), lambda b_, t: (b_, t, 0)),
            pl.BlockSpec((C0, Ch), lambda b_, t: (0, 0)),
            pl.BlockSpec((1, Ch), lambda b_, t: (0, 0)),
            pl.BlockSpec((Ch, Nc), lambda b_, t: (0, 0)),
            pl.BlockSpec((1, Nc), lambda b_, t: (0, 0)),
        ],
        out_specs=pl.BlockSpec((None, 1, Nc), lambda b_, t: (b_, 0, 0)),
        scratch_shapes=[pltpu.VMEM((rows, Ch), jnp.float32)],
        compiler_params=pltpu.CompilerParams(
            dimension_semantics=("parallel", "arbitrary")),
    )(y, wh, bh, wc, bc)
    return out[:, 0, :]


# ----------------------------------------------------------------------------
# Glue: im2col for the 3x3 stride-2 stem conv (K zero-padded to 128).
# TODO(synk): move the strided gather in-kernel at real B4 resolutions.
# ----------------------------------------------------------------------------
def im2col_3x3(x_nhwc, stride, pad):
    B, H, W, C = x_nhwc.shape
    xp = jnp.pad(x_nhwc, ((0, 0), (pad, pad), (pad, pad), (0, 0)))
    Ho = (H + 2 * pad - 3) // stride + 1
    Wo = (W + 2 * pad - 3) // stride + 1
    cols = []
    for dh in range(3):
        for dw in range(3):
            cols.append(xp[:, dh:dh + stride * Ho:stride,
                           dw:dw + stride * Wo:stride, :])
    K = 9 * C
    Kp = _round_up(K, LANE)
    if Kp != K:
        cols.append(jnp.zeros((B, Ho, Wo, Kp - K), x_nhwc.dtype))
    patches = jnp.concatenate(cols, axis=-1)                # (B, Ho, Wo, Kp)
    return patches, Ho, Wo


# ----------------------------------------------------------------------------
# Parameters (deterministic synthetic init at PyTorch-like shapes; BN folded,
# channel dims padded to 128, matmul weights cast to bf16 -- once, at prep).
# ----------------------------------------------------------------------------
def init_params(key, n_class=18, cin=3, c0=16, cexp=64, cse=4, chead=128):
    ks = jax.random.split(key, 16)
    w = lambda k, shape, s=0.1: jax.random.normal(k, shape, jnp.float32) * s
    bn_scale = lambda k, c: 1.0 + 0.1 * jax.random.normal(k, (c,), jnp.float32)
    bn_bias = lambda k, c: 0.1 * jax.random.normal(k, (c,), jnp.float32)
    return {
        "stem_w": w(ks[0], (3, 3, cin, c0)).reshape(9 * cin, c0),
        "stem_scale": bn_scale(ks[1], c0), "stem_bias": bn_bias(ks[1], c0),
        "exp_w": w(ks[2], (c0, cexp)),
        "exp_scale": bn_scale(ks[3], cexp), "exp_bias": bn_bias(ks[3], cexp),
        "dw_w": w(ks[4], (3, 3, cexp)),
        "dw_scale": bn_scale(ks[5], cexp), "dw_bias": bn_bias(ks[5], cexp),
        "se_w1": w(ks[6], (cexp, cse)), "se_b1": w(ks[7], (cse,), 0.01),
        "se_w2": w(ks[8], (cse, cexp)), "se_b2": w(ks[9], (cexp,), 0.01),
        "proj_w": w(ks[10], (cexp, c0)),
        "proj_scale": bn_scale(ks[11], c0), "proj_bias": bn_bias(ks[11], c0),
        "head_w": w(ks[12], (c0, chead)),
        "head_scale": bn_scale(ks[13], chead), "head_bias": bn_bias(ks[13], chead),
        "cls_w": w(ks[14], (chead, n_class), 0.05),
        "cls_b": w(ks[15], (n_class,), 0.01),
    }


def prepare_params(p):
    """Fold eval-mode BN scale into weights, pad channels to 128, cast bf16."""
    bf = jnp.bfloat16
    c0 = p["stem_w"].shape[1]
    cexp = p["exp_w"].shape[1]
    cse = p["se_w1"].shape[1]
    chead = p["head_w"].shape[1]
    ncls = p["cls_w"].shape[1]
    kstem = p["stem_w"].shape[0]
    c0p = _round_up(c0, LANE)
    cexpp = _round_up(cexp, LANE)
    csep = _round_up(cse, LANE)
    cheadp = _round_up(chead, LANE)
    nclsp = _round_up(ncls, LANE)
    kstemp = _round_up(kstem, LANE)

    out = {}
    out["stem_w"] = _pad2(p["stem_w"] * p["stem_scale"][None, :],
                          kstemp, c0p).astype(bf)
    out["stem_b"] = _pad1(p["stem_bias"], c0p).reshape(1, c0p)

    out["exp_w"] = _pad2(p["exp_w"] * p["exp_scale"][None, :], c0p, cexpp).astype(bf)
    out["exp_b"] = _pad1(p["exp_bias"], cexpp).reshape(1, cexpp)

    dw = (p["dw_w"] * p["dw_scale"][None, None, :]).reshape(9, cexp)
    out["dw_w"] = _pad2(dw, 9, cexpp).reshape(9, 1, 1, cexpp).astype(bf)
    out["dw_b"] = _pad1(p["dw_bias"], cexpp).reshape(1, 1, cexpp)

    out["se_w1"] = _pad2(p["se_w1"], cexpp, csep).astype(bf)
    out["se_b1"] = _pad1(p["se_b1"], csep).reshape(1, csep)
    out["se_w2"] = _pad2(p["se_w2"], csep, cexpp).astype(bf)
    out["se_b2"] = _pad1(p["se_b2"], cexpp).reshape(1, cexpp)

    out["proj_w"] = _pad2(p["proj_w"] * p["proj_scale"][None, :],
                          cexpp, c0p).astype(bf)
    out["proj_b"] = _pad1(p["proj_bias"], c0p).reshape(1, c0p)

    out["head_w"] = _pad2(p["head_w"] * p["head_scale"][None, :],
                          c0p, cheadp).astype(bf)
    out["head_b"] = _pad1(p["head_bias"], cheadp).reshape(1, cheadp)

    out["cls_w"] = _pad2(p["cls_w"], cheadp, nclsp).astype(bf)
    out["cls_b"] = _pad1(p["cls_b"], nclsp).reshape(1, nclsp)
    return out


# ----------------------------------------------------------------------------
# Forward pass (mirrors MaskClassifier_efficient.forward: x = self.model(x))
# ----------------------------------------------------------------------------
@functools.partial(jax.jit, static_argnums=(2,))
def forward(params, x_nchw, n_class):
    x = jnp.transpose(x_nchw, (0, 2, 3, 1))                  # NCHW -> NHWC
    B = x.shape[0]

    # --- stem: 3x3 s2 conv (+folded BN) + SiLU ---
    patches, Ho, Wo = im2col_3x3(x, stride=2, pad=1)
    patches = patches.astype(jnp.bfloat16)
    Kp = patches.shape[-1]
    c0p = params["stem_w"].shape[1]
    HW = Ho * Wo
    y = matmul_bias_act(patches.reshape(B * HW, Kp),
                        params["stem_w"], params["stem_b"], act="silu")

    # --- MBConv: expand 1x1 + SiLU ---
    cexpp = params["exp_w"].shape[1]
    e = matmul_bias_act(y, params["exp_w"], params["exp_b"], act="silu")

    # --- depthwise 3x3 + SiLU (in-VMEM halo), fused SE pool + gate FCs ---
    d, gate = depthwise_conv_se(e.reshape(B, Ho, Wo, cexpp),
                                params["dw_w"], params["dw_b"],
                                params["se_w1"], params["se_b1"],
                                params["se_w2"], params["se_b2"], Ho, Wo)

    # --- fused SE apply (bf16) + project 1x1 + residual add ---
    thw = _pick_hw_tile(HW)
    r = se_project_residual(d.reshape(B, HW, cexpp), gate,
                            params["proj_w"], params["proj_b"],
                            y.reshape(B, HW, c0p), thw)

    # --- fused head 1x1 conv + SiLU + global-avg-pool + Linear classifier ---
    logits_p = head_pool_classifier(r, params["head_w"], params["head_b"],
                                    params["cls_w"], params["cls_b"], HW, thw)
    return logits_p[:, :n_class]


if __name__ == "__main__":
    key = jax.random.PRNGKey(0)
    kx, kp = jax.random.split(key)
    # PyTorch-style NCHW input (small shapes): batch=2, channels=3, 16x16
    x = jax.random.normal(kx, (2, 3, 16, 16), jnp.float32)
    raw = init_params(kp, n_class=18)
    params = prepare_params(raw)
    logits = forward(params, x, 18)
    jax.block_until_ready(logits)
    assert logits.shape == (2, 18) and logits.dtype == jnp.float32
    print("KERNEL_OK")
</pallas_src>

<mosaic_0001>
module attributes {stable_mosaic.version = 11 : i64} {
  func.func @_mm_bias_act_kernel(%arg0: i32, %arg1: memref<128x128xbf16, #tpu.memory_space<vmem>>, %arg2: memref<128x128xbf16, #tpu.memory_space<vmem>>, %arg3: memref<1x128xf32, #tpu.memory_space<vmem>>, %arg4: memref<128x128xbf16, #tpu.memory_space<vmem>>) attributes {dimension_semantics = [#tpu.dimension_semantics<parallel>], iteration_bounds = array<i64: 1>, scalar_prefetch = 0 : i64, scratch_operands = 0 : i64, tpu.core_type = #tpu.core_type<tc>, window_params = [{transform_indices = @transform_0, window_bounds = array<i64: 128, 128>}, {pipeline_mode = #tpu.pipeline_mode<synchronous>, transform_indices = @transform_1, window_bounds = array<i64: 128, 128>}, {pipeline_mode = #tpu.pipeline_mode<synchronous>, transform_indices = @transform_2, window_bounds = array<i64: 1, 128>}, {transform_indices = @transform_3, window_bounds = array<i64: 128, 128>}]} {
    %c0 = arith.constant 0 : index
    %c0_0 = arith.constant 0 : index
    %0 = vector.load %arg1[%c0, %c0_0] : memref<128x128xbf16, #tpu.memory_space<vmem>>, vector<128x128xbf16>
    %c0_1 = arith.constant 0 : index
    %c0_2 = arith.constant 0 : index
    %1 = vector.load %arg2[%c0_1, %c0_2] : memref<128x128xbf16, #tpu.memory_space<vmem>>, vector<128x128xbf16>
    %cst = arith.constant dense<0.000000e+00> : vector<128x128xf32>
    %2 = tpu.matmul %0, %1, %cst {dimension_numbers = #tpu.dot_dimension_numbers<[1], [0], [0], [1], [0, 0, 1, 1], [], []>} : vector<128x128xbf16>, vector<128x128xbf16>, vector<128x128xf32> -> vector<128x128xf32>
    %c0_3 = arith.constant 0 : index
    %c0_4 = arith.constant 0 : index
    %3 = vector.load %arg3[%c0_3, %c0_4] : memref<1x128xf32, #tpu.memory_space<vmem>>, vector<1x128xf32>
    %4 = vector.broadcast %3 : vector<1x128xf32> to vector<128x128xf32>
    %5 = arith.addf %2, %4 : vector<128x128xf32>
    %6 = arith.negf %5 : vector<128x128xf32>
    %7 = math.exp %6 : vector<128x128xf32>
    %cst_5 = arith.constant 1.000000e+00 : f32
    %8 = vector.broadcast %cst_5 : f32 to vector<128x128xf32>
    %9 = arith.addf %8, %7 : vector<128x128xf32>
    %10 = arith.divf %8, %9 : vector<128x128xf32>
    %11 = arith.mulf %5, %10 : vector<128x128xf32>
    %12 = arith.truncf %11 : vector<128x128xf32> to vector<128x128xbf16>
    %c0_6 = arith.constant 0 : index
    %c0_7 = arith.constant 0 : index
    %13 = vector.load %arg4[%c0_6, %c0_7] : memref<128x128xbf16, #tpu.memory_space<vmem>>, vector<128x128xbf16>
    tpu.vector_store %arg4[%c0_6, %c0_7], %12 {strides = array<i32>} : memref<128x128xbf16, #tpu.memory_space<vmem>>, vector<128x128xbf16>,
    return
  }
  func.func @transform_0(%arg0: i32) -> (i32, i32) {
    %c0_i32 = arith.constant 0 : i32
    %c0_i32_0 = arith.constant 0 : i32
    return %arg0, %c0_i32 : i32, i32
  }
  func.func @transform_1(%arg0: i32) -> (i32, i32) {
    %c0_i32 = arith.constant 0 : i32
    %c0_i32_0 = arith.constant 0 : i32
    %c0_i32_1 = arith.constant 0 : i32
    return %c0_i32, %c0_i32_0 : i32, i32
  }
  func.func @transform_2(%arg0: i32) -> (i32, i32) {
    %c0_i32 = arith.constant 0 : i32
    %c0_i32_0 = arith.constant 0 : i32
    %c0_i32_1 = arith.constant 0 : i32
    return %c0_i32, %c0_i32_0 : i32, i32
  }
  func.func @transform_3(%arg0: i32) -> (i32, i32) {
    %c0_i32 = arith.constant 0 : i32
    %c0_i32_0 = arith.constant 0 : i32
    return %arg0, %c0_i32 : i32, i32
  }
}

module attributes {stable_mosaic.version = 11 : i64} {
  func.func @_dw_se_kernel(%arg0: i32, %arg1: memref<1x8x8x128xbf16, #tpu.memory_space<vmem>>, %arg2: memref<9x1x1x128xbf16, #tpu.memory_space<vmem>>, %arg3: memref<1x1x128xf32, #tpu.memory_space<vmem>>, %arg4: memref<128x128xbf16, #tpu.memory_space<vmem>>, %arg5: memref<1x128xf32, #tpu.memory_space<vmem>>, %arg6: memref<128x128xbf16, #tpu.memory_space<vmem>>, %arg7: memref<1x128xf32, #tpu.memory_space<vmem>>, %arg8: memref<1x8x8x128xbf16, #tpu.memory_space<vmem>>, %arg9: memref<1x1x128xbf16, #tpu.memory_space<vmem>>, %arg10: memref<10x10x128xbf16, #tpu.memory_space<vmem>>) attributes {dimension_semantics = [#tpu.dimension_semantics<parallel>], iteration_bounds = array<i64: 2>, scalar_prefetch = 0 : i64, scratch_operands = 1 : i64, tpu.core_type = #tpu.core_type<tc>, window_params = [{transform_indices = @transform_0, window_bounds = array<i64: 1, 8, 8, 128>}, {pipeline_mode = #tpu.pipeline_mode<synchronous>, transform_indices = @transform_1, window_bounds = array<i64: 9, 1, 1, 128>}, {pipeline_mode = #tpu.pipeline_mode<synchronous>, transform_indices = @transform_2, window_bounds = array<i64: 1, 1, 128>}, {pipeline_mode = #tpu.pipeline_mode<synchronous>, transform_indices = @transform_3, window_bounds = array<i64: 128, 128>}, {pipeline_mode = #tpu.pipeline_mode<synchronous>, transform_indices = @transform_4, window_bounds = array<i64: 1, 128>}, {pipeline_mode = #tpu.pipeline_mode<synchronous>, transform_indices = @transform_5, window_bounds = array<i64: 128, 128>}, {pipeline_mode = #tpu.pipeline_mode<synchronous>, transform_indices = @transform_6, window_bounds = array<i64: 1, 128>}, {transform_indices = @transform_7, window_bounds = array<i64: 1, 8, 8, 128>}, {transform_indices = @transform_8, window_bounds = array<i64: 1, 1, 128>}]} {
    %cst = arith.constant 0.000000e+00 : bf16
    %0 = vector.broadcast %cst : bf16 to vector<8x1x128xbf16>
    %c0 = arith.constant 0 : index
    %c0_0 = arith.constant 0 : index
    %c0_1 = arith.constant 0 : index
    %c0_2 = arith.constant 0 : index
    %1 = vector.load %arg1[%c0, %c0_0, %c0_1, %c0_2] : memref<1x8x8x128xbf16, #tpu.memory_space<vmem>>, vector<1x8x8x128xbf16>
    %2 = vector.shape_cast %1 : vector<1x8x8x128xbf16> to vector<8x8x128xbf16>
    %3 = tpu.concatenate %0, %2, %0 in 1 : vector<8x1x128xbf16>, vector<8x8x128xbf16>, vector<8x1x128xbf16> -> vector<8x10x128xbf16>
    %c1 = arith.constant 1 : index
    %c0_3 = arith.constant 0 : index
    %c0_4 = arith.constant 0 : index
    %4 = vector.load %arg10[%c1, %c0_3, %c0_4] : memref<10x10x128xbf16, #tpu.memory_space<vmem>>, vector<8x10x128xbf16>
    tpu.vector_store %arg10[%c1, %c0_3, %c0_4], %3 {strides = array<i32>} : memref<10x10x128xbf16, #tpu.memory_space<vmem>>, vector<8x10x128xbf16>,
    %cst_5 = arith.constant 0.000000e+00 : bf16
    %5 = vector.broadcast %cst_5 : bf16 to vector<1x10x128xbf16>
    %c0_6 = arith.constant 0 : index
    %c0_7 = arith.constant 0 : index
    %c0_8 = arith.constant 0 : index
    %6 = vector.load %arg10[%c0_6, %c0_7, %c0_8] : memref<10x10x128xbf16, #tpu.memory_space<vmem>>, vector<1x10x128xbf16>
    tpu.vector_store %arg10[%c0_6, %c0_7, %c0_8], %5 {strides = array<i32>} : memref<10x10x128xbf16, #tpu.memory_space<vmem>>, vector<1x10x128xbf16>,
    %c9 = arith.constant 9 : index
    %c0_9 = arith.constant 0 : index
    %c0_10 = arith.constant 0 : index
    %7 = vector.load %arg10[%c9, %c0_9, %c0_10] : memref<10x10x128xbf16, #tpu.memory_space<vmem>>, vector<1x10x128xbf16>
    tpu.vector_store %arg10[%c9, %c0_9, %c0_10], %5 {strides = array<i32>} : memref<10x10x128xbf16, #tpu.memory_space<vmem>>, vector<1x10x128xbf16>,
    %cst_11 = arith.constant 0.000000e+00 : f32
    %8 = vector.broadcast %cst_11 : f32 to vector<8x8x128xf32>
    %c0_12 = arith.constant 0 : index
    %c0_13 = arith.constant 0 : index
    %c0_14 = arith.constant 0 : index
    %9 = vector.load %arg10[%c0_12, %c0_13, %c0_14] : memref<10x10x128xbf16, #tpu.memory_space<vmem>>, vector<8x8x128xbf16>
    %c0_15 = arith.constant 0 : index
    %c0_16 = arith.constant 0 : index
    %c0_17 = arith.constant 0 : index
    %c0_18 = arith.constant 0 : index
    %10 = vector.load %arg2[%c0_15, %c0_16, %c0_17, %c0_18] : memref<9x1x1x128xbf16, #tpu.memory_space<vmem>>, vector<1x1x1x128xbf16>
    %11 = vector.shape_cast %10 : vector<1x1x1x128xbf16> to vector<1x1x128xbf16>
    %12 = vector.broadcast %11 : vector<1x1x128xbf16> to vector<8x8x128xbf16>
    %13 = arith.mulf %9, %12 : vector<8x8x128xbf16>
    %14 = arith.extf %13 : vector<8x8x128xbf16> to vector<8x8x128xf32>
    %15 = arith.addf %8, %14 : vector<8x8x128xf32>
    %c0_19 = arith.constant 0 : index
    %c1_20 = arith.constant 1 : index
    %c0_21 = arith.constant 0 : index
    %16 = vector.load %arg10[%c0_19, %c1_20, %c0_21] : memref<10x10x128xbf16, #tpu.memory_space<vmem>>, vector<8x8x128xbf16>
    %c1_22 = arith.constant 1 : index
    %c0_23 = arith.constant 0 : index
    %c0_24 = arith.constant 0 : index
    %c0_25 = arith.constant 0 : index
    %17 = vector.load %arg2[%c1_22, %c0_23, %c0_24, %c0_25] : memref<9x1x1x128xbf16, #tpu.memory_space<vmem>>, vector<1x1x1x128xbf16>
    %18 = vector.shape_cast %17 : vector<1x1x1x128xbf16> to vector<1x1x128xbf16>
    %19 = vector.broadcast %18 : vector<1x1x128xbf16> to vector<8x8x128xbf16>
    %20 = arith.mulf %16, %19 : vector<8x8x128xbf16>
    %21 = arith.extf %20 : vector<8x8x128xbf16> to vector<8x8x128xf32>
    %22 = arith.addf %15, %21 : vector<8x8x128xf32>
    %c0_26 = arith.constant 0 : index
    %c2 = arith.constant 2 : index
    %c0_27 = arith.constant 0 : index
    %23 = vector.load %arg10[%c0_26, %c2, %c0_27] : memref<10x10x128xbf16, #tpu.memory_space<vmem>>, vector<8x8x128xbf16>
    %c2_28 = arith.constant 2 : index
    %c0_29 = arith.constant 0 : index
    %c0_30 = arith.constant 0 : index
    %c0_31 = arith.constant 0 : index
    %24 = vector.load %arg2[%c2_28, %c0_29, %c0_30, %c0_31] : memref<9x1x1x128xbf16, #tpu.memory_space<vmem>>, vector<1x1x1x128xbf16>
    %25 = vector.shape_cast %24 : vector<1x1x1x128xbf16> to vector<1x1x128xbf16>
    %26 = vector.broadcast %25 : vector<1x1x128xbf16> to vector<8x8x128xbf16>
    %27 = arith.mulf %23, %26 : vector<8x8x128xbf16>
    %28 = arith.extf %27 : vector<8x8x128xbf16> to vector<8x8x128xf32>
    %29 = arith.addf %22, %28 : vector<8x8x128xf32>
    %c1_32 = arith.constant 1 : index
    %c0_33 = arith.constant 0 : index
    %c0_34 = arith.constant 0 : index
    %30 = vector.load %arg10[%c1_32, %c0_33, %c0_34] : memref<10x10x128xbf16, #tpu.memory_space<vmem>>, vector<8x8x128xbf16>
    %c3 = arith.constant 3 : index
    %c0_35 = arith.constant 0 : index
    %c0_36 = arith.constant 0 : index
    %c0_37 = arith.constant 0 : index
    %31 = vector.load %arg2[%c3, %c0_35, %c0_36, %c0_37] : memref<9x1x1x128xbf16, #tpu.memory_space<vmem>>, vector<1x1x1x128xbf16>
    %32 = vector.shape_cast %31 : vector<1x1x1x128xbf16> to vector<1x1x128xbf16>
    %33 = vector.broadcast %32 : vector<1x1x128xbf16> to vector<8x8x128xbf16>
    %34 = arith.mulf %30, %33 : vector<8x8x128xbf16>
    %35 = arith.extf %34 : vector<8x8x128xbf16> to vector<8x8x128xf32>
    %36 = arith.addf %29, %35 : vector<8x8x128xf32>
    %c1_38 = arith.constant 1 : index
    %c1_39 = arith.constant 1 : index
    %c0_40 = arith.constant 0 : index
    %37 = vector.load %arg10[%c1_38, %c1_39, %c0_40] : memref<10x10x128xbf16, #tpu.memory_space<vmem>>, vector<8x8x128xbf16>
    %c4 = arith.constant 4 : index
    %c0_41 = arith.constant 0 : index
    %c0_42 = arith.constant 0 : index
    %c0_43 = arith.constant 0 : index
    %38 = vector.load %arg2[%c4, %c0_41, %c0_42, %c0_43] : memref<9x1x1x128xbf16, #tpu.memory_space<vmem>>, vector<1x1x1x128xbf16>
    %39 = vector.shape_cast %38 : vector<1x1x1x128xbf16> to vector<1x1x128xbf16>
    %40 = vector.broadcast %39 : vector<1x1x128xbf16> to vector<8x8x128xbf16>
    %41 = arith.mulf %37, %40 : vector<8x8x128xbf16>
    %42 = arith.extf %41 : vector<8x8x128xbf16> to vector<8x8x128xf32>
    %43 = arith.addf %36, %42 : vector<8x8x128xf32>
    %c1_44 = arith.constant 1 : index
    %c2_45 = arith.constant 2 : index
    %c0_46 = arith.constant 0 : index
    %44 = vector.load %arg10[%c1_44, %c2_45, %c0_46] : memref<10x10x128xbf16, #tpu.memory_space<vmem>>, vector<8x8x128xbf16>
    %c5 = arith.constant 5 : index
    %c0_47 = arith.constant 0 : index
    %c0_48 = arith.constant 0 : index
    %c0_49 = arith.constant 0 : index
    %45 = vector.load %arg2[%c5, %c0_47, %c0_48, %c0_49] : memref<9x1x1x128xbf16, #tpu.memory_space<vmem>>, vector<1x1x1x128xbf16>
    %46 = vector.shape_cast %45 : vector<1x1x1x128xbf16> to vector<1x1x128xbf16>
    %47 = vector.broadcast %46 : vector<1x1x128xbf16> to vector<8x8x128xbf16>
    %48 = arith.mulf %44, %47 : vector<8x8x128xbf16>
    %49 = arith.extf %48 : vector<8x8x128xbf16> to vector<8x8x128xf32>
    %50 = arith.addf %43, %49 : vector<8x8x128xf32>
    %c2_50 = arith.constant 2 : index
    %c0_51 = arith.constant 0 : index
    %c0_52 = arith.constant 0 : index
    %51 = vector.load %arg10[%c2_50, %c0_51, %c0_52] : memref<10x10x128xbf16, #tpu.memory_space<vmem>>, vector<8x8x128xbf16>
    %c6 = arith.constant 6 : index
    %c0_53 = arith.constant 0 : index
    %c0_54 = arith.constant 0 : index
    %c0_55 = arith.constant 0 : index
    %52 = vector.load %arg2[%c6, %c0_53, %c0_54, %c0_55] : memref<9x1x1x128xbf16, #tpu.memory_space<vmem>>, vector<1x1x1x128xbf16>
    %53 = vector.shape_cast %52 : vector<1x1x1x128xbf16> to vector<1x1x128xbf16>
    %54 = vector.broadcast %53 : vector<1x1x128xbf16> to vector<8x8x128xbf16>
    %55 = arith.mulf %51, %54 : vector<8x8x128xbf16>
    %56 = arith.extf %55 : vector<8x8x128xbf16> to vector<8x8x128xf32>
    %57 = arith.addf %50, %56 : vector<8x8x128xf32>
    %c2_56 = arith.constant 2 : index
    %c1_57 = arith.constant 1 : index
    %c0_58 = arith.constant 0 : index
    %58 = vector.load %arg10[%c2_56, %c1_57, %c0_58] : memref<10x10x128xbf16, #tpu.memory_space<vmem>>, vector<8x8x128xbf16>
    %c7 = arith.constant 7 : index
    %c0_59 = arith.constant 0 : index
    %c0_60 = arith.constant 0 : index
    %c0_61 = arith.constant 0 : index
    %59 = vector.load %arg2[%c7, %c0_59, %c0_60, %c0_61] : memref<9x1x1x128xbf16, #tpu.memory_space<vmem>>, vector<1x1x1x128xbf16>
    %60 = vector.shape_cast %59 : vector<1x1x1x128xbf16> to vector<1x1x128xbf16>
    %61 = vector.broadcast %60 : vector<1x1x128xbf16> to vector<8x8x128xbf16>
    %62 = arith.mulf %58, %61 : vector<8x8x128xbf16>
    %63 = arith.extf %62 : vector<8x8x128xbf16> to vector<8x8x128xf32>
    %64 = arith.addf %57, %63 : vector<8x8x128xf32>
    %c2_62 = arith.constant 2 : index
    %c2_63 = arith.constant 2 : index
    %c0_64 = arith.constant 0 : index
    %65 = vector.load %arg10[%c2_62, %c2_63, %c0_64] : memref<10x10x128xbf16, #tpu.memory_space<vmem>>, vector<8x8x128xbf16>
    %c8 = arith.constant 8 : index
    %c0_65 = arith.constant 0 : index
    %c0_66 = arith.constant 0 : index
    %c0_67 = arith.constant 0 : index
    %66 = vector.load %arg2[%c8, %c0_65, %c0_66, %c0_67] : memref<9x1x1x128xbf16, #tpu.memory_space<vmem>>, vector<1x1x1x128xbf16>
    %67 = vector.shape_cast %66 : vector<1x1x1x128xbf16> to vector<1x1x128xbf16>
    %68 = vector.broadcast %67 : vector<1x1x128xbf16> to vector<8x8x128xbf16>
    %69 = arith.mulf %65, %68 : vector<8x8x128xbf16>
    %70 = arith.extf %69 : vector<8x8x128xbf16> to vector<8x8x128xf32>
    %71 = arith.addf %64, %70 : vector<8x8x128xf32>
    %c0_68 = arith.constant 0 : index
    %c0_69 = arith.constant 0 : index
    %c0_70 = arith.constant 0 : index
    %72 = vector.load %arg3[%c0_68, %c0_69, %c0_70] : memref<1x1x128xf32, #tpu.memory_space<vmem>>, vector<1x1x128xf32>
    %73 = vector.broadcast %72 : vector<1x1x128xf32> to vector<8x8x128xf32>
    %74 = arith.addf %71, %73 : vector<8x8x128xf32>
    %75 = arith.negf %74 : vector<8x8x128xf32>
    %76 = math.exp %75 : vector<8x8x128xf32>
    %cst_71 = arith.constant 1.000000e+00 : f32
    %77 = vector.broadcast %cst_71 : f32 to vector<8x8x128xf32>
    %78 = arith.addf %77, %76 : vector<8x8x128xf32>
    %79 = arith.divf %77, %78 : vector<8x8x128xf32>
    %80 = arith.mulf %74, %79 : vector<8x8x128xf32>
    %81 = arith.truncf %80 : vector<8x8x128xf32> to vector<8x8x128xbf16>
    %c0_72 = arith.constant 0 : index
    %c0_73 = arith.constant 0 : index
    %c0_74 = arith.constant 0 : index
    %c0_75 = arith.constant 0 : index
    %82 = vector.load %arg8[%c0_72, %c0_73, %c0_74, %c0_75] : memref<1x8x8x128xbf16, #tpu.memory_space<vmem>>, vector<1x8x8x128xbf16>
    %83 = vector.shape_cast %82 : vector<1x8x8x128xbf16> to vector<8x8x128xbf16>
    %84 = vector.shape_cast %81 : vector<8x8x128xbf16> to vector<1x8x8x128xbf16>
    tpu.vector_store %arg8[%c0_72, %c0_73, %c0_74, %c0_75], %84 {strides = array<i32>} : memref<1x8x8x128xbf16, #tpu.memory_space<vmem>>, vector<1x8x8x128xbf16>,
    %cst_76 = arith.constant dense<0.000000e+00> : vector<128xf32>
    %85 = vector.multi_reduction <add>, %80, %cst_76 [0, 1] : vector<8x8x128xf32> to vector<128xf32>
    %cst_77 = arith.constant 6.400000e+01 : f32
    %86 = vector.broadcast %cst_77 : f32 to vector<128xf32>
    %87 = arith.divf %85, %86 : vector<128xf32>
    %88 = vector.shape_cast %87 : vector<128xf32> to vector<1x128xf32>
    %89 = arith.truncf %88 : vector<1x128xf32> to vector<1x128xbf16>
    %c0_78 = arith.constant 0 : index
    %c0_79 = arith.constant 0 : index
    %90 = vector.load %arg4[%c0_78, %c0_79] : memref<128x128xbf16, #tpu.memory_space<vmem>>, vector<128x128xbf16>
    %cst_80 = arith.constant dense<0.000000e+00> : vector<1x128xf32>
    %91 = tpu.matmul %89, %90, %cst_80 {dimension_numbers = #tpu.dot_dimension_numbers<[1], [0], [0], [1], [0, 0, 1, 1], [], []>} : vector<1x128xbf16>, vector<128x128xbf16>, vector<1x128xf32> -> vector<1x128xf32>
    %c0_81 = arith.constant 0 : index
    %c0_82 = arith.constant 0 : index
    %92 = vector.load %arg5[%c0_81, %c0_82] : memref<1x128xf32, #tpu.memory_space<vmem>>, vector<1x128xf32>
    %93 = arith.addf %91, %92 : vector<1x128xf32>
    %94 = arith.negf %93 : vector<1x128xf32>
    %95 = math.exp %94 : vector<1x128xf32>
    %cst_83 = arith.constant 1.000000e+00 : f32
    %96 = vector.broadcast %cst_83 : f32 to vector<1x128xf32>
    %97 = arith.addf %96, %95 : vector<1x128xf32>
    %98 = arith.divf %96, %97 : vector<1x128xf32>
    %99 = arith.mulf %93, %98 : vector<1x128xf32>
    %100 = arith.truncf %99 : vector<1x128xf32> to vector<1x128xbf16>
    %c0_84 = arith.constant 0 : index
    %c0_85 = arith.constant 0 : index
    %101 = vector.load %arg6[%c0_84, %c0_85] : memref<128x128xbf16, #tpu.memory_space<vmem>>, vector<128x128xbf16>
    %cst_86 = arith.constant dense<0.000000e+00> : vector<1x128xf32>
    %102 = tpu.matmul %100, %101, %cst_86 {dimension_numbers = #tpu.dot_dimension_numbers<[1], [0], [0], [1], [0, 0, 1, 1], [], []>} : vector<1x128xbf16>, vector<128x128xbf16>, vector<1x128xf32> -> vector<1x128xf32>
    %c0_87 = arith.constant 0 : index
    %c0_88 = arith.constant 0 : index
    %103 = vector.load %arg7[%c0_87, %c0_88] : memref<1x128xf32, #tpu.memory_space<vmem>>, vector<1x128xf32>
    %104 = arith.addf %102, %103 : vector<1x128xf32>
    %105 = arith.negf %104 : vector<1x128xf32>
    %106 = math.exp %105 : vector<1x128xf32>
    %cst_89 = arith.constant 1.000000e+00 : f32
    %107 = vector.broadcast %cst_89 : f32 to vector<1x128xf32>
    %108 = arith.addf %107, %106 : vector<1x128xf32>
    %109 = arith.divf %107, %108 : vector<1x128xf32>
    %110 = arith.truncf %109 : vector<1x128xf32> to vector<1x128xbf16>
    %c0_90 = arith.constant 0 : index
    %c0_91 = arith.constant 0 : index
    %c0_92 = arith.constant 0 : index
    %111 = vector.load %arg9[%c0_90, %c0_91, %c0_92] : memref<1x1x128xbf16, #tpu.memory_space<vmem>>, vector<1x1x128xbf16>
    %112 = vector.shape_cast %111 : vector<1x1x128xbf16> to vector<1x128xbf16>
    %113 = vector.shape_cast %110 : vector<1x128xbf16> to vector<1x1x128xbf16>
    tpu.vector_store %arg9[%c0_90, %c0_91, %c0_92], %113 {strides = array<i32>} : memref<1x1x128xbf16, #tpu.memory_space<vmem>>, vector<1x1x128xbf16>,
    return
  }
  func.func @transform_0(%arg0: i32) -> (i32, i32, i32, i32) {
    %c0_i32 = arith.constant 0 : i32
    %c0_i32_0 = arith.constant 0 : i32
    %c0_i32_1 = arith.constant 0 : i32
    %c0_i32_2 = arith.constant 0 : i32
    return %arg0, %c0_i32, %c0_i32_0, %c0_i32_1 : i32, i32, i32, i32
  }
  func.func @transform_1(%arg0: i32) -> (i32, i32, i32, i32) {
    %c0_i32 = arith.constant 0 : i32
    %c0_i32_0 = arith.constant 0 : i32
    %c0_i32_1 = arith.constant 0 : i32
    %c0_i32_2 = arith.constant 0 : i32
    %c0_i32_3 = arith.constant 0 : i32
    return %c0_i32, %c0_i32_0, %c0_i32_1, %c0_i32_2 : i32, i32, i32, i32
  }
  func.func @transform_2(%arg0: i32) -> (i32, i32, i32) {
    %c0_i32 = arith.constant 0 : i32
    %c0_i32_0 = arith.constant 0 : i32
    %c0_i32_1 = arith.constant 0 : i32
    %c0_i32_2 = arith.constant 0 : i32
    return %c0_i32, %c0_i32_0, %c0_i32_1 : i32, i32, i32
  }
  func.func @transform_3(%arg0: i32) -> (i32, i32) {
    %c0_i32 = arith.constant 0 : i32
    %c0_i32_0 = arith.constant 0 : i32
    %c0_i32_1 = arith.constant 0 : i32
    return %c0_i32, %c0_i32_0 : i32, i32
  }
  func.func @transform_4(%arg0: i32) -> (i32, i32) {
    %c0_i32 = arith.constant 0 : i32
    %c0_i32_0 = arith.constant 0 : i32
    %c0_i32_1 = arith.constant 0 : i32
    return %c0_i32, %c0_i32_0 : i32, i32
  }
  func.func @transform_5(%arg0: i32) -> (i32, i32) {
    %c0_i32 = arith.constant 0 : i32
    %c0_i32_0 = arith.constant 0 : i32
    %c0_i32_1 = arith.constant 0 : i32
    return %c0_i32, %c0_i32_0 : i32, i32
  }
  func.func @transform_6(%arg0: i32) -> (i32, i32) {
    %c0_i32 = arith.constant 0 : i32
    %c0_i32_0 = arith.constant 0 : i32
    %c0_i32_1 = arith.constant 0 : i32
    return %c0_i32, %c0_i32_0 : i32, i32
  }
  func.func @transform_7(%arg0: i32) -> (i32, i32, i32, i32) {
    %c0_i32 = arith.constant 0 : i32
    %c0_i32_0 = arith.constant 0 : i32
    %c0_i32_1 = arith.constant 0 : i32
    %c0_i32_2 = arith.constant 0 : i32
    return %arg0, %c0_i32, %c0_i32_0, %c0_i32_1 : i32, i32, i32, i32
  }
  func.func @transform_8(%arg0: i32) -> (i32, i32, i32) {
    %c0_i32 = arith.constant 0 : i32
    %c0_i32_0 = arith.constant 0 : i32
    %c0_i32_1 = arith.constant 0 : i32
    return %arg0, %c0_i32, %c0_i32_0 : i32, i32, i32
  }
}

module attributes {stable_mosaic.version = 11 : i64} {
  func.func @_se_proj_res_kernel(%arg0: i32, %arg1: i32, %arg2: memref<1x64x128xbf16, #tpu.memory_space<vmem>>, %arg3: memref<1x1x128xbf16, #tpu.memory_space<vmem>>, %arg4: memref<128x128xbf16, #tpu.memory_space<vmem>>, %arg5: memref<1x128xf32, #tpu.memory_space<vmem>>, %arg6: memref<1x64x128xbf16, #tpu.memory_space<vmem>>, %arg7: memref<1x64x128xbf16, #tpu.memory_space<vmem>>) attributes {dimension_semantics = [#tpu.dimension_semantics<parallel>, #tpu.dimension_semantics<parallel>], iteration_bounds = array<i64: 2, 1>, scalar_prefetch = 0 : i64, scratch_operands = 0 : i64, tpu.core_type = #tpu.core_type<tc>, window_params = [{transform_indices = @transform_0, window_bounds = array<i64: 1, 64, 128>}, {transform_indices = @transform_1, window_bounds = array<i64: 1, 1, 128>}, {pipeline_mode = #tpu.pipeline_mode<synchronous>, transform_indices = @transform_2, window_bounds = array<i64: 128, 128>}, {pipeline_mode = #tpu.pipeline_mode<synchronous>, transform_indices = @transform_3, window_bounds = array<i64: 1, 128>}, {transform_indices = @transform_4, window_bounds = array<i64: 1, 64, 128>}, {transform_indices = @transform_5, window_bounds = array<i64: 1, 64, 128>}]} {
    %c0 = arith.constant 0 : index
    %c0_0 = arith.constant 0 : index
    %c0_1 = arith.constant 0 : index
    %0 = vector.load %arg2[%c0, %c0_0, %c0_1] : memref<1x64x128xbf16, #tpu.memory_space<vmem>>, vector<1x64x128xbf16>
    %1 = vector.shape_cast %0 : vector<1x64x128xbf16> to vector<64x128xbf16>
    %c0_2 = arith.constant 0 : index
    %c0_3 = arith.constant 0 : index
    %c0_4 = arith.constant 0 : index
    %2 = vector.load %arg3[%c0_2, %c0_3, %c0_4] : memref<1x1x128xbf16, #tpu.memory_space<vmem>>, vector<1x1x128xbf16>
    %3 = vector.shape_cast %2 : vector<1x1x128xbf16> to vector<1x128xbf16>
    %4 = vector.broadcast %3 : vector<1x128xbf16> to vector<64x128xbf16>
    %5 = arith.mulf %1, %4 : vector<64x128xbf16>
    %c0_5 = arith.constant 0 : index
    %c0_6 = arith.constant 0 : index
    %6 = vector.load %arg4[%c0_5, %c0_6] : memref<128x128xbf16, #tpu.memory_space<vmem>>, vector<128x128xbf16>
    %cst = arith.constant dense<0.000000e+00> : vector<64x128xf32>
    %7 = tpu.matmul %5, %6, %cst {dimension_numbers = #tpu.dot_dimension_numbers<[1], [0], [0], [1], [0, 0, 1, 1], [], []>} : vector<64x128xbf16>, vector<128x128xbf16>, vector<64x128xf32> -> vector<64x128xf32>
    %c0_7 = arith.constant 0 : index
    %c0_8 = arith.constant 0 : index
    %8 = vector.load %arg5[%c0_7, %c0_8] : memref<1x128xf32, #tpu.memory_space<vmem>>, vector<1x128xf32>
    %9 = vector.broadcast %8 : vector<1x128xf32> to vector<64x128xf32>
    %10 = arith.addf %7, %9 : vector<64x128xf32>
    %c0_9 = arith.constant 0 : index
    %c0_10 = arith.constant 0 : index
    %c0_11 = arith.constant 0 : index
    %11 = vector.load %arg6[%c0_9, %c0_10, %c0_11] : memref<1x64x128xbf16, #tpu.memory_space<vmem>>, vector<1x64x128xbf16>
    %12 = vector.shape_cast %11 : vector<1x64x128xbf16> to vector<64x128xbf16>
    %13 = arith.extf %12 : vector<64x128xbf16> to vector<64x128xf32>
    %14 = arith.addf %10, %13 : vector<64x128xf32>
    %15 = arith.truncf %14 : vector<64x128xf32> to vector<64x128xbf16>
    %c0_12 = arith.constant 0 : index
    %c0_13 = arith.constant 0 : index
    %c0_14 = arith.constant 0 : index
    %16 = vector.load %arg7[%c0_12, %c0_13, %c0_14] : memref<1x64x128xbf16, #tpu.memory_space<vmem>>, vector<1x64x128xbf16>
    %17 = vector.shape_cast %16 : vector<1x64x128xbf16> to vector<64x128xbf16>
    %18 = vector.shape_cast %15 : vector<64x128xbf16> to vector<1x64x128xbf16>
    tpu.vector_store %arg7[%c0_12, %c0_13, %c0_14], %18 {strides = array<i32>} : memref<1x64x128xbf16, #tpu.memory_space<vmem>>, vector<1x64x128xbf16>,
    return
  }
  func.func @transform_0(%arg0: i32, %arg1: i32) -> (i32, i32, i32) {
    %c0_i32 = arith.constant 0 : i32
    %c0_i32_0 = arith.constant 0 : i32
    return %arg0, %arg1, %c0_i32 : i32, i32, i32
  }
  func.func @transform_1(%arg0: i32, %arg1: i32) -> (i32, i32, i32) {
    %c0_i32 = arith.constant 0 : i32
    %c0_i32_0 = arith.constant 0 : i32
    %c0_i32_1 = arith.constant 0 : i32
    return %arg0, %c0_i32, %c0_i32_0 : i32, i32, i32
  }
  func.func @transform_2(%arg0: i32, %arg1: i32) -> (i32, i32) {
    %c0_i32 = arith.constant 0 : i32
    %c0_i32_0 = arith.constant 0 : i32
    %c0_i32_1 = arith.constant 0 : i32
    return %c0_i32, %c0_i32_0 : i32, i32
  }
  func.func @transform_3(%arg0: i32, %arg1: i32) -> (i32, i32) {
    %c0_i32 = arith.constant 0 : i32
    %c0_i32_0 = arith.constant 0 : i32
    %c0_i32_1 = arith.constant 0 : i32
    return %c0_i32, %c0_i32_0 : i32, i32
  }
  func.func @transform_4(%arg0: i32, %arg1: i32) -> (i32, i32, i32) {
    %c0_i32 = arith.constant 0 : i32
    %c0_i32_0 = arith.constant 0 : i32
    return %arg0, %arg1, %c0_i32 : i32, i32, i32
  }
  func.func @transform_5(%arg0: i32, %arg1: i32) -> (i32, i32, i32) {
    %c0_i32 = arith.constant 0 : i32
    %c0_i32_0 = arith.constant 0 : i32
    return %arg0, %arg1, %c0_i32 : i32, i32, i32
  }
}

module attributes {stable_mosaic.version = 11 : i64} {
  func.func @_head_pool_cls_kernel(%arg0: i32, %arg1: i32, %arg2: memref<1x64x128xbf16, #tpu.memory_space<vmem>>, %arg3: memref<128x128xbf16, #tpu.memory_space<vmem>>, %arg4: memref<1x128xf32, #tpu.memory_space<vmem>>, %arg5: memref<128x128xbf16, #tpu.memory_space<vmem>>, %arg6: memref<1x128xf32, #tpu.memory_space<vmem>>, %arg7: memref<1x1x128xf32, #tpu.memory_space<vmem>>, %arg8: memref<8x128xf32, #tpu.memory_space<vmem>>) attributes {dimension_semantics = [#tpu.dimension_semantics<parallel>, #tpu.dimension_semantics<arbitrary>], iteration_bounds = array<i64: 2, 1>, scalar_prefetch = 0 : i64, scratch_operands = 1 : i64, tpu.core_type = #tpu.core_type<tc>, window_params = [{transform_indices = @transform_0, window_bounds = array<i64: 1, 64, 128>}, {pipeline_mode = #tpu.pipeline_mode<synchronous>, transform_indices = @transform_1, window_bounds = array<i64: 128, 128>}, {pipeline_mode = #tpu.pipeline_mode<synchronous>, transform_indices = @transform_2, window_bounds = array<i64: 1, 128>}, {pipeline_mode = #tpu.pipeline_mode<synchronous>, transform_indices = @transform_3, window_bounds = array<i64: 128, 128>}, {pipeline_mode = #tpu.pipeline_mode<synchronous>, transform_indices = @transform_4, window_bounds = array<i64: 1, 128>}, {transform_indices = @transform_5, window_bounds = array<i64: 1, 1, 128>}]} {
    %c0_i32 = arith.constant 0 : i32
    %0 = arith.cmpi eq, %arg1, %c0_i32 : i32
    %1 = arith.extui %0 : i1 to i32
    %c0_i32_0 = arith.constant 0 : i32
    %2 = arith.cmpi ne, %1, %c0_i32_0 : i32
    scf.if %2 {
      %cst_15 = arith.constant 0.000000e+00 : f32
      %24 = vector.broadcast %cst_15 : f32 to vector<8x128xf32>
      %c0_16 = arith.constant 0 : index
      %c0_17 = arith.constant 0 : index
      %25 = vector.load %arg8[%c0_16, %c0_17] : memref<8x128xf32, #tpu.memory_space<vmem>>, vector<8x128xf32>
      tpu.vector_store %arg8[%c0_16, %c0_17], %24 {strides = array<i32>} : memref<8x128xf32, #tpu.memory_space<vmem>>, vector<8x128xf32>,
    } else {
    }
    %c0 = arith.constant 0 : index
    %c0_1 = arith.constant 0 : index
    %c0_2 = arith.constant 0 : index
    %3 = vector.load %arg2[%c0, %c0_1, %c0_2] : memref<1x64x128xbf16, #tpu.memory_space<vmem>>, vector<1x64x128xbf16>
    %4 = vector.shape_cast %3 : vector<1x64x128xbf16> to vector<64x128xbf16>
    %c0_3 = arith.constant 0 : index
    %c0_4 = arith.constant 0 : index
    %5 = vector.load %arg3[%c0_3, %c0_4] : memref<128x128xbf16, #tpu.memory_space<vmem>>, vector<128x128xbf16>
    %cst = arith.constant dense<0.000000e+00> : vector<64x128xf32>
    %6 = tpu.matmul %4, %5, %cst {dimension_numbers = #tpu.dot_dimension_numbers<[1], [0], [0], [1], [0, 0, 1, 1], [], []>} : vector<64x128xbf16>, vector<128x128xbf16>, vector<64x128xf32> -> vector<64x128xf32>
    %c0_5 = arith.constant 0 : index
    %c0_6 = arith.constant 0 : index
    %7 = vector.load %arg4[%c0_5, %c0_6] : memref<1x128xf32, #tpu.memory_space<vmem>>, vector<1x128xf32>
    %8 = vector.broadcast %7 : vector<1x128xf32> to vector<64x128xf32>
    %9 = arith.addf %6, %8 : vector<64x128xf32>
    %10 = arith.negf %9 : vector<64x128xf32>
    %11 = math.exp %10 : vector<64x128xf32>
    %cst_7 = arith.constant 1.000000e+00 : f32
    %12 = vector.broadcast %cst_7 : f32 to vector<64x128xf32>
    %13 = arith.addf %12, %11 : vector<64x128xf32>
    %14 = arith.divf %12, %13 : vector<64x128xf32>
    %15 = arith.mulf %9, %14 : vector<64x128xf32>
    %c0_8 = arith.constant 0 : index
    %c0_9 = arith.constant 0 : index
    %16 = vector.load %arg8[%c0_8, %c0_9] : memref<8x128xf32, #tpu.memory_space<vmem>>, vector<8x128xf32>
    %17 = vector.shape_cast %15 : vector<64x128xf32> to vector<8x8x128xf32>
    %cst_10 = arith.constant dense<0.000000e+00> : vector<8x128xf32>
    %18 = vector.multi_reduction <add>, %17, %cst_10 [0] : vector<8x8x128xf32> to vector<8x128xf32>
    %19 = arith.addf %16, %18 : vector<8x128xf32>
    %c0_11 = arith.constant 0 : index
    %c0_12 = arith.constant 0 : index
    %20 = vector.load %arg8[%c0_11, %c0_12] : memref<8x128xf32, #tpu.memory_space<vmem>>, vector<8x128xf32>
    tpu.vector_store %arg8[%c0_11, %c0_12], %19 {strides = array<i32>} : memref<8x128xf32, #tpu.memory_space<vmem>>, vector<8x128xf32>,
    %c0_i32_13 = arith.constant 0 : i32
    %21 = arith.cmpi eq, %arg1, %c0_i32_13 : i32
    %22 = arith.extui %21 : i1 to i32
    %c0_i32_14 = arith.constant 0 : i32
    %23 = arith.cmpi ne, %22, %c0_i32_14 : i32
    scf.if %23 {
      %c0_15 = arith.constant 0 : index
      %c0_16 = arith.constant 0 : index
      %24 = vector.load %arg8[%c0_15, %c0_16] : memref<8x128xf32, #tpu.memory_space<vmem>>, vector<8x128xf32>
      %cst_17 = arith.constant dense<0.000000e+00> : vector<128xf32>
      %25 = vector.multi_reduction <add>, %24, %cst_17 [0] : vector<8x128xf32> to vector<128xf32>
      %26 = vector.shape_cast %25 : vector<128xf32> to vector<1x128xf32>
      %cst_18 = arith.constant 1.562500e-02 : f32
      %27 = vector.broadcast %cst_18 : f32 to vector<1x128xf32>
      %28 = arith.mulf %26, %27 : vector<1x128xf32>
      %29 = arith.truncf %28 : vector<1x128xf32> to vector<1x128xbf16>
      %c0_19 = arith.constant 0 : index
      %c0_20 = arith.constant 0 : index
      %30 = vector.load %arg5[%c0_19, %c0_20] : memref<128x128xbf16, #tpu.memory_space<vmem>>, vector<128x128xbf16>
      %cst_21 = arith.constant dense<0.000000e+00> : vector<1x128xf32>
      %31 = tpu.matmul %29, %30, %cst_21 {dimension_numbers = #tpu.dot_dimension_numbers<[1], [0], [0], [1], [0, 0, 1, 1], [], []>} : vector<1x128xbf16>, vector<128x128xbf16>, vector<1x128xf32> -> vector<1x128xf32>
      %c0_22 = arith.constant 0 : index
      %c0_23 = arith.constant 0 : index
      %32 = vector.load %arg6[%c0_22, %c0_23] : memref<1x128xf32, #tpu.memory_space<vmem>>, vector<1x128xf32>
      %33 = arith.addf %31, %32 : vector<1x128xf32>
      %c0_24 = arith.constant 0 : index
      %c0_25 = arith.constant 0 : index
      %c0_26 = arith.constant 0 : index
      %34 = vector.load %arg7[%c0_24, %c0_25, %c0_26] : memref<1x1x128xf32, #tpu.memory_space<vmem>>, vector<1x1x128xf32>
      %35 = vector.shape_cast %34 : vector<1x1x128xf32> to vector<1x128xf32>
      %36 = vector.shape_cast %33 : vector<1x128xf32> to vector<1x1x128xf32>
      tpu.vector_store %arg7[%c0_24, %c0_25, %c0_26], %36 {strides = array<i32>} : memref<1x1x128xf32, #tpu.memory_space<vmem>>, vector<1x1x128xf32>,
    } else {
    }
    return
  }
  func.func @transform_0(%arg0: i32, %arg1: i32) -> (i32, i32, i32) {
    %c0_i32 = arith.constant 0 : i32
    %c0_i32_0 = arith.constant 0 : i32
    return %arg0, %arg1, %c0_i32 : i32, i32, i32
  }
  func.func @transform_1(%arg0: i32, %arg1: i32) -> (i32, i32) {
    %c0_i32 = arith.constant 0 : i32
    %c0_i32_0 = arith.constant 0 : i32
    %c0_i32_1 = arith.constant 0 : i32
    return %c0_i32, %c0_i32_0 : i32, i32
  }
  func.func @transform_2(%arg0: i32, %arg1: i32) -> (i32, i32) {
    %c0_i32 = arith.constant 0 : i32
    %c0_i32_0 = arith.constant 0 : i32
    %c0_i32_1 = arith.constant 0 : i32
    return %c0_i32, %c0_i32_0 : i32, i32
  }
  func.func @transform_3(%arg0: i32, %arg1: i32) -> (i32, i32) {
    %c0_i32 = arith.constant 0 : i32
    %c0_i32_0 = arith.constant 0 : i32
    %c0_i32_1 = arith.constant 0 : i32
    return %c0_i32, %c0_i32_0 : i32, i32
  }
  func.func @transform_4(%arg0: i32, %arg1: i32) -> (i32, i32) {
    %c0_i32 = arith.constant 0 : i32
    %c0_i32_0 = arith.constant 0 : i32
    %c0_i32_1 = arith.constant 0 : i32
    return %c0_i32, %c0_i32_0 : i32, i32
  }
  func.func @transform_5(%arg0: i32, %arg1: i32) -> (i32, i32, i32) {
    %c0_i32 = arith.constant 0 : i32
    %c0_i32_0 = arith.constant 0 : i32
    %c0_i32_1 = arith.constant 0 : i32
    return %arg0, %c0_i32, %c0_i32_0 : i32, i32, i32
  }
}

</mosaic_0001>

<llo_original>
// kernel: forward.8
$region0: #{forward.8}
  #allocation0 [shape = 'u32[]', space=smem, size = 0x4, offset = 0x4, fixed_abs, tag = 'smem constant byte address 0x4 - core index']
  #allocation1 [shape = 'u32[72,128]{1,0:T(1,128)}', space=vmem, size = 0x9000, scoped, tag = 'internal scratch']
  %s0 = inlined_call_operand.vmem [shape: bf16[2,64,128], index: 0, kind: input, shape index: {}]
  %s1 = inlined_call_operand.vmem [shape: bf16[2,1,128], index: 1, kind: input, shape index: {}]
  %s2 = inlined_call_operand.vmem [shape: bf16[128,128], index: 2, kind: input, shape index: {}]
  %s3 = inlined_call_operand.vmem [shape: f32[1,128], index: 3, kind: input, shape index: {}]
  %s4 = inlined_call_operand.vmem [shape: bf16[2,64,128], index: 4, kind: input, shape index: {}]
  %s5 = inlined_call_operand.vmem [shape: bf16[2,64,128], index: 5, kind: output, shape index: {}]
  %s6 = sld [smem:[#allocation0]]
  $region53: #{forward.8} parent=0
    _
  %s8 = ssub.s32 1, %s6
  %s9 = scalar_select 0, %s8, %s6
  loop: start=0, step=1, limit=4
  $region2: #{forward.8} parent=0 // loop_pre_header
    _
  $region3: #{forward.8} parent=0 // loop_header
    %s11 = sphi 0, %s15
    %p12 = scmp.ge.s32.totalorder %s11, 4
    %s18 = sphi 0, %s30
    %s19 = sphi 0, %s26
    %s20 = sphi 0, %s18
    %s21 = sphi 0, %s19
    %s22 = sphi 0, %s20
    %s23 = sphi 0, %s21
    %s35 = sphi 0, %s37
    %s38 = sphi 0, %s35
    %s39 = sphi 0, %s38
    %s55 = sphi 0, %s39
    %s61 = sphi 0, %s63
    %s64 = sphi 0, %s61
    %s65 = sphi 0, %s64
    %s81 = sphi 0, %s65
    %s85 = sphi 0, %s85
    %s87 = sphi 0, %s85
    %s88 = sphi 0, %s87
    %s102 = sphi 0, %s88
    %s106 = sphi 0, %s106
    %s108 = sphi 0, %s106
    %s109 = sphi 0, %s108
    %s123 = sphi 0, %s109
    %s131 = sphi 0, %s133
    %s134 = sphi 0, %s131
    %s135 = sphi 0, %s134
    %s151 = sphi 0, %s135
    %s159 = sphi 0, %s161
    %s162 = sphi 0, %s159
    %s163 = sphi 0, %s162
    %s179 = sphi 0, %s163
  $region4: #{forward.8} parent=0 // loop_header_branch
    %14 = sbr.rel (%p12) target = $region8
  $region5: #{forward.8} parent=0 // loop_body
    %s16 = ssub.s32 %s11, 1
    %s17 = ssub.s32 %s11, 2
    %s24 = sadd.s32 1, %s19
    %p25 = scmp.ge.s32.totalorder %s24, 1
    %s26 = scalar_select %p25, 0, %s24
    %s27 = sadd.s32 1, %s18
    %s28 = scalar_select %p25, %s27, %s18
    %p29 = scmp.ge.s32.totalorder %s28, 2
    %s30 = scalar_select %p29, 0, %s28
    %s31 = ssub.s32 %s18, %s30
    %s32 = ssub.s32 %s19, %s26
    %s33 = sor.u32 %s31, %s32
    %p34 = scmp.eq.s32.totalorder %s33, 0
    %s36 = sadd.s32 %s35, 1
    %s37 = scalar_select %p34, %s35, %s36
    %p40 = pneg %p34
    %p41 = scmp.eq.s32.totalorder %s11, 1
    %p42 = por %p40, %p41
    %p43 = scmp.ne.s32.totalorder %s35, %s38
    %p44 = scmp.eq.s32.totalorder %s11, 0
    %p45 = por %p43, %p44
    %p46 = scmp.ne.s32.totalorder %s35, %s38
    %p47 = scmp.eq.s32.totalorder %s16, 1
    %p48 = por %p46, %p47
    %p49 = scmp.ne.s32.totalorder %s38, %s39
    %p50 = scmp.eq.s32.totalorder %s16, 0
    %p51 = por %p49, %p50
    %p52 = scmp.ne.s32.totalorder %s38, %s39
    %p53 = scmp.eq.s32.totalorder %s17, 1
    %p54 = por %p52, %p53
    %p56 = scmp.ne.s32.totalorder %s39, %s55
    %p57 = scmp.eq.s32.totalorder %s17, 0
    %p58 = por %p56, %p57
    %s59 = ssub.s32 %s18, %s30
    %p60 = scmp.eq.s32.totalorder %s59, 0
    %s62 = sadd.s32 %s61, 1
    %s63 = scalar_select %p60, %s61, %s62
    %p66 = pneg %p60
    %p67 = scmp.eq.s32.totalorder %s11, 1
    %p68 = por %p66, %p67
    %p69 = scmp.ne.s32.totalorder %s61, %s64
    %p70 = scmp.eq.s32.totalorder %s11, 0
    %p71 = por %p69, %p70
    %p72 = scmp.ne.s32.totalorder %s61, %s64
    %p73 = scmp.eq.s32.totalorder %s16, 1
    %p74 = por %p72, %p73
    %p75 = scmp.ne.s32.totalorder %s64, %s65
    %p76 = scmp.eq.s32.totalorder %s16, 0
    %p77 = por %p75, %p76
    %p78 = scmp.ne.s32.totalorder %s64, %s65
    %p79 = scmp.eq.s32.totalorder %s17, 1
    %p80 = por %p78, %p79
    %p82 = scmp.ne.s32.totalorder %s65, %s81
    %p83 = scmp.eq.s32.totalorder %s17, 0
    %p84 = por %p82, %p83
    %s86 = sadd.s32 %s85, 1
    %p89 = scmp.eq.s32.totalorder %s11, 1
    %p90 = scmp.ne.s32.totalorder %s85, %s87
    %p91 = scmp.eq.s32.totalorder %s11, 0
    %p92 = por %p90, %p91
    %p93 = scmp.ne.s32.totalorder %s85, %s87
    %p94 = scmp.eq.s32.totalorder %s16, 1
    %p95 = por %p93, %p94
    %p96 = scmp.ne.s32.totalorder %s87, %s88
    %p97 = scmp.eq.s32.totalorder %s16, 0
    %p98 = por %p96, %p97
    %p99 = scmp.ne.s32.totalorder %s87, %s88
    %p100 = scmp.eq.s32.totalorder %s17, 1
    %p101 = por %p99, %p100
    %p103 = scmp.ne.s32.totalorder %s88, %s102
    %p104 = scmp.eq.s32.totalorder %s17, 0
    %p105 = por %p103, %p104
    %s107 = sadd.s32 %s106, 1
    %p110 = scmp.eq.s32.totalorder %s11, 1
    %p111 = scmp.ne.s32.totalorder %s106, %s108
    %p112 = scmp.eq.s32.totalorder %s11, 0
    %p113 = por %p111, %p112
    %p114 = scmp.ne.s32.totalorder %s106, %s108
    %p115 = scmp.eq.s32.totalorder %s16, 1
    %p116 = por %p114, %p115
    %p117 = scmp.ne.s32.totalorder %s108, %s109
    %p118 = scmp.eq.s32.totalorder %s16, 0
    %p119 = por %p117, %p118
    %p120 = scmp.ne.s32.totalorder %s108, %s109
    %p121 = scmp.eq.s32.totalorder %s17, 1
    %p122 = por %p120, %p121
    %p124 = scmp.ne.s32.totalorder %s109, %s123
    %p125 = scmp.eq.s32.totalorder %s17, 0
    %p126 = por %p124, %p125
    %s127 = ssub.s32 %s18, %s30
    %s128 = ssub.s32 %s19, %s26
    %s129 = sor.u32 %s127, %s128
    %p130 = scmp.eq.s32.totalorder %s129, 0
    %s132 = sadd.s32 %s131, 1
    %s133 = scalar_select %p130, %s131, %s132
    %p136 = pneg %p130
    %p137 = scmp.eq.s32.totalorder %s11, 1
    %p138 = por %p136, %p137
    %p139 = scmp.ne.s32.totalorder %s131, %s134
    %p140 = scmp.eq.s32.totalorder %s11, 0
    %p141 = por %p139, %p140
    %p142 = scmp.ne.s32.totalorder %s131, %s134
    %p143 = scmp.eq.s32.totalorder %s16, 1
    %p144 = por %p142, %p143
    %p145 = scmp.ne.s32.totalorder %s134, %s135
    %p146 = scmp.eq.s32.totalorder %s16, 0
    %p147 = por %p145, %p146
    %p148 = scmp.ne.s32.totalorder %s134, %s135
    %p149 = scmp.eq.s32.totalorder %s17, 1
    %p150 = por %p148, %p149
    %p152 = scmp.ne.s32.totalorder %s135, %s151
    %p153 = scmp.eq.s32.totalorder %s17, 0
    %p154 = por %p152, %p153
    %s155 = ssub.s32 %s18, %s30
    %s156 = ssub.s32 %s19, %s26
    %s157 = sor.u32 %s155, %s156
    %p158 = scmp.eq.s32.totalorder %s157, 0
    %s160 = sadd.s32 %s159, 1
    %s161 = scalar_select %p158, %s159, %s160
    %p164 = pneg %p158
    %p165 = scmp.eq.s32.totalorder %s11, 1
    %p166 = por %p164, %p165
    %p167 = scmp.ne.s32.totalorder %s159, %s162
    %p168 = scmp.eq.s32.totalorder %s11, 0
    %p169 = por %p167, %p168
    %p170 = scmp.ne.s32.totalorder %s159, %s162
    %p171 = scmp.eq.s32.totalorder %s16, 1
    %p172 = por %p170, %p171
    %p173 = scmp.ne.s32.totalorder %s162, %s163
    %p174 = scmp.eq.s32.totalorder %s16, 0
    %p175 = por %p173, %p174
    %p176 = scmp.ne.s32.totalorder %s162, %s163
    %p177 = scmp.eq.s32.totalorder %s17, 1
    %p178 = por %p176, %p177
    %p180 = scmp.ne.s32.totalorder %s163, %s179
    %p181 = scmp.eq.s32.totalorder %s17, 0
    %p182 = por %p180, %p181
    %p183 = scmp.le.s32.totalorder 1, %s11
    %p184 = scmp.lt.s32.totalorder %s11, 3
    %p185 = pnand %p183, %p184
    %p186 = pneg %p185
    // Predicated region
    $region9: #{forward.8} parent=5 // pred_check
      _
    $region10: #{forward.8} parent=5 // pred_check_branch
      %188 = sbr.rel (%p185) target = $region12
    $region11: #{forward.8} parent=5 // pred_region
      %s189 = ssub.s32 %s11, 1
      // Predicated region
      $region13: #{forward.8} parent=11 // pred_check
        %p190 = pneg %p98
      $region14: #{forward.8} parent=11 // pred_check_branch
        %192 = sbr.rel (%p190) target = $region16
      $region15: #{forward.8} parent=11 // pred_region
        _
      $region16: #{forward.8} parent=11 // pred_fallthru
        _
      // Predicated region
      $region17: #{forward.8} parent=11 // pred_check
        %p193 = pneg %p119
      $region18: #{forward.8} parent=11 // pred_check_branch
        %195 = sbr.rel (%p193) target = $region20
      $region19: #{forward.8} parent=11 // pred_region
        _
      $region20: #{forward.8} parent=11 // pred_fallthru
        _
    $region12: #{forward.8} parent=5 // pred_fallthru
      _
    %p196 = scmp.lt.s32.totalorder %s11, 2
    // Predicated region
    $region21: #{forward.8} parent=5 // pred_check
      %p197 = pneg %p196
    $region22: #{forward.8} parent=5 // pred_check_branch
      %199 = sbr.rel (%p197) target = $region24
    $region23: #{forward.8} parent=5 // pred_region
      // Predicated region
      $region25: #{forward.8} parent=23 // pred_check
        %p200 = pneg %p45
      $region26: #{forward.8} parent=23 // pred_check_branch
        %202 = sbr.rel (%p200) target = $region28
      $region27: #{forward.8} parent=23 // pred_region
        %s203 = smul.u32 8, %s19
        %p204 = scmp.lt.s32.totalorder %s18, 1
        %s205 = scalar_select %p204, %s18, 1
        %p206 = scmp.lt.s32.totalorder %s203, 7
        %s207 = scalar_select %p206, %s203, 7
        %s208 = smul.addr %s205, 8
        %s209 = sadd.s32 %s207, %s208
        %s210 = smul.addr %s209, 4
        %s211 = scalar_lea.vmem %s0, %s210
        %s212 = smul.u32 8, %s19
      $region28: #{forward.8} parent=23 // pred_fallthru
        _
      // Predicated region
      $region29: #{forward.8} parent=23 // pred_check
        %p213 = pneg %p71
      $region30: #{forward.8} parent=23 // pred_check_branch
        %215 = sbr.rel (%p213) target = $region32
      $region31: #{forward.8} parent=23 // pred_region
        %p216 = scmp.lt.s32.totalorder %s18, 1
        %s217 = scalar_select %p216, %s18, 1
        %s218 = scalar_lea.vmem %s1, %s217
      $region32: #{forward.8} parent=23 // pred_fallthru
        _
      // Predicated region
      $region33: #{forward.8} parent=23 // pred_check
        %p219 = pneg %p141
      $region34: #{forward.8} parent=23 // pred_check_branch
        %221 = sbr.rel (%p219) target = $region36
      $region35: #{forward.8} parent=23 // pred_region
        %s222 = smul.u32 8, %s19
        %p223 = scmp.lt.s32.totalorder %s18, 1
        %s224 = scalar_select %p223, %s18, 1
        %p225 = scmp.lt.s32.totalorder %s222, 7
        %s226 = scalar_select %p225, %s222, 7
        %s227 = smul.addr %s224, 8
        %s228 = sadd.s32 %s226, %s227
        %s229 = smul.addr %s228, 4
        %s230 = scalar_lea.vmem %s4, %s229
        %s231 = smul.u32 8, %s19
      $region36: #{forward.8} parent=23 // pred_fallthru
        _
    $region24: #{forward.8} parent=5 // pred_fallthru
      _
    %p232 = scmp.le.s32.totalorder 1, %s11
    %p233 = scmp.lt.s32.totalorder %s11, 3
    %p234 = pnand %p232, %p233
    %p235 = pneg %p234
    // Predicated region
    $region37: #{forward.8} parent=5 // pred_check
      _
    $region38: #{forward.8} parent=5 // pred_check_branch
      %237 = sbr.rel (%p234) target = $region40
    $region39: #{forward.8} parent=5 // pred_region
      %s238 = ssub.s32 %s11, 1
      %s239 = smul.u32 8, %s21
      %p240 = scmp.lt.s32.totalorder %s20, 1
      %s241 = scalar_select %p240, %s20, 1
      %p242 = scmp.lt.s32.totalorder %s239, 7
      %s243 = scalar_select %p242, %s239, 7
      %s244 = smul.addr %s241, 8
      %s245 = sadd.s32 %s243, %s244
      %s246 = smul.addr %s245, 4
      %s247 = scalar_lea.vmem %s0, %s246
      %p248 = pneg %p51
      %p249 = pneg %p48
      %p250 = scmp.lt.s32.totalorder %s20, 1
      %s251 = scalar_select %p250, %s20, 1
      %s252 = scalar_lea.vmem %s1, %s251
      %p253 = pneg %p77
      %p254 = pneg %p74
      %p255 = pneg %p98
      %p256 = pneg %p95
      %p257 = pneg %p119
      %p258 = pneg %p116
      %s259 = smul.u32 8, %s21
      %p260 = scmp.lt.s32.totalorder %s20, 1
      %s261 = scalar_select %p260, %s20, 1
      %p262 = scmp.lt.s32.totalorder %s259, 7
      %s263 = scalar_select %p262, %s259, 7
      %s264 = smul.addr %s261, 8
      %s265 = sadd.s32 %s263, %s264
      %s266 = smul.addr %s265, 4
      %s267 = scalar_lea.vmem %s4, %s266
      %p268 = pneg %p147
      %p269 = pneg %p144
      %p270 = pneg %p175
      %p271 = pneg %p172
      %s272 = smul.u32 8, %s21
      %p273 = scmp.lt.s32.totalorder %s20, 1
      %s274 = scalar_select %p273, %s20, 1
      %p275 = scmp.lt.s32.totalorder %s272, 7
      %s276 = scalar_select %p275, %s272, 7
      %s277 = smul.addr %s274, 8
      %s278 = sadd.s32 %s276, %s277
      %s279 = smul.addr %s278, 4
      %s280 = scalar_lea.vmem %s5, %s279
      %s281 = smul.u32 8, %s21
      %p282 = scmp.lt.s32.totalorder %s20, 1
      %s283 = scalar_select %p282, %s20, 1
      %p284 = scmp.lt.s32.totalorder %s281, 7
      %s285 = scalar_select %p284, %s281, 7
      %s286 = smul.addr %s283, 8
      %s287 = sadd.s32 %s285, %s286
      %s288 = smul.addr %s287, 4
      %s289 = scalar_lea.vmem %s0, %s288
      %s290 = smul.u32 8, %s21
      %p291 = scmp.lt.s32.totalorder %s20, 1
      %s292 = scalar_select %p291, %s20, 1
      %s293 = scalar_lea.vmem %s1, %s292
      %s294 = smul.u32 8, %s21
      %p295 = scmp.lt.s32.totalorder %s20, 1
      %s296 = scalar_select %p295, %s20, 1
      %p297 = scmp.lt.s32.totalorder %s294, 7
      %s298 = scalar_select %p297, %s294, 7
      %s299 = smul.addr %s296, 8
      %s300 = sadd.s32 %s298, %s299
      %s301 = smul.addr %s300, 4
      %s302 = scalar_lea.vmem %s4, %s301
      %s303 = smul.u32 8, %s21
      %s304 = smul.u32 8, %s21
      %p305 = scmp.lt.s32.totalorder %s20, 1
      %s306 = scalar_select %p305, %s20, 1
      %p307 = scmp.lt.s32.totalorder %s304, 7
      %s308 = scalar_select %p307, %s304, 7
      %s309 = smul.addr %s306, 8
      %s310 = sadd.s32 %s308, %s309
      %s311 = smul.addr %s310, 4
      %s312 = scalar_lea.vmem %s5, %s311
      %s313 = smul.u32 8, %s21
      %v314 = vld [vmem:[%s289] sm:$0xf]
      %v315 = vld [vmem:[%s289 + $0x4] sm:$0xf]
      %v316 = vld [vmem:[%s289 + $0x8] sm:$0xf]
      %v317 = vld [vmem:[%s289 + $0xc] sm:$0xf]
      %v318 = vld [vmem:[%s289 + $0x10] sm:$0xf]
      %v319 = vld [vmem:[%s289 + $0x14] sm:$0xf]
      %v320 = vld [vmem:[%s289 + $0x18] sm:$0xf]
      %v321 = vld [vmem:[%s289 + $0x1c] sm:$0xf]
      %v322 = vld [vmem:[%s293] sm:$0x1]
      %v324 = vpack.i.b16 %v322, %v322
      %v326 = vperm.slane %v324, 0
      %v327 = vunpack.c.l.bf16 %v314
      %v328 = vunpack.c.l.bf16 %v315
      %v329 = vunpack.c.l.bf16 %v316
      %v330 = vunpack.c.l.bf16 %v317
      %v331 = vunpack.c.l.bf16 %v318
      %v332 = vunpack.c.l.bf16 %v319
      %v333 = vunpack.c.l.bf16 %v320
      %v334 = vunpack.c.l.bf16 %v321
      %v335 = vunpack.c.l.bf16 %v326
      %v336 = vmul.f32 %v327, %v335
      %v337 = vmul.f32 %v328, %v335
      %v338 = vmul.f32 %v329, %v335
      %v339 = vmul.f32 %v330, %v335
      %v340 = vmul.f32 %v331, %v335
      %v341 = vmul.f32 %v332, %v335
      %v342 = vmul.f32 %v333, %v335
      %v343 = vmul.f32 %v334, %v335
      %v344 = vpack.c.bf16 %v337, %v336
      %v345 = vpack.c.bf16 %v339, %v338
      %v346 = vpack.c.bf16 %v341, %v340
      %v347 = vpack.c.bf16 %v343, %v342
      %v348 = vld [vmem:[%s2] sm:$0xf]
      %v349 = vld [vmem:[%s2 + $0x4] sm:$0xf]
      %v350 = vld [vmem:[%s2 + $0x8] sm:$0xf]
      %v351 = vld [vmem:[%s2 + $0xc] sm:$0xf]
      %v352 = vld [vmem:[%s2 + $0x10] sm:$0xf]
      %v353 = vld [vmem:[%s2 + $0x14] sm:$0xf]
      %v354 = vld [vmem:[%s2 + $0x18] sm:$0xf]
      %v355 = vld [vmem:[%s2 + $0x1c] sm:$0xf]
      %v356 = vld [vmem:[%s2 + $0x20] sm:$0xf]
      %v357 = vld [vmem:[%s2 + $0x24] sm:$0xf]
      %v358 = vld [vmem:[%s2 + $0x28] sm:$0xf]
      %v359 = vld [vmem:[%s2 + $0x2c] sm:$0xf]
      %v360 = vld [vmem:[%s2 + $0x30] sm:$0xf]
      %v361 = vld [vmem:[%s2 + $0x34] sm:$0xf]
      %v362 = vld [vmem:[%s2 + $0x38] sm:$0xf]
      %v363 = vld [vmem:[%s2 + $0x3c] sm:$0xf]
      %v364 = vld [vmem:[%s3] sm:$0x1]
      %v366 = vperm.slane %v364, 0
      %v384 = vunpack.c.l.b16 %v348
      %v385 = vunpack.c.l.b16 %v349
      %v386 = vunpack.c.l.b16 %v350
      %v387 = vunpack.c.l.b16 %v351
      %v388 = vunpack.c.l.b16 %v352
      %v389 = vunpack.c.l.b16 %v353
      %v390 = vunpack.c.l.b16 %v354
      %v391 = vunpack.c.l.b16 %v355
      %v392 = vunpack.c.l.b16 %v356
      %v393 = vunpack.c.l.b16 %v357
      %v394 = vunpack.c.l.b16 %v358
      %v395 = vunpack.c.l.b16 %v359
      %v396 = vunpack.c.l.b16 %v360
      %v397 = vunpack.c.l.b16 %v361
      %v398 = vunpack.c.l.b16 %v362
      %v399 = vunpack.c.l.b16 %v363
      %v400 = vpack.c.b16 %v385, %v384
      %v401 = vpack.c.b16 %v387, %v386
      %v402 = vpack.c.b16 %v389, %v388
      %v403 = vpack.c.b16 %v391, %v390
      %v404 = vpack.c.b16 %v393, %v392
      %v405 = vpack.c.b16 %v395, %v394
      %v406 = vpack.c.b16 %v397, %v396
      %v407 = vpack.c.b16 %v399, %v398
      %416 = vmatpush.bf16.msra.mxu0 %v407
      %417 = vmatpush.bf16.msra.mxu0 %v406
      %418 = vmatpush.bf16.msra.mxu0 %v405
      %419 = vmatpush.bf16.msra.mxu0 %v404
      %420 = vmatpush.bf16.msra.mxu0 %v403
      %421 = vmatpush.bf16.msra.mxu0 %v402
      %422 = vmatpush.bf16.msra.mxu0 %v401
      %423 = vmatpush.bf16.msra.mxu0 %v400
      %424 = vmatmul.bf16.gmra.mxu0 %v344
      %v425 = vpop.f32.mrf.mxu0
      %v426 = vadd.f32 %v366, %v425
      %v427 = vpop.f32.mrf.mxu0
      %v428 = vadd.f32 %v366, %v427
      %429 = vmatmul.bf16.gmra.mxu0 %v345
      %v430 = vpop.f32.mrf.mxu0
      %v431 = vadd.f32 %v366, %v430
      %v432 = vpop.f32.mrf.mxu0
      %v433 = vadd.f32 %v366, %v432
      %434 = vmatmul.bf16.gmra.mxu0 %v346
      %v435 = vpop.f32.mrf.mxu0
      %v436 = vadd.f32 %v366, %v435
      %v437 = vpop.f32.mrf.mxu0
      %v438 = vadd.f32 %v366, %v437
      %439 = vmatmul.bf16.gmra.mxu0 %v347
      %v440 = vpop.f32.mrf.mxu0
      %v441 = vadd.f32 %v366, %v440
      %v442 = vpop.f32.mrf.mxu0
      %v443 = vadd.f32 %v366, %v442
      %444 = vdwg.mxu0
      %v445 = vld [vmem:[%s302] sm:$0xf]
      %v446 = vld [vmem:[%s302 + $0x4] sm:$0xf]
      %v447 = vld [vmem:[%s302 + $0x8] sm:$0xf]
      %v448 = vld [vmem:[%s302 + $0xc] sm:$0xf]
      %v449 = vld [vmem:[%s302 + $0x10] sm:$0xf]
      %v450 = vld [vmem:[%s302 + $0x14] sm:$0xf]
      %v451 = vld [vmem:[%s302 + $0x18] sm:$0xf]
      %v452 = vld [vmem:[%s302 + $0x1c] sm:$0xf]
      %v453 = vunpack.c.l.bf16 %v445
      %v454 = vunpack.c.l.bf16 %v446
      %v455 = vunpack.c.l.bf16 %v447
      %v456 = vunpack.c.l.bf16 %v448
      %v457 = vunpack.c.l.bf16 %v449
      %v458 = vunpack.c.l.bf16 %v450
      %v459 = vunpack.c.l.bf16 %v451
      %v460 = vunpack.c.l.bf16 %v452
      %v461 = vadd.f32 %v426, %v453
      %v462 = vadd.f32 %v428, %v454
      %v463 = vadd.f32 %v431, %v455
      %v464 = vadd.f32 %v433, %v456
      %v465 = vadd.f32 %v436, %v457
      %v466 = vadd.f32 %v438, %v458
      %v467 = vadd.f32 %v441, %v459
      %v468 = vadd.f32 %v443, %v460
      %v469 = vpack.c.bf16 %v461, %v461
      %v470 = vpack.c.bf16 %v462, %v462
      %v471 = vpack.c.bf16 %v463, %v463
      %v472 = vpack.c.bf16 %v464, %v464
      %v473 = vpack.c.bf16 %v465, %v465
      %v474 = vpack.c.bf16 %v466, %v466
      %v475 = vpack.c.bf16 %v467, %v467
      %v476 = vpack.c.bf16 %v468, %v468
      %477 = vst [vmem:[%s312] sm:$0xf] %v469
      %478 = vst [vmem:[%s312 + $0x4] sm:$0xf] %v470
      %479 = vst [vmem:[%s312 + $0x8] sm:$0xf] %v471
      %480 = vst [vmem:[%s312 + $0xc] sm:$0xf] %v472
      %481 = vst [vmem:[%s312 + $0x10] sm:$0xf] %v473
      %482 = vst [vmem:[%s312 + $0x14] sm:$0xf] %v474
      %483 = vst [vmem:[%s312 + $0x18] sm:$0xf] %v475
      %484 = vst [vmem:[%s312 + $0x1c] sm:$0xf] %v476
      %s485 = smul.u32 8, %s21
      %p486 = scmp.lt.s32.totalorder %s20, 1
      %s487 = scalar_select %p486, %s20, 1
      %p488 = scmp.lt.s32.totalorder %s485, 7
      %s489 = scalar_select %p488, %s485, 7
      %s490 = smul.addr %s487, 8
      %s491 = sadd.s32 %s489, %s490
      %s492 = smul.addr %s491, 4
      %s493 = scalar_lea.vmem %s5, %s492
      // Predicated region
      $region41: #{forward.8} parent=39 // pred_check
        %p494 = pneg %p172
      $region42: #{forward.8} parent=39 // pred_check_branch
        %496 = sbr.rel (%p494) target = $region44
      $region43: #{forward.8} parent=39 // pred_region
        %s497 = smul.u32 8, %s21
      $region44: #{forward.8} parent=39 // pred_fallthru
        _
    $region40: #{forward.8} parent=5 // pred_fallthru
      _
    %p498 = scmp.le.s32.totalorder 2, %s11
    // Predicated region
    $region45: #{forward.8} parent=5 // pred_check
      %p499 = pneg %p498
    $region46: #{forward.8} parent=5 // pred_check_branch
      %501 = sbr.rel (%p499) target = $region48
    $region47: #{forward.8} parent=5 // pred_region
      %s502 = ssub.s32 %s11, 2
      // Predicated region
      $region49: #{forward.8} parent=47 // pred_check
        %p503 = pneg %p178
      $region50: #{forward.8} parent=47 // pred_check_branch
        %505 = sbr.rel (%p503) target = $region52
      $region51: #{forward.8} parent=47 // pred_region
        %s506 = smul.u32 8, %s23
        %p507 = scmp.lt.s32.totalorder %s22, 1
        %s508 = scalar_select %p507, %s22, 1
        %p509 = scmp.lt.s32.totalorder %s506, 7
        %s510 = scalar_select %p509, %s506, 7
        %s511 = smul.addr %s508, 8
        %s512 = sadd.s32 %s510, %s511
        %s513 = smul.addr %s512, 4
        %s514 = scalar_lea.vmem %s5, %s513
      $region52: #{forward.8} parent=47 // pred_fallthru
        _
    $region48: #{forward.8} parent=5 // pred_fallthru
      _
  $region6: #{forward.8} parent=0 // loop_footer
    %s15 = sadd.s32 1, %s11
  $region7: #{forward.8} parent=0 // loop_footer_branch
    %10 = sbr.rel target = $region3
  $region8: #{forward.8} parent=0 // loop_exit
    _

// kernel: forward.5
$region0: #{forward.5}
  #allocation0 [shape = 'u32[]', space=smem, size = 0x4, offset = 0x4, fixed_abs, tag = 'smem constant byte address 0x4 - core index']
  #allocation1 [shape = 'u32[72,128]{1,0:T(1,128)}', space=vmem, size = 0x9000, scoped, tag = 'internal scratch']
  %s0 = inlined_call_operand.vmem [shape: bf16[128,128], index: 0, kind: input, shape index: {}]
  %s1 = inlined_call_operand.vmem [shape: bf16[128,128], index: 1, kind: input, shape index: {}]
  %s2 = inlined_call_operand.vmem [shape: f32[1,128], index: 2, kind: input, shape index: {}]
  %s3 = inlined_call_operand.vmem [shape: bf16[128,128], index: 3, kind: output, shape index: {}]
  %s4 = sld [smem:[#allocation0]]
  $region22: #{forward.5} parent=0
    _
  %s6 = ssub.s32 1, %s4
  %s7 = scalar_select 0, %s6, %s4
  // Predicated region
  $region2: #{forward.5} parent=0 // pred_check
    _
  $region3: #{forward.5} parent=0 // pred_check_branch
    %9 = sbr.rel (0) target = $region5
  $region4: #{forward.5} parent=0 // pred_region
    _
  $region5: #{forward.5} parent=0 // pred_fallthru
    _
  // Predicated region
  $region6: #{forward.5} parent=0 // pred_check
    _
  $region7: #{forward.5} parent=0 // pred_check_branch
    %11 = sbr.rel (0) target = $region9
  $region8: #{forward.5} parent=0 // pred_region
    _
  $region9: #{forward.5} parent=0 // pred_fallthru
    _
  // Predicated region
  $region10: #{forward.5} parent=0 // pred_check
    _
  $region11: #{forward.5} parent=0 // pred_check_branch
    %13 = sbr.rel (0) target = $region13
  $region12: #{forward.5} parent=0 // pred_region
    _
  $region13: #{forward.5} parent=0 // pred_fallthru
    _
  %v14 = vld [vmem:[%s0] sm:$0xf]
  %v15 = vld [vmem:[%s0 + $0x4] sm:$0xf]
  %v16 = vld [vmem:[%s0 + $0x8] sm:$0xf]
  %v17 = vld [vmem:[%s0 + $0xc] sm:$0xf]
  %v18 = vld [vmem:[%s0 + $0x10] sm:$0xf]
  %v19 = vld [vmem:[%s0 + $0x14] sm:$0xf]
  %v20 = vld [vmem:[%s0 + $0x18] sm:$0xf]
  %v21 = vld [vmem:[%s0 + $0x1c] sm:$0xf]
  %v22 = vld [vmem:[%s0 + $0x20] sm:$0xf]
  %v23 = vld [vmem:[%s0 + $0x24] sm:$0xf]
  %v24 = vld [vmem:[%s0 + $0x28] sm:$0xf]
  %v25 = vld [vmem:[%s0 + $0x2c] sm:$0xf]
  %v26 = vld [vmem:[%s0 + $0x30] sm:$0xf]
  %v27 = vld [vmem:[%s0 + $0x34] sm:$0xf]
  %v28 = vld [vmem:[%s0 + $0x38] sm:$0xf]
  %v29 = vld [vmem:[%s0 + $0x3c] sm:$0xf]
  %v30 = vld [vmem:[%s1] sm:$0xf]
  %v31 = vld [vmem:[%s1 + $0x4] sm:$0xf]
  %v32 = vld [vmem:[%s1 + $0x8] sm:$0xf]
  %v33 = vld [vmem:[%s1 + $0xc] sm:$0xf]
  %v34 = vld [vmem:[%s1 + $0x10] sm:$0xf]
  %v35 = vld [vmem:[%s1 + $0x14] sm:$0xf]
  %v36 = vld [vmem:[%s1 + $0x18] sm:$0xf]
  %v37 = vld [vmem:[%s1 + $0x1c] sm:$0xf]
  %v38 = vld [vmem:[%s1 + $0x20] sm:$0xf]
  %v39 = vld [vmem:[%s1 + $0x24] sm:$0xf]
  %v40 = vld [vmem:[%s1 + $0x28] sm:$0xf]
  %v41 = vld [vmem:[%s1 + $0x2c] sm:$0xf]
  %v42 = vld [vmem:[%s1 + $0x30] sm:$0xf]
  %v43 = vld [vmem:[%s1 + $0x34] sm:$0xf]
  %v44 = vld [vmem:[%s1 + $0x38] sm:$0xf]
  %v45 = vld [vmem:[%s1 + $0x3c] sm:$0xf]
  %v46 = vld [vmem:[%s2] sm:$0x1]
  %v48 = vperm.slane %v46, 0
  %v66 = vunpack.c.l.b16 %v14
  %v67 = vunpack.c.l.b16 %v15
  %v68 = vunpack.c.l.b16 %v16
  %v69 = vunpack.c.l.b16 %v17
  %v70 = vunpack.c.l.b16 %v18
  %v71 = vunpack.c.l.b16 %v19
  %v72 = vunpack.c.l.b16 %v20
  %v73 = vunpack.c.l.b16 %v21
  %v74 = vunpack.c.l.b16 %v22
  %v75 = vunpack.c.l.b16 %v23
  %v76 = vunpack.c.l.b16 %v24
  %v77 = vunpack.c.l.b16 %v25
  %v78 = vunpack.c.l.b16 %v26
  %v79 = vunpack.c.l.b16 %v27
  %v80 = vunpack.c.l.b16 %v28
  %v81 = vunpack.c.l.b16 %v29
  %v82 = vpack.c.b16 %v67, %v66
  %v83 = vpack.c.b16 %v69, %v68
  %v84 = vpack.c.b16 %v71, %v70
  %v85 = vpack.c.b16 %v73, %v72
  %v86 = vpack.c.b16 %v75, %v74
  %v87 = vpack.c.b16 %v77, %v76
  %v88 = vpack.c.b16 %v79, %v78
  %v89 = vpack.c.b16 %v81, %v80
  %v114 = vunpack.c.l.b16 %v30
  %v115 = vunpack.c.l.b16 %v31
  %v116 = vunpack.c.l.b16 %v32
  %v117 = vunpack.c.l.b16 %v33
  %v118 = vunpack.c.l.b16 %v34
  %v119 = vunpack.c.l.b16 %v35
  %v120 = vunpack.c.l.b16 %v36
  %v121 = vunpack.c.l.b16 %v37
  %v122 = vunpack.c.l.b16 %v38
  %v123 = vunpack.c.l.b16 %v39
  %v124 = vunpack.c.l.b16 %v40
  %v125 = vunpack.c.l.b16 %v41
  %v126 = vunpack.c.l.b16 %v42
  %v127 = vunpack.c.l.b16 %v43
  %v128 = vunpack.c.l.b16 %v44
  %v129 = vunpack.c.l.b16 %v45
  %v130 = vpack.c.b16 %v115, %v114
  %v131 = vpack.c.b16 %v117, %v116
  %v132 = vpack.c.b16 %v119, %v118
  %v133 = vpack.c.b16 %v121, %v120
  %v134 = vpack.c.b16 %v123, %v122
  %v135 = vpack.c.b16 %v125, %v124
  %v136 = vpack.c.b16 %v127, %v126
  %v137 = vpack.c.b16 %v129, %v128
  %146 = vmatpush.bf16.msra.mxu0 %v137
  %147 = vmatpush.bf16.msra.mxu0 %v136
  %148 = vmatpush.bf16.msra.mxu0 %v135
  %149 = vmatpush.bf16.msra.mxu0 %v134
  %150 = vmatpush.bf16.msra.mxu0 %v133
  %151 = vmatpush.bf16.msra.mxu0 %v132
  %152 = vmatpush.bf16.msra.mxu0 %v131
  %153 = vmatpush.bf16.msra.mxu0 %v130
  %154 = vmatmul.bf16.gmra.mxu0 %v82
  %v155 = vpop.f32.mrf.mxu0
  %v156 = vadd.f32 %v48, %v155
  %v157 = vpop.f32.mrf.mxu0
  %v158 = vadd.f32 %v48, %v157
  %159 = vmatmul.bf16.gmra.mxu0 %v83
  %v160 = vpop.f32.mrf.mxu0
  %v161 = vadd.f32 %v48, %v160
  %v162 = vpop.f32.mrf.mxu0
  %v163 = vadd.f32 %v48, %v162
  %164 = vmatmul.bf16.gmra.mxu0 %v84
  %v165 = vpop.f32.mrf.mxu0
  %v166 = vadd.f32 %v48, %v165
  %v167 = vpop.f32.mrf.mxu0
  %v168 = vadd.f32 %v48, %v167
  %169 = vmatmul.bf16.gmra.mxu0 %v85
  %v170 = vpop.f32.mrf.mxu0
  %v171 = vadd.f32 %v48, %v170
  %v172 = vpop.f32.mrf.mxu0
  %v173 = vadd.f32 %v48, %v172
  %174 = vmatmul.bf16.gmra.mxu0 %v86
  %v175 = vpop.f32.mrf.mxu0
  %v176 = vadd.f32 %v48, %v175
  %v177 = vpop.f32.mrf.mxu0
  %v178 = vadd.f32 %v48, %v177
  %179 = vmatmul.bf16.gmra.mxu0 %v87
  %v180 = vpop.f32.mrf.mxu0
  %v181 = vadd.f32 %v48, %v180
  %v182 = vpop.f32.mrf.mxu0
  %v183 = vadd.f32 %v48, %v182
  %184 = vmatmul.bf16.gmra.mxu0 %v88
  %v185 = vpop.f32.mrf.mxu0
  %v186 = vadd.f32 %v48, %v185
  %v187 = vpop.f32.mrf.mxu0
  %v188 = vadd.f32 %v48, %v187
  %189 = vmatmul.bf16.gmra.mxu0 %v89
  %v190 = vpop.f32.mrf.mxu0
  %v191 = vadd.f32 %v48, %v190
  %v192 = vpop.f32.mrf.mxu0
  %v193 = vadd.f32 %v48, %v192
  %194 = vdwg.mxu0
  %v195 = vxor.u32 %v156, 2147483648
  %v196 = vxor.u32 %v158, 2147483648
  %v197 = vxor.u32 %v161, 2147483648
  %v198 = vxor.u32 %v163, 2147483648
  %v199 = vxor.u32 %v166, 2147483648
  %v200 = vxor.u32 %v168, 2147483648
  %v201 = vxor.u32 %v171, 2147483648
  %v202 = vxor.u32 %v173, 2147483648
  %v203 = vxor.u32 %v176, 2147483648
  %v204 = vxor.u32 %v178, 2147483648
  %v205 = vxor.u32 %v181, 2147483648
  %v206 = vxor.u32 %v183, 2147483648
  %v207 = vxor.u32 %v186, 2147483648
  %v208 = vxor.u32 %v188, 2147483648
  %v209 = vxor.u32 %v191, 2147483648
  %v210 = vxor.u32 %v193, 2147483648
  %v211 = vmul.f32 %v195, 1.442695
  %v212 = vpow.pop %v211
  %v213 = vmul.f32 %v196, 1.442695
  %v214 = vpow.pop %v213
  %v215 = vmul.f32 %v197, 1.442695
  %v216 = vpow.pop %v215
  %v217 = vmul.f32 %v198, 1.442695
  %v218 = vpow.pop %v217
  %v219 = vmul.f32 %v199, 1.442695
  %v220 = vpow.pop %v219
  %v221 = vmul.f32 %v200, 1.442695
  %v222 = vpow.pop %v221
  %v223 = vmul.f32 %v201, 1.442695
  %v224 = vpow.pop %v223
  %v225 = vmul.f32 %v202, 1.442695
  %v226 = vpow.pop %v225
  %v227 = vmul.f32 %v203, 1.442695
  %v228 = vpow.pop %v227
  %v229 = vmul.f32 %v204, 1.442695
  %v230 = vpow.pop %v229
  %v231 = vmul.f32 %v205, 1.442695
  %v232 = vpow.pop %v231
  %v233 = vmul.f32 %v206, 1.442695
  %v234 = vpow.pop %v233
  %v235 = vmul.f32 %v207, 1.442695
  %v236 = vpow.pop %v235
  %v237 = vmul.f32 %v208, 1.442695
  %v238 = vpow.pop %v237
  %v239 = vmul.f32 %v209, 1.442695
  %v240 = vpow.pop %v239
  %v241 = vmul.f32 %v210, 1.442695
  %v242 = vpow.pop %v241
  %v243 = vadd.f32 %v212, 1.0
  %v244 = vadd.f32 %v214, 1.0
  %v245 = vadd.f32 %v216, 1.0
  %v246 = vadd.f32 %v218, 1.0
  %v247 = vadd.f32 %v220, 1.0
  %v248 = vadd.f32 %v222, 1.0
  %v249 = vadd.f32 %v224, 1.0
  %v250 = vadd.f32 %v226, 1.0
  %v251 = vadd.f32 %v228, 1.0
  %v252 = vadd.f32 %v230, 1.0
  %v253 = vadd.f32 %v232, 1.0
  %v254 = vadd.f32 %v234, 1.0
  %v255 = vadd.f32 %v236, 1.0
  %v256 = vadd.f32 %v238, 1.0
  %v257 = vadd.f32 %v240, 1.0
  %v258 = vadd.f32 %v242, 1.0
  %v259 = vrcp.pop %v243
  %v260 = vmul.f32 %v243, %v259
  %v261 = vsub.f32 1.0, %v260
  %v262 = vmul.f32 %v259, %v261
  %v263 = vadd.f32 %v259, %v262
  %vm264 = vweird.f32 %v243
  %vm265 = vweird.f32 %v259
  %vm266 = vmor %vm264, %vm265
  %v267 = vsel %vm266, %v259, %v263
  %v268 = vand.u32 2147483647, %v243
  %vm269 = vcmp.eq.f32.partialorder %v268, 8.507059e+37
  %v270 = vand.u32 %v243, 2147483648
  %v271 = vor.u32 1.1754944e-38, %v270
  %v272 = vsel %vm269, %v271, %v267
  %v273 = vmul.f32 1.0, %v272
  %v274 = vrcp.pop %v244
  %v275 = vmul.f32 %v244, %v274
  %v276 = vsub.f32 1.0, %v275
  %v277 = vmul.f32 %v274, %v276
  %v278 = vadd.f32 %v274, %v277
  %vm279 = vweird.f32 %v244
  %vm280 = vweird.f32 %v274
  %vm281 = vmor %vm279, %vm280
  %v282 = vsel %vm281, %v274, %v278
  %v283 = vand.u32 2147483647, %v244
  %vm284 = vcmp.eq.f32.partialorder %v283, 8.507059e+37
  %v285 = vand.u32 %v244, 2147483648
  %v286 = vor.u32 1.1754944e-38, %v285
  %v287 = vsel %vm284, %v286, %v282
  %v288 = vmul.f32 1.0, %v287
  %v289 = vrcp.pop %v245
  %v290 = vmul.f32 %v245, %v289
  %v291 = vsub.f32 1.0, %v290
  %v292 = vmul.f32 %v289, %v291
  %v293 = vadd.f32 %v289, %v292
  %vm294 = vweird.f32 %v245
  %vm295 = vweird.f32 %v289
  %vm296 = vmor %vm294, %vm295
  %v297 = vsel %vm296, %v289, %v293
  %v298 = vand.u32 2147483647, %v245
  %vm299 = vcmp.eq.f32.partialorder %v298, 8.507059e+37
  %v300 = vand.u32 %v245, 2147483648
  %v301 = vor.u32 1.1754944e-38, %v300
  %v302 = vsel %vm299, %v301, %v297
  %v303 = vmul.f32 1.0, %v302
  %v304 = vrcp.pop %v246
  %v305 = vmul.f32 %v246, %v304
  %v306 = vsub.f32 1.0, %v305
  %v307 = vmul.f32 %v304, %v306
  %v308 = vadd.f32 %v304, %v307
  %vm309 = vweird.f32 %v246
  %vm310 = vweird.f32 %v304
  %vm311 = vmor %vm309, %vm310
  %v312 = vsel %vm311, %v304, %v308
  %v313 = vand.u32 2147483647, %v246
  %vm314 = vcmp.eq.f32.partialorder %v313, 8.507059e+37
  %v315 = vand.u32 %v246, 2147483648
  %v316 = vor.u32 1.1754944e-38, %v315
  %v317 = vsel %vm314, %v316, %v312
  %v318 = vmul.f32 1.0, %v317
  %v319 = vrcp.pop %v247
  %v320 = vmul.f32 %v247, %v319
  %v321 = vsub.f32 1.0, %v320
  %v322 = vmul.f32 %v319, %v321
  %v323 = vadd.f32 %v319, %v322
  %vm324 = vweird.f32 %v247
  %vm325 = vweird.f32 %v319
  %vm326 = vmor %vm324, %vm325
  %v327 = vsel %vm326, %v319, %v323
  %v328 = vand.u32 2147483647, %v247
  %vm329 = vcmp.eq.f32.partialorder %v328, 8.507059e+37
  %v330 = vand.u32 %v247, 2147483648
  %v331 = vor.u32 1.1754944e-38, %v330
  %v332 = vsel %vm329, %v331, %v327
  %v333 = vmul.f32 1.0, %v332
  %v334 = vrcp.pop %v248
  %v335 = vmul.f32 %v248, %v334
  %v336 = vsub.f32 1.0, %v335
  %v337 = vmul.f32 %v334, %v336
  %v338 = vadd.f32 %v334, %v337
  %vm339 = vweird.f32 %v248
  %vm340 = vweird.f32 %v334
  %vm341 = vmor %vm339, %vm340
  %v342 = vsel %vm341, %v334, %v338
  %v343 = vand.u32 2147483647, %v248
  %vm344 = vcmp.eq.f32.partialorder %v343, 8.507059e+37
  %v345 = vand.u32 %v248, 2147483648
  %v346 = vor.u32 1.1754944e-38, %v345
  %v347 = vsel %vm344, %v346, %v342
  %v348 = vmul.f32 1.0, %v347
  %v349 = vrcp.pop %v249
  %v350 = vmul.f32 %v249, %v349
  %v351 = vsub.f32 1.0, %v350
  %v352 = vmul.f32 %v349, %v351
  %v353 = vadd.f32 %v349, %v352
  %vm354 = vweird.f32 %v249
  %vm355 = vweird.f32 %v349
  %vm356 = vmor %vm354, %vm355
  %v357 = vsel %vm356, %v349, %v353
  %v358 = vand.u32 2147483647, %v249
  %vm359 = vcmp.eq.f32.partialorder %v358, 8.507059e+37
  %v360 = vand.u32 %v249, 2147483648
  %v361 = vor.u32 1.1754944e-38, %v360
  %v362 = vsel %vm359, %v361, %v357
  %v363 = vmul.f32 1.0, %v362
  %v364 = vrcp.pop %v250
  %v365 = vmul.f32 %v250, %v364
  %v366 = vsub.f32 1.0, %v365
  %v367 = vmul.f32 %v364, %v366
  %v368 = vadd.f32 %v364, %v367
  %vm369 = vweird.f32 %v250
  %vm370 = vweird.f32 %v364
  %vm371 = vmor %vm369, %vm370
  %v372 = vsel %vm371, %v364, %v368
  %v373 = vand.u32 2147483647, %v250
  %vm374 = vcmp.eq.f32.partialorder %v373, 8.507059e+37
  %v375 = vand.u32 %v250, 2147483648
  %v376 = vor.u32 1.1754944e-38, %v375
  %v377 = vsel %vm374, %v376, %v372
  %v378 = vmul.f32 1.0, %v377
  %v379 = vrcp.pop %v251
  %v380 = vmul.f32 %v251, %v379
  %v381 = vsub.f32 1.0, %v380
  %v382 = vmul.f32 %v379, %v381
  %v383 = vadd.f32 %v379, %v382
  %vm384 = vweird.f32 %v251
  %vm385 = vweird.f32 %v379
  %vm386 = vmor %vm384, %vm385
  %v387 = vsel %vm386, %v379, %v383
  %v388 = vand.u32 2147483647, %v251
  %vm389 = vcmp.eq.f32.partialorder %v388, 8.507059e+37
  %v390 = vand.u32 %v251, 2147483648
  %v391 = vor.u32 1.1754944e-38, %v390
  %v392 = vsel %vm389, %v391, %v387
  %v393 = vmul.f32 1.0, %v392
  %v394 = vrcp.pop %v252
  %v395 = vmul.f32 %v252, %v394
  %v396 = vsub.f32 1.0, %v395
  %v397 = vmul.f32 %v394, %v396
  %v398 = vadd.f32 %v394, %v397
  %vm399 = vweird.f32 %v252
  %vm400 = vweird.f32 %v394
  %vm401 = vmor %vm399, %vm400
  %v402 = vsel %vm401, %v394, %v398
  %v403 = vand.u32 2147483647, %v252
  %vm404 = vcmp.eq.f32.partialorder %v403, 8.507059e+37
  %v405 = vand.u32 %v252, 2147483648
  %v406 = vor.u32 1.1754944e-38, %v405
  %v407 = vsel %vm404, %v406, %v402
  %v408 = vmul.f32 1.0, %v407
  %v409 = vrcp.pop %v253
  %v410 = vmul.f32 %v253, %v409
  %v411 = vsub.f32 1.0, %v410
  %v412 = vmul.f32 %v409, %v411
  %v413 = vadd.f32 %v409, %v412
  %vm414 = vweird.f32 %v253
  %vm415 = vweird.f32 %v409
  %vm416 = vmor %vm414, %vm415
  %v417 = vsel %vm416, %v409, %v413
  %v418 = vand.u32 2147483647, %v253
  %vm419 = vcmp.eq.f32.partialorder %v418, 8.507059e+37
  %v420 = vand.u32 %v253, 2147483648
  %v421 = vor.u32 1.1754944e-38, %v420
  %v422 = vsel %vm419, %v421, %v417
  %v423 = vmul.f32 1.0, %v422
  %v424 = vrcp.pop %v254
  %v425 = vmul.f32 %v254, %v424
  %v426 = vsub.f32 1.0, %v425
  %v427 = vmul.f32 %v424, %v426
  %v428 = vadd.f32 %v424, %v427
  %vm429 = vweird.f32 %v254
  %vm430 = vweird.f32 %v424
  %vm431 = vmor %vm429, %vm430
  %v432 = vsel %vm431, %v424, %v428
  %v433 = vand.u32 2147483647, %v254
  %vm434 = vcmp.eq.f32.partialorder %v433, 8.507059e+37
  %v435 = vand.u32 %v254, 2147483648
  %v436 = vor.u32 1.1754944e-38, %v435
  %v437 = vsel %vm434, %v436, %v432
  %v438 = vmul.f32 1.0, %v437
  %v439 = vrcp.pop %v255
  %v440 = vmul.f32 %v255, %v439
  %v441 = vsub.f32 1.0, %v440
  %v442 = vmul.f32 %v439, %v441
  %v443 = vadd.f32 %v439, %v442
  %vm444 = vweird.f32 %v255
  %vm445 = vweird.f32 %v439
  %vm446 = vmor %vm444, %vm445
  %v447 = vsel %vm446, %v439, %v443
  %v448 = vand.u32 2147483647, %v255
  %vm449 = vcmp.eq.f32.partialorder %v448, 8.507059e+37
  %v450 = vand.u32 %v255, 2147483648
  %v451 = vor.u32 1.1754944e-38, %v450
  %v452 = vsel %vm449, %v451, %v447
  %v453 = vmul.f32 1.0, %v452
  %v454 = vrcp.pop %v256
  %v455 = vmul.f32 %v256, %v454
  %v456 = vsub.f32 1.0, %v455
  %v457 = vmul.f32 %v454, %v456
  %v458 = vadd.f32 %v454, %v457
  %vm459 = vweird.f32 %v256
  %vm460 = vweird.f32 %v454
  %vm461 = vmor %vm459, %vm460
  %v462 = vsel %vm461, %v454, %v458
  %v463 = vand.u32 2147483647, %v256
  %vm464 = vcmp.eq.f32.partialorder %v463, 8.507059e+37
  %v465 = vand.u32 %v256, 2147483648
  %v466 = vor.u32 1.1754944e-38, %v465
  %v467 = vsel %vm464, %v466, %v462
  %v468 = vmul.f32 1.0, %v467
  %v469 = vrcp.pop %v257
  %v470 = vmul.f32 %v257, %v469
  %v471 = vsub.f32 1.0, %v470
  %v472 = vmul.f32 %v469, %v471
  %v473 = vadd.f32 %v469, %v472
  %vm474 = vweird.f32 %v257
  %vm475 = vweird.f32 %v469
  %vm476 = vmor %vm474, %vm475
  %v477 = vsel %vm476, %v469, %v473
  %v478 = vand.u32 2147483647, %v257
  %vm479 = vcmp.eq.f32.partialorder %v478, 8.507059e+37
  %v480 = vand.u32 %v257, 2147483648
  %v481 = vor.u32 1.1754944e-38, %v480
  %v482 = vsel %vm479, %v481, %v477
  %v483 = vmul.f32 1.0, %v482
  %v484 = vrcp.pop %v258
  %v485 = vmul.f32 %v258, %v484
  %v486 = vsub.f32 1.0, %v485
  %v487 = vmul.f32 %v484, %v486
  %v488 = vadd.f32 %v484, %v487
  %vm489 = vweird.f32 %v258
  %vm490 = vweird.f32 %v484
  %vm491 = vmor %vm489, %vm490
  %v492 = vsel %vm491, %v484, %v488
  %v493 = vand.u32 2147483647, %v258
  %vm494 = vcmp.eq.f32.partialorder %v493, 8.507059e+37
  %v495 = vand.u32 %v258, 2147483648
  %v496 = vor.u32 1.1754944e-38, %v495
  %v497 = vsel %vm494, %v496, %v492
  %v498 = vmul.f32 1.0, %v497
  %v499 = vmul.f32 %v156, %v273
  %v500 = vmul.f32 %v158, %v288
  %v501 = vmul.f32 %v161, %v303
  %v502 = vmul.f32 %v163, %v318
  %v503 = vmul.f32 %v166, %v333
  %v504 = vmul.f32 %v168, %v348
  %v505 = vmul.f32 %v171, %v363
  %v506 = vmul.f32 %v173, %v378
  %v507 = vmul.f32 %v176, %v393
  %v508 = vmul.f32 %v178, %v408
  %v509 = vmul.f32 %v181, %v423
  %v510 = vmul.f32 %v183, %v438
  %v511 = vmul.f32 %v186, %v453
  %v512 = vmul.f32 %v188, %v468
  %v513 = vmul.f32 %v191, %v483
  %v514 = vmul.f32 %v193, %v498
  %v515 = vpack.c.bf16 %v499, %v499
  %v516 = vpack.c.bf16 %v500, %v500
  %v517 = vpack.c.bf16 %v501, %v501
  %v518 = vpack.c.bf16 %v502, %v502
  %v519 = vpack.c.bf16 %v503, %v503
  %v520 = vpack.c.bf16 %v504, %v504
  %v521 = vpack.c.bf16 %v505, %v505
  %v522 = vpack.c.bf16 %v506, %v506
  %v523 = vpack.c.bf16 %v507, %v507
  %v524 = vpack.c.bf16 %v508, %v508
  %v525 = vpack.c.bf16 %v509, %v509
  %v526 = vpack.c.bf16 %v510, %v510
  %v527 = vpack.c.bf16 %v511, %v511
  %v528 = vpack.c.bf16 %v512, %v512
  %v529 = vpack.c.bf16 %v513, %v513
  %v530 = vpack.c.bf16 %v514, %v514
  %531 = vst [vmem:[%s3] sm:$0xf] %v515
  %532 = vst [vmem:[%s3 + $0x4] sm:$0xf] %v516
  %533 = vst [vmem:[%s3 + $0x8] sm:$0xf] %v517
  %534 = vst [vmem:[%s3 + $0xc] sm:$0xf] %v518
  %535 = vst [vmem:[%s3 + $0x10] sm:$0xf] %v519
  %536 = vst [vmem:[%s3 + $0x14] sm:$0xf] %v520
  %537 = vst [vmem:[%s3 + $0x18] sm:$0xf] %v521
  %538 = vst [vmem:[%s3 + $0x1c] sm:$0xf] %v522
  %539 = vst [vmem:[%s3 + $0x20] sm:$0xf] %v523
  %540 = vst [vmem:[%s3 + $0x24] sm:$0xf] %v524
  %541 = vst [vmem:[%s3 + $0x28] sm:$0xf] %v525
  %542 = vst [vmem:[%s3 + $0x2c] sm:$0xf] %v526
  %543 = vst [vmem:[%s3 + $0x30] sm:$0xf] %v527
  %544 = vst [vmem:[%s3 + $0x34] sm:$0xf] %v528
  %545 = vst [vmem:[%s3 + $0x38] sm:$0xf] %v529
  %546 = vst [vmem:[%s3 + $0x3c] sm:$0xf] %v530
  // Predicated region
  $region14: #{forward.5} parent=0 // pred_check
    _
  $region15: #{forward.5} parent=0 // pred_check_branch
    %548 = sbr.rel (0) target = $region17
  $region16: #{forward.5} parent=0 // pred_region
    _
  $region17: #{forward.5} parent=0 // pred_fallthru
    _
  // Predicated region
  $region18: #{forward.5} parent=0 // pred_check
    _
  $region19: #{forward.5} parent=0 // pred_check_branch
    %550 = sbr.rel (0) target = $region21
  $region20: #{forward.5} parent=0 // pred_region
    _
  $region21: #{forward.5} parent=0 // pred_fallthru
    _

// kernel: forward.9
$region0: #{forward.9}
  #allocation0 [shape = 'u32[]', space=smem, size = 0x4, offset = 0x4, fixed_abs, tag = 'smem constant byte address 0x4 - core index']
  #allocation1 [shape = 'u32[72,128]{1,0:T(1,128)}', space=vmem, size = 0x9000, scoped, tag = 'internal scratch']
  #allocation2 [shape = 'f32[8,128]{1,0:T(8,128)}', space=vmem, size = 0x1000, scoped, tag = 'scratch operand']
  %s0 = inlined_call_operand.vmem [shape: bf16[2,64,128], index: 0, kind: input, shape index: {}]
  %s1 = inlined_call_operand.vmem [shape: bf16[128,128], index: 1, kind: input, shape index: {}]
  %s2 = inlined_call_operand.vmem [shape: f32[1,128], index: 2, kind: input, shape index: {}]
  %s3 = inlined_call_operand.vmem [shape: bf16[128,128], index: 3, kind: input, shape index: {}]
  %s4 = inlined_call_operand.vmem [shape: f32[1,128], index: 4, kind: input, shape index: {}]
  %s5 = inlined_call_operand.hbm [shape: f32[2,1,128], index: 5, kind: output, shape index: {}]
  %s6 = sld [smem:[#allocation0]]
  $region61: #{forward.9} parent=0
    _
  %s8 = ssub.s32 1, %s6
  %s9 = scalar_select 0, %s8, %s6
  $region1: #{forward.9} parent=0
    #allocation3 [shape = 'u8[1024]{0}', space=vmem, size = 0x400, scoped, tag = 'output window, operand 0']
    #allocation4 [shape = 's32[2]{0}', space=sflag, size = 0x8, scoped, tag = 'scoped memory for forward.9']
    %10 = vsyncpa [#allocation4], 0
    %s11 = scalar_lea.sflag [#allocation4], 1
    %12 = vsyncpa %s11, 0
    loop: start=0, step=1, limit=4
    $region2: #{forward.9} parent=1 // loop_pre_header
      _
    $region3: #{forward.9} parent=1 // loop_header
      %s14 = sphi 0, %s18
      %p15 = scmp.ge.s32.totalorder %s14, 4
      %s21 = sphi 0, %s33
      %s22 = sphi 0, %s29
      %s23 = sphi 0, %s21
      %s24 = sphi 0, %s22
      %s25 = sphi 0, %s23
      %s26 = sphi 0, %s24
      %s38 = sphi 0, %s40
      %s41 = sphi 0, %s38
      %s42 = sphi 0, %s41
      %s58 = sphi 0, %s42
      %s62 = sphi 0, %s62
      %s64 = sphi 0, %s62
      %s65 = sphi 0, %s64
      %s79 = sphi 0, %s65
      %s83 = sphi 0, %s83
      %s85 = sphi 0, %s83
      %s86 = sphi 0, %s85
      %s100 = sphi 0, %s86
      %s104 = sphi 0, %s104
      %s106 = sphi 0, %s104
      %s107 = sphi 0, %s106
      %s121 = sphi 0, %s107
      %s125 = sphi 0, %s125
      %s127 = sphi 0, %s125
      %s128 = sphi 0, %s127
      %s142 = sphi 0, %s128
      %s148 = sphi 0, %s150
      %s151 = sphi 0, %s148
      %s152 = sphi 0, %s151
      %s168 = sphi 0, %s152
    $region4: #{forward.9} parent=1 // loop_header_branch
      %17 = sbr.rel (%p15) target = $region8
    $region5: #{forward.9} parent=1 // loop_body
      %s19 = ssub.s32 %s14, 1
      %s20 = ssub.s32 %s14, 2
      %s27 = sadd.s32 1, %s22
      %p28 = scmp.ge.s32.totalorder %s27, 1
      %s29 = scalar_select %p28, 0, %s27
      %s30 = sadd.s32 1, %s21
      %s31 = scalar_select %p28, %s30, %s21
      %p32 = scmp.ge.s32.totalorder %s31, 2
      %s33 = scalar_select %p32, 0, %s31
      %s34 = ssub.s32 %s21, %s33
      %s35 = ssub.s32 %s22, %s29
      %s36 = sor.u32 %s34, %s35
      %p37 = scmp.eq.s32.totalorder %s36, 0
      %s39 = sadd.s32 %s38, 1
      %s40 = scalar_select %p37, %s38, %s39
      %p43 = pneg %p37
      %p44 = scmp.eq.s32.totalorder %s14, 1
      %p45 = por %p43, %p44
      %p46 = scmp.ne.s32.totalorder %s38, %s41
      %p47 = scmp.eq.s32.totalorder %s14, 0
      %p48 = por %p46, %p47
      %p49 = scmp.ne.s32.totalorder %s38, %s41
      %p50 = scmp.eq.s32.totalorder %s19, 1
      %p51 = por %p49, %p50
      %p52 = scmp.ne.s32.totalorder %s41, %s42
      %p53 = scmp.eq.s32.totalorder %s19, 0
      %p54 = por %p52, %p53
      %p55 = scmp.ne.s32.totalorder %s41, %s42
      %p56 = scmp.eq.s32.totalorder %s20, 1
      %p57 = por %p55, %p56
      %p59 = scmp.ne.s32.totalorder %s42, %s58
      %p60 = scmp.eq.s32.totalorder %s20, 0
      %p61 = por %p59, %p60
      %s63 = sadd.s32 %s62, 1
      %p66 = scmp.eq.s32.totalorder %s14, 1
      %p67 = scmp.ne.s32.totalorder %s62, %s64
      %p68 = scmp.eq.s32.totalorder %s14, 0
      %p69 = por %p67, %p68
      %p70 = scmp.ne.s32.totalorder %s62, %s64
      %p71 = scmp.eq.s32.totalorder %s19, 1
      %p72 = por %p70, %p71
      %p73 = scmp.ne.s32.totalorder %s64, %s65
      %p74 = scmp.eq.s32.totalorder %s19, 0
      %p75 = por %p73, %p74
      %p76 = scmp.ne.s32.totalorder %s64, %s65
      %p77 = scmp.eq.s32.totalorder %s20, 1
      %p78 = por %p76, %p77
      %p80 = scmp.ne.s32.totalorder %s65, %s79
      %p81 = scmp.eq.s32.totalorder %s20, 0
      %p82 = por %p80, %p81
      %s84 = sadd.s32 %s83, 1
      %p87 = scmp.eq.s32.totalorder %s14, 1
      %p88 = scmp.ne.s32.totalorder %s83, %s85
      %p89 = scmp.eq.s32.totalorder %s14, 0
      %p90 = por %p88, %p89
      %p91 = scmp.ne.s32.totalorder %s83, %s85
      %p92 = scmp.eq.s32.totalorder %s19, 1
      %p93 = por %p91, %p92
      %p94 = scmp.ne.s32.totalorder %s85, %s86
      %p95 = scmp.eq.s32.totalorder %s19, 0
      %p96 = por %p94, %p95
      %p97 = scmp.ne.s32.totalorder %s85, %s86
      %p98 = scmp.eq.s32.totalorder %s20, 1
      %p99 = por %p97, %p98
      %p101 = scmp.ne.s32.totalorder %s86, %s100
      %p102 = scmp.eq.s32.totalorder %s20, 0
      %p103 = por %p101, %p102
      %s105 = sadd.s32 %s104, 1
      %p108 = scmp.eq.s32.totalorder %s14, 1
      %p109 = scmp.ne.s32.totalorder %s104, %s106
      %p110 = scmp.eq.s32.totalorder %s14, 0
      %p111 = por %p109, %p110
      %p112 = scmp.ne.s32.totalorder %s104, %s106
      %p113 = scmp.eq.s32.totalorder %s19, 1
      %p114 = por %p112, %p113
      %p115 = scmp.ne.s32.totalorder %s106, %s107
      %p116 = scmp.eq.s32.totalorder %s19, 0
      %p117 = por %p115, %p116
      %p118 = scmp.ne.s32.totalorder %s106, %s107
      %p119 = scmp.eq.s32.totalorder %s20, 1
      %p120 = por %p118, %p119
      %p122 = scmp.ne.s32.totalorder %s107, %s121
      %p123 = scmp.eq.s32.totalorder %s20, 0
      %p124 = por %p122, %p123
      %s126 = sadd.s32 %s125, 1
      %p129 = scmp.eq.s32.totalorder %s14, 1
      %p130 = scmp.ne.s32.totalorder %s125, %s127
      %p131 = scmp.eq.s32.totalorder %s14, 0
      %p132 = por %p130, %p131
      %p133 = scmp.ne.s32.totalorder %s125, %s127
      %p134 = scmp.eq.s32.totalorder %s19, 1
      %p135 = por %p133, %p134
      %p136 = scmp.ne.s32.totalorder %s127, %s128
      %p137 = scmp.eq.s32.totalorder %s19, 0
      %p138 = por %p136, %p137
      %p139 = scmp.ne.s32.totalorder %s127, %s128
      %p140 = scmp.eq.s32.totalorder %s20, 1
      %p141 = por %p139, %p140
      %p143 = scmp.ne.s32.totalorder %s128, %s142
      %p144 = scmp.eq.s32.totalorder %s20, 0
      %p145 = por %p143, %p144
      %s146 = ssub.s32 %s21, %s33
      %p147 = scmp.eq.s32.totalorder %s146, 0
      %s149 = sadd.s32 %s148, 1
      %s150 = scalar_select %p147, %s148, %s149
      %p153 = pneg %p147
      %p154 = scmp.eq.s32.totalorder %s14, 1
      %p155 = por %p153, %p154
      %p156 = scmp.ne.s32.totalorder %s148, %s151
      %p157 = scmp.eq.s32.totalorder %s14, 0
      %p158 = por %p156, %p157
      %p159 = scmp.ne.s32.totalorder %s148, %s151
      %p160 = scmp.eq.s32.totalorder %s19, 1
      %p161 = por %p159, %p160
      %p162 = scmp.ne.s32.totalorder %s151, %s152
      %p163 = scmp.eq.s32.totalorder %s19, 0
      %p164 = por %p162, %p163
      %p165 = scmp.ne.s32.totalorder %s151, %s152
      %p166 = scmp.eq.s32.totalorder %s20, 1
      %p167 = por %p165, %p166
      %p169 = scmp.ne.s32.totalorder %s152, %s168
      %p170 = scmp.eq.s32.totalorder %s20, 0
      %p171 = por %p169, %p170
      %p172 = scmp.le.s32.totalorder 1, %s14
      %p173 = scmp.lt.s32.totalorder %s14, 3
      %p174 = pnand %p172, %p173
      %p175 = pneg %p174
      // Predicated region
      $region9: #{forward.9} parent=5 // pred_check
        _
      $region10: #{forward.9} parent=5 // pred_check_branch
        %177 = sbr.rel (%p174) target = $region12
      $region11: #{forward.9} parent=5 // pred_region
        %s178 = ssub.s32 %s14, 1
        // Predicated region
        $region13: #{forward.9} parent=11 // pred_check
          %p179 = pneg %p75
        $region14: #{forward.9} parent=11 // pred_check_branch
          %181 = sbr.rel (%p179) target = $region16
        $region15: #{forward.9} parent=11 // pred_region
          _
        $region16: #{forward.9} parent=11 // pred_fallthru
          _
        // Predicated region
        $region17: #{forward.9} parent=11 // pred_check
          %p182 = pneg %p96
        $region18: #{forward.9} parent=11 // pred_check_branch
          %184 = sbr.rel (%p182) target = $region20
        $region19: #{forward.9} parent=11 // pred_region
          _
        $region20: #{forward.9} parent=11 // pred_fallthru
          _
        // Predicated region
        $region21: #{forward.9} parent=11 // pred_check
          %p185 = pneg %p117
        $region22: #{forward.9} parent=11 // pred_check_branch
          %187 = sbr.rel (%p185) target = $region24
        $region23: #{forward.9} parent=11 // pred_region
          _
        $region24: #{forward.9} parent=11 // pred_fallthru
          _
        // Predicated region
        $region25: #{forward.9} parent=11 // pred_check
          %p188 = pneg %p138
        $region26: #{forward.9} parent=11 // pred_check_branch
          %190 = sbr.rel (%p188) target = $region28
        $region27: #{forward.9} parent=11 // pred_region
          _
        $region28: #{forward.9} parent=11 // pred_fallthru
          _
      $region12: #{forward.9} parent=5 // pred_fallthru
        _
      %p191 = scmp.lt.s32.totalorder %s14, 2
      // Predicated region
      $region29: #{forward.9} parent=5 // pred_check
        %p192 = pneg %p191
      $region30: #{forward.9} parent=5 // pred_check_branch
        %194 = sbr.rel (%p192) target = $region32
      $region31: #{forward.9} parent=5 // pred_region
        // Predicated region
        $region33: #{forward.9} parent=31 // pred_check
          %p195 = pneg %p48
        $region34: #{forward.9} parent=31 // pred_check_branch
          %197 = sbr.rel (%p195) target = $region36
        $region35: #{forward.9} parent=31 // pred_region
          %s198 = smul.u32 8, %s22
          %p199 = scmp.lt.s32.totalorder %s21, 1
          %s200 = scalar_select %p199, %s21, 1
          %p201 = scmp.lt.s32.totalorder %s198, 7
          %s202 = scalar_select %p201, %s198, 7
          %s203 = smul.addr %s200, 8
          %s204 = sadd.s32 %s202, %s203
          %s205 = smul.addr %s204, 4
          %s206 = scalar_lea.vmem %s0, %s205
          %s207 = smul.u32 8, %s22
        $region36: #{forward.9} parent=31 // pred_fallthru
          _
      $region32: #{forward.9} parent=5 // pred_fallthru
        _
      %p208 = scmp.le.s32.totalorder 1, %s14
      %p209 = scmp.lt.s32.totalorder %s14, 3
      %p210 = pnand %p208, %p209
      %p211 = pneg %p210
      // Predicated region
      $region37: #{forward.9} parent=5 // pred_check
        _
      $region38: #{forward.9} parent=5 // pred_check_branch
        %213 = sbr.rel (%p210) target = $region40
      $region39: #{forward.9} parent=5 // pred_region
        %s214 = ssub.s32 %s14, 1
        %s215 = smul.u32 8, %s24
        %p216 = scmp.lt.s32.totalorder %s23, 1
        %s217 = scalar_select %p216, %s23, 1
        %p218 = scmp.lt.s32.totalorder %s215, 7
        %s219 = scalar_select %p218, %s215, 7
        %s220 = smul.addr %s217, 8
        %s221 = sadd.s32 %s219, %s220
        %s222 = smul.addr %s221, 4
        %s223 = scalar_lea.vmem %s0, %s222
        %p224 = pneg %p54
        %p225 = pneg %p51
        %p226 = pneg %p75
        %p227 = pneg %p72
        %p228 = pneg %p96
        %p229 = pneg %p93
        %p230 = pneg %p117
        %p231 = pneg %p114
        %p232 = pneg %p138
        %p233 = pneg %p135
        %p234 = pneg %p164
        %p235 = pneg %p161
        %s236 = sand.u32 %s151, 1
        %s237 = scalar_lea.sflag [#allocation4], %s236
        %s238 = sand.u32 %s151, 1
        %s239 = scalar_lea.vmem [#allocation3], %s238
        %s240 = smul.u32 8, %s24
        %p241 = scmp.lt.s32.totalorder %s23, 1
        %s242 = scalar_select %p241, %s23, 1
        %p243 = scmp.lt.s32.totalorder %s240, 7
        %s244 = scalar_select %p243, %s240, 7
        %s245 = smul.addr %s242, 8
        %s246 = sadd.s32 %s244, %s245
        %s247 = smul.addr %s246, 4
        %s248 = scalar_lea.vmem %s0, %s247
        %s249 = smul.u32 8, %s24
        %p250 = scmp.eq.s32.totalorder %s24, 0
        // Predicated region
        $region41: #{forward.9} parent=39 // pred_check
          %p251 = pneg %p250
        $region42: #{forward.9} parent=39 // pred_check_branch
          %253 = sbr.rel (%p251) target = $region44
        $region43: #{forward.9} parent=39 // pred_region
          %254 = vst [vmem:[#allocation2] sm:$0xff] 0.0
        $region44: #{forward.9} parent=39 // pred_fallthru
          _
        %v255 = vld [vmem:[%s248] sm:$0xf]
        %v256 = vld [vmem:[%s248 + $0x4] sm:$0xf]
        %v257 = vld [vmem:[%s248 + $0x8] sm:$0xf]
        %v258 = vld [vmem:[%s248 + $0xc] sm:$0xf]
        %v259 = vld [vmem:[%s248 + $0x10] sm:$0xf]
        %v260 = vld [vmem:[%s248 + $0x14] sm:$0xf]
        %v261 = vld [vmem:[%s248 + $0x18] sm:$0xf]
        %v262 = vld [vmem:[%s248 + $0x1c] sm:$0xf]
        %v263 = vld [vmem:[%s1] sm:$0xf]
        %v264 = vld [vmem:[%s1 + $0x4] sm:$0xf]
        %v265 = vld [vmem:[%s1 + $0x8] sm:$0xf]
        %v266 = vld [vmem:[%s1 + $0xc] sm:$0xf]
        %v267 = vld [vmem:[%s1 + $0x10] sm:$0xf]
        %v268 = vld [vmem:[%s1 + $0x14] sm:$0xf]
        %v269 = vld [vmem:[%s1 + $0x18] sm:$0xf]
        %v270 = vld [vmem:[%s1 + $0x1c] sm:$0xf]
        %v271 = vld [vmem:[%s1 + $0x20] sm:$0xf]
        %v272 = vld [vmem:[%s1 + $0x24] sm:$0xf]
        %v273 = vld [vmem:[%s1 + $0x28] sm:$0xf]
        %v274 = vld [vmem:[%s1 + $0x2c] sm:$0xf]
        %v275 = vld [vmem:[%s1 + $0x30] sm:$0xf]
        %v276 = vld [vmem:[%s1 + $0x34] sm:$0xf]
        %v277 = vld [vmem:[%s1 + $0x38] sm:$0xf]
        %v278 = vld [vmem:[%s1 + $0x3c] sm:$0xf]
        %v279 = vld [vmem:[%s2] sm:$0x1]
        %v281 = vperm.slane %v279, 0
        %v291 = vunpack.c.l.b16 %v255
        %v292 = vunpack.c.l.b16 %v256
        %v293 = vunpack.c.l.b16 %v257
        %v294 = vunpack.c.l.b16 %v258
        %v295 = vunpack.c.l.b16 %v259
        %v296 = vunpack.c.l.b16 %v260
        %v297 = vunpack.c.l.b16 %v261
        %v298 = vunpack.c.l.b16 %v262
        %v299 = vpack.c.b16 %v292, %v291
        %v300 = vpack.c.b16 %v294, %v293
        %v301 = vpack.c.b16 %v296, %v295
        %v302 = vpack.c.b16 %v298, %v297
        %v323 = vunpack.c.l.b16 %v263
        %v324 = vunpack.c.l.b16 %v264
        %v325 = vunpack.c.l.b16 %v265
        %v326 = vunpack.c.l.b16 %v266
        %v327 = vunpack.c.l.b16 %v267
        %v328 = vunpack.c.l.b16 %v268
        %v329 = vunpack.c.l.b16 %v269
        %v330 = vunpack.c.l.b16 %v270
        %v331 = vunpack.c.l.b16 %v271
        %v332 = vunpack.c.l.b16 %v272
        %v333 = vunpack.c.l.b16 %v273
        %v334 = vunpack.c.l.b16 %v274
        %v335 = vunpack.c.l.b16 %v275
        %v336 = vunpack.c.l.b16 %v276
        %v337 = vunpack.c.l.b16 %v277
        %v338 = vunpack.c.l.b16 %v278
        %v339 = vpack.c.b16 %v324, %v323
        %v340 = vpack.c.b16 %v326, %v325
        %v341 = vpack.c.b16 %v328, %v327
        %v342 = vpack.c.b16 %v330, %v329
        %v343 = vpack.c.b16 %v332, %v331
        %v344 = vpack.c.b16 %v334, %v333
        %v345 = vpack.c.b16 %v336, %v335
        %v346 = vpack.c.b16 %v338, %v337
        %355 = vmatpush.bf16.msra.mxu0 %v346
        %356 = vmatpush.bf16.msra.mxu0 %v345
        %357 = vmatpush.bf16.msra.mxu0 %v344
        %358 = vmatpush.bf16.msra.mxu0 %v343
        %359 = vmatpush.bf16.msra.mxu0 %v342
        %360 = vmatpush.bf16.msra.mxu0 %v341
        %361 = vmatpush.bf16.msra.mxu0 %v340
        %362 = vmatpush.bf16.msra.mxu0 %v339
        %363 = vmatmul.bf16.gmra.mxu0 %v299
        %v364 = vpop.f32.mrf.mxu0
        %v365 = vadd.f32 %v281, %v364
        %v366 = vpop.f32.mrf.mxu0
        %v367 = vadd.f32 %v281, %v366
        %368 = vmatmul.bf16.gmra.mxu0 %v300
        %v369 = vpop.f32.mrf.mxu0
        %v370 = vadd.f32 %v281, %v369
        %v371 = vpop.f32.mrf.mxu0
        %v372 = vadd.f32 %v281, %v371
        %373 = vmatmul.bf16.gmra.mxu0 %v301
        %v374 = vpop.f32.mrf.mxu0
        %v375 = vadd.f32 %v281, %v374
        %v376 = vpop.f32.mrf.mxu0
        %v377 = vadd.f32 %v281, %v376
        %378 = vmatmul.bf16.gmra.mxu0 %v302
        %v379 = vpop.f32.mrf.mxu0
        %v380 = vadd.f32 %v281, %v379
        %v381 = vpop.f32.mrf.mxu0
        %v382 = vadd.f32 %v281, %v381
        %383 = vdwg.mxu0
        %v384 = vxor.u32 %v365, 2147483648
        %v385 = vxor.u32 %v367, 2147483648
        %v386 = vxor.u32 %v370, 2147483648
        %v387 = vxor.u32 %v372, 2147483648
        %v388 = vxor.u32 %v375, 2147483648
        %v389 = vxor.u32 %v377, 2147483648
        %v390 = vxor.u32 %v380, 2147483648
        %v391 = vxor.u32 %v382, 2147483648
        %v392 = vmul.f32 %v384, 1.442695
        %v393 = vpow.pop %v392
        %v394 = vmul.f32 %v385, 1.442695
        %v395 = vpow.pop %v394
        %v396 = vmul.f32 %v386, 1.442695
        %v397 = vpow.pop %v396
        %v398 = vmul.f32 %v387, 1.442695
        %v399 = vpow.pop %v398
        %v400 = vmul.f32 %v388, 1.442695
        %v401 = vpow.pop %v400
        %v402 = vmul.f32 %v389, 1.442695
        %v403 = vpow.pop %v402
        %v404 = vmul.f32 %v390, 1.442695
        %v405 = vpow.pop %v404
        %v406 = vmul.f32 %v391, 1.442695
        %v407 = vpow.pop %v406
        %v408 = vadd.f32 %v393, 1.0
        %v409 = vadd.f32 %v395, 1.0
        %v410 = vadd.f32 %v397, 1.0
        %v411 = vadd.f32 %v399, 1.0
        %v412 = vadd.f32 %v401, 1.0
        %v413 = vadd.f32 %v403, 1.0
        %v414 = vadd.f32 %v405, 1.0
        %v415 = vadd.f32 %v407, 1.0
        %v416 = vrcp.pop %v408
        %v417 = vmul.f32 %v408, %v416
        %v418 = vsub.f32 1.0, %v417
        %v419 = vmul.f32 %v416, %v418
        %v420 = vadd.f32 %v416, %v419
        %vm421 = vweird.f32 %v408
        %vm422 = vweird.f32 %v416
        %vm423 = vmor %vm421, %vm422
        %v424 = vsel %vm423, %v416, %v420
        %v425 = vand.u32 2147483647, %v408
        %vm426 = vcmp.eq.f32.partialorder %v425, 8.507059e+37
        %v427 = vand.u32 %v408, 2147483648
        %v428 = vor.u32 1.1754944e-38, %v427
        %v429 = vsel %vm426, %v428, %v424
        %v430 = vmul.f32 1.0, %v429
        %v431 = vrcp.pop %v409
        %v432 = vmul.f32 %v409, %v431
        %v433 = vsub.f32 1.0, %v432
        %v434 = vmul.f32 %v431, %v433
        %v435 = vadd.f32 %v431, %v434
        %vm436 = vweird.f32 %v409
        %vm437 = vweird.f32 %v431
        %vm438 = vmor %vm436, %vm437
        %v439 = vsel %vm438, %v431, %v435
        %v440 = vand.u32 2147483647, %v409
        %vm441 = vcmp.eq.f32.partialorder %v440, 8.507059e+37
        %v442 = vand.u32 %v409, 2147483648
        %v443 = vor.u32 1.1754944e-38, %v442
        %v444 = vsel %vm441, %v443, %v439
        %v445 = vmul.f32 1.0, %v444
        %v446 = vrcp.pop %v410
        %v447 = vmul.f32 %v410, %v446
        %v448 = vsub.f32 1.0, %v447
        %v449 = vmul.f32 %v446, %v448
        %v450 = vadd.f32 %v446, %v449
        %vm451 = vweird.f32 %v410
        %vm452 = vweird.f32 %v446
        %vm453 = vmor %vm451, %vm452
        %v454 = vsel %vm453, %v446, %v450
        %v455 = vand.u32 2147483647, %v410
        %vm456 = vcmp.eq.f32.partialorder %v455, 8.507059e+37
        %v457 = vand.u32 %v410, 2147483648
        %v458 = vor.u32 1.1754944e-38, %v457
        %v459 = vsel %vm456, %v458, %v454
        %v460 = vmul.f32 1.0, %v459
        %v461 = vrcp.pop %v411
        %v462 = vmul.f32 %v411, %v461
        %v463 = vsub.f32 1.0, %v462
        %v464 = vmul.f32 %v461, %v463
        %v465 = vadd.f32 %v461, %v464
        %vm466 = vweird.f32 %v411
        %vm467 = vweird.f32 %v461
        %vm468 = vmor %vm466, %vm467
        %v469 = vsel %vm468, %v461, %v465
        %v470 = vand.u32 2147483647, %v411
        %vm471 = vcmp.eq.f32.partialorder %v470, 8.507059e+37
        %v472 = vand.u32 %v411, 2147483648
        %v473 = vor.u32 1.1754944e-38, %v472
        %v474 = vsel %vm471, %v473, %v469
        %v475 = vmul.f32 1.0, %v474
        %v476 = vrcp.pop %v412
        %v477 = vmul.f32 %v412, %v476
        %v478 = vsub.f32 1.0, %v477
        %v479 = vmul.f32 %v476, %v478
        %v480 = vadd.f32 %v476, %v479
        %vm481 = vweird.f32 %v412
        %vm482 = vweird.f32 %v476
        %vm483 = vmor %vm481, %vm482
        %v484 = vsel %vm483, %v476, %v480
        %v485 = vand.u32 2147483647, %v412
        %vm486 = vcmp.eq.f32.partialorder %v485, 8.507059e+37
        %v487 = vand.u32 %v412, 2147483648
        %v488 = vor.u32 1.1754944e-38, %v487
        %v489 = vsel %vm486, %v488, %v484
        %v490 = vmul.f32 1.0, %v489
        %v491 = vrcp.pop %v413
        %v492 = vmul.f32 %v413, %v491
        %v493 = vsub.f32 1.0, %v492
        %v494 = vmul.f32 %v491, %v493
        %v495 = vadd.f32 %v491, %v494
        %vm496 = vweird.f32 %v413
        %vm497 = vweird.f32 %v491
        %vm498 = vmor %vm496, %vm497
        %v499 = vsel %vm498, %v491, %v495
        %v500 = vand.u32 2147483647, %v413
        %vm501 = vcmp.eq.f32.partialorder %v500, 8.507059e+37
        %v502 = vand.u32 %v413, 2147483648
        %v503 = vor.u32 1.1754944e-38, %v502
        %v504 = vsel %vm501, %v503, %v499
        %v505 = vmul.f32 1.0, %v504
        %v506 = vrcp.pop %v414
        %v507 = vmul.f32 %v414, %v506
        %v508 = vsub.f32 1.0, %v507
        %v509 = vmul.f32 %v506, %v508
        %v510 = vadd.f32 %v506, %v509
        %vm511 = vweird.f32 %v414
        %vm512 = vweird.f32 %v506
        %vm513 = vmor %vm511, %vm512
        %v514 = vsel %vm513, %v506, %v510
        %v515 = vand.u32 2147483647, %v414
        %vm516 = vcmp.eq.f32.partialorder %v515, 8.507059e+37
        %v517 = vand.u32 %v414, 2147483648
        %v518 = vor.u32 1.1754944e-38, %v517
        %v519 = vsel %vm516, %v518, %v514
        %v520 = vmul.f32 1.0, %v519
        %v521 = vrcp.pop %v415
        %v522 = vmul.f32 %v415, %v521
        %v523 = vsub.f32 1.0, %v522
        %v524 = vmul.f32 %v521, %v523
        %v525 = vadd.f32 %v521, %v524
        %vm526 = vweird.f32 %v415
        %vm527 = vweird.f32 %v521
        %vm528 = vmor %vm526, %vm527
        %v529 = vsel %vm528, %v521, %v525
        %v530 = vand.u32 2147483647, %v415
        %vm531 = vcmp.eq.f32.partialorder %v530, 8.507059e+37
        %v532 = vand.u32 %v415, 2147483648
        %v533 = vor.u32 1.1754944e-38, %v532
        %v534 = vsel %vm531, %v533, %v529
        %v535 = vmul.f32 1.0, %v534
        %v536 = vmul.f32 %v365, %v430
        %v537 = vmul.f32 %v367, %v445
        %v538 = vmul.f32 %v370, %v460
        %v539 = vmul.f32 %v372, %v475
        %v540 = vmul.f32 %v375, %v490
        %v541 = vmul.f32 %v377, %v505
        %v542 = vmul.f32 %v380, %v520
        %v543 = vmul.f32 %v382, %v535
        %v544 = vld [vmem:[#allocation2] sm:$0xff]
        %v545 = vadd.f32 %v536, %v537
        %v546 = vadd.f32 %v545, %v538
        %v547 = vadd.f32 %v546, %v539
        %v548 = vadd.f32 %v547, %v540
        %v549 = vadd.f32 %v548, %v541
        %v550 = vadd.f32 %v549, %v542
        %v551 = vadd.f32 %v550, %v543
        %v552 = vadd.f32 %v544, %v551
        %553 = vst [vmem:[#allocation2] sm:$0xff] %v552
        // Predicated region
        $region45: #{forward.9} parent=39 // pred_check
          %p554 = pneg %p250
        $region46: #{forward.9} parent=39 // pred_check_branch
          %556 = sbr.rel (%p554) target = $region48
        $region47: #{forward.9} parent=39 // pred_region
          %v557 = vld [vmem:[#allocation2] sm:$0xff]
          %v558 = vrot.slane %v557, 4
          %v559 = vadd.f32 %v557, %v558
          %v560 = vrot.slane %v559, 2
          %v561 = vadd.f32 %v559, %v560
          %v562 = vrot.slane %v561, 1
          %v563 = vadd.f32 %v561, %v562
          %v564 = vmul.f32 %v563, 0.015625
          %v565 = vpack.c.bf16 %v564, %v564
          %v566 = vld [vmem:[%s3] sm:$0xf]
          %v567 = vld [vmem:[%s3 + $0x4] sm:$0xf]
          %v568 = vld [vmem:[%s3 + $0x8] sm:$0xf]
          %v569 = vld [vmem:[%s3 + $0xc] sm:$0xf]
          %v570 = vld [vmem:[%s3 + $0x10] sm:$0xf]
          %v571 = vld [vmem:[%s3 + $0x14] sm:$0xf]
          %v572 = vld [vmem:[%s3 + $0x18] sm:$0xf]
          %v573 = vld [vmem:[%s3 + $0x1c] sm:$0xf]
          %v574 = vld [vmem:[%s3 + $0x20] sm:$0xf]
          %v575 = vld [vmem:[%s3 + $0x24] sm:$0xf]
          %v576 = vld [vmem:[%s3 + $0x28] sm:$0xf]
          %v577 = vld [vmem:[%s3 + $0x2c] sm:$0xf]
          %v578 = vld [vmem:[%s3 + $0x30] sm:$0xf]
          %v579 = vld [vmem:[%s3 + $0x34] sm:$0xf]
          %v580 = vld [vmem:[%s3 + $0x38] sm:$0xf]
          %v581 = vld [vmem:[%s3 + $0x3c] sm:$0xf]
          %v582 = vld [vmem:[%s4] sm:$0x1]
          %v599 = vunpack.c.l.b16 %v566
          %v600 = vunpack.c.l.b16 %v567
          %v601 = vunpack.c.l.b16 %v568
          %v602 = vunpack.c.l.b16 %v569
          %v603 = vunpack.c.l.b16 %v570
          %v604 = vunpack.c.l.b16 %v571
          %v605 = vunpack.c.l.b16 %v572
          %v606 = vunpack.c.l.b16 %v573
          %v607 = vunpack.c.l.b16 %v574
          %v608 = vunpack.c.l.b16 %v575
          %v609 = vunpack.c.l.b16 %v576
          %v610 = vunpack.c.l.b16 %v577
          %v611 = vunpack.c.l.b16 %v578
          %v612 = vunpack.c.l.b16 %v579
          %v613 = vunpack.c.l.b16 %v580
          %v614 = vunpack.c.l.b16 %v581
          %v615 = vpack.c.b16 %v600, %v599
          %v616 = vpack.c.b16 %v602, %v601
          %v617 = vpack.c.b16 %v604, %v603
          %v618 = vpack.c.b16 %v606, %v605
          %v619 = vpack.c.b16 %v608, %v607
          %v620 = vpack.c.b16 %v610, %v609
          %v621 = vpack.c.b16 %v612, %v611
          %v622 = vpack.c.b16 %v614, %v613
          %631 = vmatpush.bf16.msra.mxu0 %v622
          %632 = vmatpush.bf16.msra.mxu0 %v621
          %633 = vmatpush.bf16.msra.mxu0 %v620
          %634 = vmatpush.bf16.msra.mxu0 %v619
          %635 = vmatpush.bf16.msra.mxu0 %v618
          %636 = vmatpush.bf16.msra.mxu0 %v617
          %637 = vmatpush.bf16.msra.mxu0 %v616
          %638 = vmatpush.bf16.msra.mxu0 %v615
          %639 = vmatmul.bf16.gmra.mxu0 %v565
          %v640 = vpop.f32.mrf.mxu0
          %v641 = vadd.f32 %v582, %v640
          %v642 = vpop.f32.mrf.mxu0
          %643 = vdwg.mxu0
          %644 = vst [vmem:[%s239] sm:$0x1] %v641
        $region48: #{forward.9} parent=39 // pred_fallthru
          _
        %s645 = sand.u32 %s151, 1
        %s646 = scalar_lea.sflag [#allocation4], %s645
        %s647 = sand.u32 %s151, 1
        %s648 = scalar_lea.vmem [#allocation3], %s647
        // Predicated region
        $region49: #{forward.9} parent=39 // pred_check
          %p649 = pneg %p161
        $region50: #{forward.9} parent=39 // pred_check_branch
          %651 = sbr.rel (%p649) target = $region52
        $region51: #{forward.9} parent=39 // pred_region
          %653 = vsyncadd %s646, 0
          %s654 = scalar_lea.hbm %s5, %s23
          %s656 = sshll.u32 %s648, 4
          %s657 = int_to_ptr.vmem [resolvable:$true] %s656
          %s658 = sshll.u32 %s654, 4
          %s659 = int_to_ptr.hbm [resolvable:$true] %s658
          %661 = dma.vmem_to_hbm [thread:$0]  %s657, 16, %s659, %s646
        $region52: #{forward.9} parent=39 // pred_fallthru
          _
      $region40: #{forward.9} parent=5 // pred_fallthru
        _
      %p662 = scmp.le.s32.totalorder 2, %s14
      // Predicated region
      $region53: #{forward.9} parent=5 // pred_check
        %p663 = pneg %p662
      $region54: #{forward.9} parent=5 // pred_check_branch
        %665 = sbr.rel (%p663) target = $region56
      $region55: #{forward.9} parent=5 // pred_region
        %s666 = ssub.s32 %s14, 2
        // Predicated region
        $region57: #{forward.9} parent=55 // pred_check
          %p667 = pneg %p167
        $region58: #{forward.9} parent=55 // pred_check_branch
          %669 = sbr.rel (%p667) target = $region60
        $region59: #{forward.9} parent=55 // pred_region
          %s670 = sand.u32 %s152, 1
          %s671 = scalar_lea.sflag [#allocation4], %s670
          %s672 = sand.u32 %s152, 1
          %s673 = scalar_lea.vmem [#allocation3], %s672
          %675 = dma.done %s671, 16
        $region60: #{forward.9} parent=55 // pred_fallthru
          _
      $region56: #{forward.9} parent=5 // pred_fallthru
        _
    $region6: #{forward.9} parent=1 // loop_footer
      %s18 = sadd.s32 1, %s14
    $region7: #{forward.9} parent=1 // loop_footer_branch
      %13 = sbr.rel target = $region3
    $region8: #{forward.9} parent=1 // loop_exit
      _
    %676 = vsyncpa [#allocation4], 1
    %s677 = scalar_lea.sflag [#allocation4], 1
    %678 = vsyncpa %s677, 1

// kernel: forward.7
$region0: #{forward.7}
  #allocation0 [shape = 'u32[]', space=smem, size = 0x4, offset = 0x4, fixed_abs, tag = 'smem constant byte address 0x4 - core index']
  #allocation1 [shape = 'u32[72,128]{1,0:T(1,128)}', space=vmem, size = 0x9000, scoped, tag = 'internal scratch']
  #allocation2 [shape = 'bf16[10,10,128]{2,1,0:T(8,128)(2,1)}', space=vmem, size = 0xa000, scoped, tag = 'scratch operand']
  %s0 = inlined_call_operand.vmem [shape: bf16[2,8,8,128], index: 0, kind: input, shape index: {}]
  %s1 = inlined_call_operand.vmem [shape: bf16[9,1,1,128], index: 1, kind: input, shape index: {}]
  %s2 = inlined_call_operand.vmem [shape: f32[1,1,128], index: 2, kind: input, shape index: {}]
  %s3 = inlined_call_operand.vmem [shape: bf16[128,128], index: 3, kind: input, shape index: {}]
  %s4 = inlined_call_operand.vmem [shape: f32[1,128], index: 4, kind: input, shape index: {}]
  %s5 = inlined_call_operand.vmem [shape: bf16[128,128], index: 5, kind: input, shape index: {}]
  %s6 = inlined_call_operand.vmem [shape: f32[1,128], index: 6, kind: input, shape index: {}]
  %s7 = inlined_call_operand.vmem [shape: bf16[2,8,8,128], index: 7, kind: output, shape index: {0}]
  %s8 = inlined_call_operand.vmem [shape: bf16[2,1,128], index: 8, kind: output, shape index: {1}]
  %9 = xla_tuple %s7, %s8
  %s10 = sld [smem:[#allocation0]]
  $region69: #{forward.7} parent=0
    _
  %s12 = ssub.s32 1, %s10
  %s13 = scalar_select 0, %s12, %s10
  loop: start=0, step=1, limit=4
  $region2: #{forward.7} parent=0 // loop_pre_header
    _
  $region3: #{forward.7} parent=0 // loop_header
    %s15 = sphi 0, %s19
    %p16 = scmp.ge.s32.totalorder %s15, 4
    %s25 = sphi 0, %s27
    %s28 = sphi 0, %s25
    %s29 = sphi 0, %s28
    %s45 = sphi 0, %s29
    %s49 = sphi 0, %s49
    %s51 = sphi 0, %s49
    %s52 = sphi 0, %s51
    %s66 = sphi 0, %s52
    %s70 = sphi 0, %s70
    %s72 = sphi 0, %s70
    %s73 = sphi 0, %s72
    %s87 = sphi 0, %s73
    %s91 = sphi 0, %s91
    %s93 = sphi 0, %s91
    %s94 = sphi 0, %s93
    %s108 = sphi 0, %s94
    %s112 = sphi 0, %s112
    %s114 = sphi 0, %s112
    %s115 = sphi 0, %s114
    %s129 = sphi 0, %s115
    %s133 = sphi 0, %s133
    %s135 = sphi 0, %s133
    %s136 = sphi 0, %s135
    %s150 = sphi 0, %s136
    %s154 = sphi 0, %s154
    %s156 = sphi 0, %s154
    %s157 = sphi 0, %s156
    %s171 = sphi 0, %s157
    %s177 = sphi 0, %s179
    %s180 = sphi 0, %s177
    %s181 = sphi 0, %s180
    %s197 = sphi 0, %s181
    %s203 = sphi 0, %s205
    %s206 = sphi 0, %s203
    %s207 = sphi 0, %s206
    %s223 = sphi 0, %s207
  $region4: #{forward.7} parent=0 // loop_header_branch
    %18 = sbr.rel (%p16) target = $region8
  $region5: #{forward.7} parent=0 // loop_body
    %s20 = ssub.s32 %s15, 1
    %s21 = ssub.s32 %s15, 2
    %s22 = sadd.s32 %s15, 1
    %s23 = ssub.s32 %s15, %s22
    %p24 = scmp.eq.s32.totalorder %s23, 0
    %s26 = sadd.s32 %s25, 1
    %s27 = scalar_select %p24, %s25, %s26
    %p30 = pneg %p24
    %p31 = scmp.eq.s32.totalorder %s15, 1
    %p32 = por %p30, %p31
    %p33 = scmp.ne.s32.totalorder %s25, %s28
    %p34 = scmp.eq.s32.totalorder %s15, 0
    %p35 = por %p33, %p34
    %p36 = scmp.ne.s32.totalorder %s25, %s28
    %p37 = scmp.eq.s32.totalorder %s20, 1
    %p38 = por %p36, %p37
    %p39 = scmp.ne.s32.totalorder %s28, %s29
    %p40 = scmp.eq.s32.totalorder %s20, 0
    %p41 = por %p39, %p40
    %p42 = scmp.ne.s32.totalorder %s28, %s29
    %p43 = scmp.eq.s32.totalorder %s21, 1
    %p44 = por %p42, %p43
    %p46 = scmp.ne.s32.totalorder %s29, %s45
    %p47 = scmp.eq.s32.totalorder %s21, 0
    %p48 = por %p46, %p47
    %s50 = sadd.s32 %s49, 1
    %p53 = scmp.eq.s32.totalorder %s15, 1
    %p54 = scmp.ne.s32.totalorder %s49, %s51
    %p55 = scmp.eq.s32.totalorder %s15, 0
    %p56 = por %p54, %p55
    %p57 = scmp.ne.s32.totalorder %s49, %s51
    %p58 = scmp.eq.s32.totalorder %s20, 1
    %p59 = por %p57, %p58
    %p60 = scmp.ne.s32.totalorder %s51, %s52
    %p61 = scmp.eq.s32.totalorder %s20, 0
    %p62 = por %p60, %p61
    %p63 = scmp.ne.s32.totalorder %s51, %s52
    %p64 = scmp.eq.s32.totalorder %s21, 1
    %p65 = por %p63, %p64
    %p67 = scmp.ne.s32.totalorder %s52, %s66
    %p68 = scmp.eq.s32.totalorder %s21, 0
    %p69 = por %p67, %p68
    %s71 = sadd.s32 %s70, 1
    %p74 = scmp.eq.s32.totalorder %s15, 1
    %p75 = scmp.ne.s32.totalorder %s70, %s72
    %p76 = scmp.eq.s32.totalorder %s15, 0
    %p77 = por %p75, %p76
    %p78 = scmp.ne.s32.totalorder %s70, %s72
    %p79 = scmp.eq.s32.totalorder %s20, 1
    %p80 = por %p78, %p79
    %p81 = scmp.ne.s32.totalorder %s72, %s73
    %p82 = scmp.eq.s32.totalorder %s20, 0
    %p83 = por %p81, %p82
    %p84 = scmp.ne.s32.totalorder %s72, %s73
    %p85 = scmp.eq.s32.totalorder %s21, 1
    %p86 = por %p84, %p85
    %p88 = scmp.ne.s32.totalorder %s73, %s87
    %p89 = scmp.eq.s32.totalorder %s21, 0
    %p90 = por %p88, %p89
    %s92 = sadd.s32 %s91, 1
    %p95 = scmp.eq.s32.totalorder %s15, 1
    %p96 = scmp.ne.s32.totalorder %s91, %s93
    %p97 = scmp.eq.s32.totalorder %s15, 0
    %p98 = por %p96, %p97
    %p99 = scmp.ne.s32.totalorder %s91, %s93
    %p100 = scmp.eq.s32.totalorder %s20, 1
    %p101 = por %p99, %p100
    %p102 = scmp.ne.s32.totalorder %s93, %s94
    %p103 = scmp.eq.s32.totalorder %s20, 0
    %p104 = por %p102, %p103
    %p105 = scmp.ne.s32.totalorder %s93, %s94
    %p106 = scmp.eq.s32.totalorder %s21, 1
    %p107 = por %p105, %p106
    %p109 = scmp.ne.s32.totalorder %s94, %s108
    %p110 = scmp.eq.s32.totalorder %s21, 0
    %p111 = por %p109, %p110
    %s113 = sadd.s32 %s112, 1
    %p116 = scmp.eq.s32.totalorder %s15, 1
    %p117 = scmp.ne.s32.totalorder %s112, %s114
    %p118 = scmp.eq.s32.totalorder %s15, 0
    %p119 = por %p117, %p118
    %p120 = scmp.ne.s32.totalorder %s112, %s114
    %p121 = scmp.eq.s32.totalorder %s20, 1
    %p122 = por %p120, %p121
    %p123 = scmp.ne.s32.totalorder %s114, %s115
    %p124 = scmp.eq.s32.totalorder %s20, 0
    %p125 = por %p123, %p124
    %p126 = scmp.ne.s32.totalorder %s114, %s115
    %p127 = scmp.eq.s32.totalorder %s21, 1
    %p128 = por %p126, %p127
    %p130 = scmp.ne.s32.totalorder %s115, %s129
    %p131 = scmp.eq.s32.totalorder %s21, 0
    %p132 = por %p130, %p131
    %s134 = sadd.s32 %s133, 1
    %p137 = scmp.eq.s32.totalorder %s15, 1
    %p138 = scmp.ne.s32.totalorder %s133, %s135
    %p139 = scmp.eq.s32.totalorder %s15, 0
    %p140 = por %p138, %p139
    %p141 = scmp.ne.s32.totalorder %s133, %s135
    %p142 = scmp.eq.s32.totalorder %s20, 1
    %p143 = por %p141, %p142
    %p144 = scmp.ne.s32.totalorder %s135, %s136
    %p145 = scmp.eq.s32.totalorder %s20, 0
    %p146 = por %p144, %p145
    %p147 = scmp.ne.s32.totalorder %s135, %s136
    %p148 = scmp.eq.s32.totalorder %s21, 1
    %p149 = por %p147, %p148
    %p151 = scmp.ne.s32.totalorder %s136, %s150
    %p152 = scmp.eq.s32.totalorder %s21, 0
    %p153 = por %p151, %p152
    %s155 = sadd.s32 %s154, 1
    %p158 = scmp.eq.s32.totalorder %s15, 1
    %p159 = scmp.ne.s32.totalorder %s154, %s156
    %p160 = scmp.eq.s32.totalorder %s15, 0
    %p161 = por %p159, %p160
    %p162 = scmp.ne.s32.totalorder %s154, %s156
    %p163 = scmp.eq.s32.totalorder %s20, 1
    %p164 = por %p162, %p163
    %p165 = scmp.ne.s32.totalorder %s156, %s157
    %p166 = scmp.eq.s32.totalorder %s20, 0
    %p167 = por %p165, %p166
    %p168 = scmp.ne.s32.totalorder %s156, %s157
    %p169 = scmp.eq.s32.totalorder %s21, 1
    %p170 = por %p168, %p169
    %p172 = scmp.ne.s32.totalorder %s157, %s171
    %p173 = scmp.eq.s32.totalorder %s21, 0
    %p174 = por %p172, %p173
    %s175 = ssub.s32 %s15, %s22
    %p176 = scmp.eq.s32.totalorder %s175, 0
    %s178 = sadd.s32 %s177, 1
    %s179 = scalar_select %p176, %s177, %s178
    %p182 = pneg %p176
    %p183 = scmp.eq.s32.totalorder %s15, 1
    %p184 = por %p182, %p183
    %p185 = scmp.ne.s32.totalorder %s177, %s180
    %p186 = scmp.eq.s32.totalorder %s15, 0
    %p187 = por %p185, %p186
    %p188 = scmp.ne.s32.totalorder %s177, %s180
    %p189 = scmp.eq.s32.totalorder %s20, 1
    %p190 = por %p188, %p189
    %p191 = scmp.ne.s32.totalorder %s180, %s181
    %p192 = scmp.eq.s32.totalorder %s20, 0
    %p193 = por %p191, %p192
    %p194 = scmp.ne.s32.totalorder %s180, %s181
    %p195 = scmp.eq.s32.totalorder %s21, 1
    %p196 = por %p194, %p195
    %p198 = scmp.ne.s32.totalorder %s181, %s197
    %p199 = scmp.eq.s32.totalorder %s21, 0
    %p200 = por %p198, %p199
    %s201 = ssub.s32 %s15, %s22
    %p202 = scmp.eq.s32.totalorder %s201, 0
    %s204 = sadd.s32 %s203, 1
    %s205 = scalar_select %p202, %s203, %s204
    %p208 = pneg %p202
    %p209 = scmp.eq.s32.totalorder %s15, 1
    %p210 = por %p208, %p209
    %p211 = scmp.ne.s32.totalorder %s203, %s206
    %p212 = scmp.eq.s32.totalorder %s15, 0
    %p213 = por %p211, %p212
    %p214 = scmp.ne.s32.totalorder %s203, %s206
    %p215 = scmp.eq.s32.totalorder %s20, 1
    %p216 = por %p214, %p215
    %p217 = scmp.ne.s32.totalorder %s206, %s207
    %p218 = scmp.eq.s32.totalorder %s20, 0
    %p219 = por %p217, %p218
    %p220 = scmp.ne.s32.totalorder %s206, %s207
    %p221 = scmp.eq.s32.totalorder %s21, 1
    %p222 = por %p220, %p221
    %p224 = scmp.ne.s32.totalorder %s207, %s223
    %p225 = scmp.eq.s32.totalorder %s21, 0
    %p226 = por %p224, %p225
    %p227 = scmp.le.s32.totalorder 1, %s15
    %p228 = scmp.lt.s32.totalorder %s15, 3
    %p229 = pnand %p227, %p228
    %p230 = pneg %p229
    // Predicated region
    $region9: #{forward.7} parent=5 // pred_check
      _
    $region10: #{forward.7} parent=5 // pred_check_branch
      %232 = sbr.rel (%p229) target = $region12
    $region11: #{forward.7} parent=5 // pred_region
      %s233 = ssub.s32 %s15, 1
      // Predicated region
      $region13: #{forward.7} parent=11 // pred_check
        %p234 = pneg %p62
      $region14: #{forward.7} parent=11 // pred_check_branch
        %236 = sbr.rel (%p234) target = $region16
      $region15: #{forward.7} parent=11 // pred_region
        _
      $region16: #{forward.7} parent=11 // pred_fallthru
        _
      // Predicated region
      $region17: #{forward.7} parent=11 // pred_check
        %p237 = pneg %p83
      $region18: #{forward.7} parent=11 // pred_check_branch
        %239 = sbr.rel (%p237) target = $region20
      $region19: #{forward.7} parent=11 // pred_region
        _
      $region20: #{forward.7} parent=11 // pred_fallthru
        _
      // Predicated region
      $region21: #{forward.7} parent=11 // pred_check
        %p240 = pneg %p104
      $region22: #{forward.7} parent=11 // pred_check_branch
        %242 = sbr.rel (%p240) target = $region24
      $region23: #{forward.7} parent=11 // pred_region
        _
      $region24: #{forward.7} parent=11 // pred_fallthru
        _
      // Predicated region
      $region25: #{forward.7} parent=11 // pred_check
        %p243 = pneg %p125
      $region26: #{forward.7} parent=11 // pred_check_branch
        %245 = sbr.rel (%p243) target = $region28
      $region27: #{forward.7} parent=11 // pred_region
        _
      $region28: #{forward.7} parent=11 // pred_fallthru
        _
      // Predicated region
      $region29: #{forward.7} parent=11 // pred_check
        %p246 = pneg %p146
      $region30: #{forward.7} parent=11 // pred_check_branch
        %248 = sbr.rel (%p246) target = $region32
      $region31: #{forward.7} parent=11 // pred_region
        _
      $region32: #{forward.7} parent=11 // pred_fallthru
        _
      // Predicated region
      $region33: #{forward.7} parent=11 // pred_check
        %p249 = pneg %p167
      $region34: #{forward.7} parent=11 // pred_check_branch
        %251 = sbr.rel (%p249) target = $region36
      $region35: #{forward.7} parent=11 // pred_region
        _
      $region36: #{forward.7} parent=11 // pred_fallthru
        _
    $region12: #{forward.7} parent=5 // pred_fallthru
      _
    %p252 = scmp.lt.s32.totalorder %s15, 2
    // Predicated region
    $region37: #{forward.7} parent=5 // pred_check
      %p253 = pneg %p252
    $region38: #{forward.7} parent=5 // pred_check_branch
      %255 = sbr.rel (%p253) target = $region40
    $region39: #{forward.7} parent=5 // pred_region
      // Predicated region
      $region41: #{forward.7} parent=39 // pred_check
        %p256 = pneg %p35
      $region42: #{forward.7} parent=39 // pred_check_branch
        %258 = sbr.rel (%p256) target = $region44
      $region43: #{forward.7} parent=39 // pred_region
        %p259 = scmp.lt.s32.totalorder %s15, 1
        %s260 = scalar_select %p259, %s15, 1
        %s261 = smul.addr %s260, 8
        %s262 = smul.addr %s261, 4
        %s263 = scalar_lea.vmem %s0, %s262
      $region44: #{forward.7} parent=39 // pred_fallthru
        _
    $region40: #{forward.7} parent=5 // pred_fallthru
      _
    %p264 = scmp.le.s32.totalorder 1, %s15
    %p265 = scmp.lt.s32.totalorder %s15, 3
    %p266 = pnand %p264, %p265
    %p267 = pneg %p266
    // Predicated region
    $region45: #{forward.7} parent=5 // pred_check
      _
    $region46: #{forward.7} parent=5 // pred_check_branch
      %269 = sbr.rel (%p266) target = $region48
    $region47: #{forward.7} parent=5 // pred_region
      %s270 = ssub.s32 %s15, 1
      %p271 = scmp.lt.s32.totalorder %s20, 1
      %s272 = scalar_select %p271, %s20, 1
      %s273 = smul.addr %s272, 8
      %s274 = smul.addr %s273, 4
      %s275 = scalar_lea.vmem %s0, %s274
      %p276 = pneg %p41
      %p277 = pneg %p38
      %p278 = pneg %p62
      %p279 = pneg %p59
      %p280 = pneg %p83
      %p281 = pneg %p80
      %p282 = pneg %p104
      %p283 = pneg %p101
      %p284 = pneg %p125
      %p285 = pneg %p122
      %p286 = pneg %p146
      %p287 = pneg %p143
      %p288 = pneg %p167
      %p289 = pneg %p164
      %p290 = pneg %p193
      %p291 = pneg %p190
      %p292 = scmp.lt.s32.totalorder %s20, 1
      %s293 = scalar_select %p292, %s20, 1
      %s294 = smul.addr %s293, 8
      %s295 = smul.addr %s294, 4
      %s296 = scalar_lea.vmem %s7, %s295
      %p297 = pneg %p219
      %p298 = pneg %p216
      %p299 = scmp.lt.s32.totalorder %s20, 1
      %s300 = scalar_select %p299, %s20, 1
      %s301 = scalar_lea.vmem %s8, %s300
      %p302 = scmp.lt.s32.totalorder %s20, 1
      %s303 = scalar_select %p302, %s20, 1
      %s304 = smul.addr %s303, 8
      %s305 = smul.addr %s304, 4
      %s306 = scalar_lea.vmem %s0, %s305
      %p307 = scmp.lt.s32.totalorder %s20, 1
      %s308 = scalar_select %p307, %s20, 1
      %s309 = smul.addr %s308, 8
      %s310 = smul.addr %s309, 4
      %s311 = scalar_lea.vmem %s7, %s310
      %p312 = scmp.lt.s32.totalorder %s20, 1
      %s313 = scalar_select %p312, %s20, 1
      %s314 = scalar_lea.vmem %s8, %s313
      %v316 = vld [vmem:[%s306] sm:$0xf]
      %v317 = vld [vmem:[%s306 + $0x4] sm:$0xf]
      %v318 = vld [vmem:[%s306 + $0x8] sm:$0xf]
      %v319 = vld [vmem:[%s306 + $0xc] sm:$0xf]
      %v320 = vld [vmem:[%s306 + $0x10] sm:$0xf]
      %v321 = vld [vmem:[%s306 + $0x14] sm:$0xf]
      %v322 = vld [vmem:[%s306 + $0x18] sm:$0xf]
      %v323 = vld [vmem:[%s306 + $0x1c] sm:$0xf]
      %v332 = vunpack.c.l.b16 %v316
      %v333 = vunpack.c.l.b16 %v317
      %v334 = vunpack.c.l.b16 %v318
      %v335 = vunpack.c.l.b16 %v319
      %v336 = vunpack.c.l.b16 %v320
      %v337 = vunpack.c.l.b16 %v321
      %v338 = vunpack.c.l.b16 %v322
      %v339 = vunpack.c.l.b16 %v323
      %v340 = vpack.c.b16 %v332, %v332
      %v341 = vpack.c.b16 %v333, %v333
      %v342 = vpack.c.b16 %v334, %v334
      %v343 = vpack.c.b16 %v335, %v335
      %v344 = vpack.c.b16 %v336, %v336
      %v345 = vpack.c.b16 %v337, %v337
      %v346 = vpack.c.b16 %v338, %v338
      %v347 = vpack.c.b16 %v339, %v339
      %v349 = vshrl.u32 %v340, 16
      %v351 = vrot.slane %v349, 7
      %v352 = vshll.u32 %v340, 16
      %v354 = vor.u32 %v351, %v352
      %v356 = vshrl.u32 %v341, 16
      %v358 = vrot.slane %v356, 7
      %v359 = vshll.u32 %v341, 16
      %v361 = vor.u32 %v358, %v359
      %v363 = vshrl.u32 %v342, 16
      %v365 = vrot.slane %v363, 7
      %v366 = vshll.u32 %v342, 16
      %v368 = vor.u32 %v365, %v366
      %v370 = vshrl.u32 %v343, 16
      %v372 = vrot.slane %v370, 7
      %v373 = vshll.u32 %v343, 16
      %v375 = vor.u32 %v372, %v373
      %v377 = vshrl.u32 %v344, 16
      %v379 = vrot.slane %v377, 7
      %v380 = vshll.u32 %v344, 16
      %v382 = vor.u32 %v379, %v380
      %v384 = vshrl.u32 %v345, 16
      %v386 = vrot.slane %v384, 7
      %v387 = vshll.u32 %v345, 16
      %v389 = vor.u32 %v386, %v387
      %v391 = vshrl.u32 %v346, 16
      %v393 = vrot.slane %v391, 7
      %v394 = vshll.u32 %v346, 16
      %v396 = vor.u32 %v393, %v394
      %v398 = vshrl.u32 %v347, 16
      %v400 = vrot.slane %v398, 7
      %v401 = vshll.u32 %v347, 16
      %v403 = vor.u32 %v400, %v401
      %vm412 = vcmask 1040384
      %vm413 = vsmask.f32 256
      %vm414 = vmand %vm412, %vm413
      %v415 = vsel %vm414, 0, %v354
      %v416 = vsel %vm414, 0, %v361
      %v417 = vsel %vm414, 0, %v368
      %v418 = vsel %vm414, 0, %v375
      %v419 = vsel %vm414, 0, %v382
      %v420 = vsel %vm414, 0, %v389
      %v421 = vsel %vm414, 0, %v396
      %v422 = vsel %vm414, 0, %v403
      %vm423 = vcmask 1044480
      %vm424 = vsmask.f32 4352
      %vm425 = vmand %vm423, %vm424
      %v426 = vsel %vm425, %v415, 0
      %v427 = vsel %vm425, %v416, 0
      %v428 = vsel %vm425, %v417, 0
      %v429 = vsel %vm425, %v418, 0
      %v430 = vsel %vm425, %v419, 0
      %v431 = vsel %vm425, %v420, 0
      %v432 = vsel %vm425, %v421, 0
      %v433 = vsel %vm425, %v422, 0
      %v442 = vunpack.c.l.b16 %v426
      %v443 = vunpack.c.h.b16 %v426
      %v444 = vunpack.c.l.b16 %v427
      %v445 = vunpack.c.h.b16 %v427
      %v446 = vunpack.c.l.b16 %v428
      %v447 = vunpack.c.h.b16 %v428
      %v448 = vunpack.c.l.b16 %v429
      %v449 = vunpack.c.h.b16 %v429
      %v450 = vunpack.c.l.b16 %v430
      %v451 = vunpack.c.h.b16 %v430
      %v452 = vunpack.c.l.b16 %v431
      %v453 = vunpack.c.h.b16 %v431
      %v454 = vunpack.c.l.b16 %v432
      %v455 = vunpack.c.h.b16 %v432
      %v456 = vunpack.c.l.b16 %v433
      %v457 = vunpack.c.h.b16 %v433
      %v458 = vpack.c.b16 %v442, %v442
      %v459 = vpack.c.b16 %v443, %v443
      %v460 = vpack.c.b16 %v444, %v444
      %v461 = vpack.c.b16 %v445, %v445
      %v462 = vpack.c.b16 %v446, %v446
      %v463 = vpack.c.b16 %v447, %v447
      %v464 = vpack.c.b16 %v448, %v448
      %v465 = vpack.c.b16 %v449, %v449
      %v466 = vpack.c.b16 %v450, %v450
      %v467 = vpack.c.b16 %v451, %v451
      %v468 = vpack.c.b16 %v452, %v452
      %v469 = vpack.c.b16 %v453, %v453
      %v470 = vpack.c.b16 %v454, %v454
      %v471 = vpack.c.b16 %v455, %v455
      %v472 = vpack.c.b16 %v456, %v456
      %v473 = vpack.c.b16 %v457, %v457
      %s490 = scalar_lea.vmem [#allocation2], 8
      %491 = vst [vmem:[%s490] sm:$0xf] %v458
      %492 = vst [vmem:[%s490 + $0x4] sm:$0x1] %v459
      %493 = vst [vmem:[%s490 + $0x8] sm:$0xf] %v460
      %494 = vst [vmem:[%s490 + $0xc] sm:$0x1] %v461
      %495 = vst [vmem:[%s490 + $0x10] sm:$0xf] %v462
      %496 = vst [vmem:[%s490 + $0x14] sm:$0x1] %v463
      %497 = vst [vmem:[%s490 + $0x18] sm:$0xf] %v464
      %498 = vst [vmem:[%s490 + $0x1c] sm:$0x1] %v465
      %499 = vst [vmem:[%s490 + $0x20] sm:$0xf] %v466
      %500 = vst [vmem:[%s490 + $0x24] sm:$0x1] %v467
      %501 = vst [vmem:[%s490 + $0x28] sm:$0xf] %v468
      %502 = vst [vmem:[%s490 + $0x2c] sm:$0x1] %v469
      %503 = vst [vmem:[%s490 + $0x30] sm:$0xf] %v470
      %504 = vst [vmem:[%s490 + $0x34] sm:$0x1] %v471
      %505 = vst [vmem:[%s490 + $0x38] sm:$0xf] %v472
      %506 = vst [vmem:[%s490 + $0x3c] sm:$0x1] %v473
      %507 = vst [vmem:[#allocation2] sm:$0xf] 0
      %508 = vst [vmem:[#allocation2 + $0x4] sm:$0x1] 0
      %s509 = scalar_lea.vmem [#allocation2], 72
      %510 = vst [vmem:[%s509] sm:$0xf] 0
      %511 = vst [vmem:[%s509 + $0x4] sm:$0x1] 0
      %v512 = vld [vmem:[#allocation2] sm:$0xf]
      %v513 = vld [vmem:[#allocation2 + $0x8] sm:$0xf]
      %v514 = vld [vmem:[#allocation2 + $0x10] sm:$0xf]
      %v515 = vld [vmem:[#allocation2 + $0x18] sm:$0xf]
      %v516 = vld [vmem:[#allocation2 + $0x20] sm:$0xf]
      %v517 = vld [vmem:[#allocation2 + $0x28] sm:$0xf]
      %v518 = vld [vmem:[#allocation2 + $0x30] sm:$0xf]
      %v519 = vld [vmem:[#allocation2 + $0x38] sm:$0xf]
      %v520 = vld [vmem:[%s1] sm:$0x1]
      %v522 = vpack.i.b16 %v520, %v520
      %v524 = vperm.slane %v522, 0
      %v525 = vunpack.c.l.bf16 %v512
      %v526 = vunpack.c.l.bf16 %v513
      %v527 = vunpack.c.l.bf16 %v514
      %v528 = vunpack.c.l.bf16 %v515
      %v529 = vunpack.c.l.bf16 %v516
      %v530 = vunpack.c.l.bf16 %v517
      %v531 = vunpack.c.l.bf16 %v518
      %v532 = vunpack.c.l.bf16 %v519
      %v533 = vunpack.c.l.bf16 %v524
      %v534 = vmul.f32 %v525, %v533
      %v535 = vmul.f32 %v526, %v533
      %v536 = vmul.f32 %v527, %v533
      %v537 = vmul.f32 %v528, %v533
      %v538 = vmul.f32 %v529, %v533
      %v539 = vmul.f32 %v530, %v533
      %v540 = vmul.f32 %v531, %v533
      %v541 = vmul.f32 %v532, %v533
      %v542 = vpack.c.bf16 %v534, %v534
      %v543 = vpack.c.bf16 %v535, %v535
      %v544 = vpack.c.bf16 %v536, %v536
      %v545 = vpack.c.bf16 %v537, %v537
      %v546 = vpack.c.bf16 %v538, %v538
      %v547 = vpack.c.bf16 %v539, %v539
      %v548 = vpack.c.bf16 %v540, %v540
      %v549 = vpack.c.bf16 %v541, %v541
      %v550 = vunpack.c.l.bf16 %v542
      %v551 = vunpack.c.l.bf16 %v543
      %v552 = vunpack.c.l.bf16 %v544
      %v553 = vunpack.c.l.bf16 %v545
      %v554 = vunpack.c.l.bf16 %v546
      %v555 = vunpack.c.l.bf16 %v547
      %v556 = vunpack.c.l.bf16 %v548
      %v557 = vunpack.c.l.bf16 %v549
      %v558 = vadd.f32 %v550, 0.0
      %v559 = vadd.f32 %v551, 0.0
      %v560 = vadd.f32 %v552, 0.0
      %v561 = vadd.f32 %v553, 0.0
      %v562 = vadd.f32 %v554, 0.0
      %v563 = vadd.f32 %v555, 0.0
      %v564 = vadd.f32 %v556, 0.0
      %v565 = vadd.f32 %v557, 0.0
      %v566 = vld [vmem:[#allocation2 + $0x4] sm:$0x1]
      %v567 = vld [vmem:[#allocation2 + $0xc] sm:$0x1]
      %v568 = vld [vmem:[#allocation2 + $0x14] sm:$0x1]
      %v569 = vld [vmem:[#allocation2 + $0x1c] sm:$0x1]
      %v570 = vld [vmem:[#allocation2 + $0x24] sm:$0x1]
      %v571 = vld [vmem:[#allocation2 + $0x2c] sm:$0x1]
      %v572 = vld [vmem:[#allocation2 + $0x34] sm:$0x1]
      %v573 = vld [vmem:[#allocation2 + $0x3c] sm:$0x1]
      %s574 = scalar_lea.vmem %s1, 1
      %v575 = vld [vmem:[%s574] sm:$0x1]
      %v577 = vpack.i.b16 %v575, %v575
      %v579 = vperm.slane %v577, 0
      %v580 = vunpack.c.l.bf16 %v566
      %v581 = vunpack.c.l.bf16 %v567
      %v582 = vunpack.c.l.bf16 %v568
      %v583 = vunpack.c.l.bf16 %v569
      %v584 = vunpack.c.l.bf16 %v570
      %v585 = vunpack.c.l.bf16 %v571
      %v586 = vunpack.c.l.bf16 %v572
      %v587 = vunpack.c.l.bf16 %v573
      %v588 = vunpack.c.l.bf16 %v579
      %v589 = vmul.f32 %v525, %v588
      %v590 = vmul.f32 %v580, %v588
      %v591 = vmul.f32 %v526, %v588
      %v592 = vmul.f32 %v581, %v588
      %v593 = vmul.f32 %v527, %v588
      %v594 = vmul.f32 %v582, %v588
      %v595 = vmul.f32 %v528, %v588
      %v596 = vmul.f32 %v583, %v588
      %v597 = vmul.f32 %v529, %v588
      %v598 = vmul.f32 %v584, %v588
      %v599 = vmul.f32 %v530, %v588
      %v600 = vmul.f32 %v585, %v588
      %v601 = vmul.f32 %v531, %v588
      %v602 = vmul.f32 %v586, %v588
      %v603 = vmul.f32 %v532, %v588
      %v604 = vmul.f32 %v587, %v588
      %v605 = vpack.c.bf16 %v589, %v589
      %v606 = vpack.c.bf16 %v590, %v590
      %v607 = vpack.c.bf16 %v591, %v591
      %v608 = vpack.c.bf16 %v592, %v592
      %v609 = vpack.c.bf16 %v593, %v593
      %v610 = vpack.c.bf16 %v594, %v594
      %v611 = vpack.c.bf16 %v595, %v595
      %v612 = vpack.c.bf16 %v596, %v596
      %v613 = vpack.c.bf16 %v597, %v597
      %v614 = vpack.c.bf16 %v598, %v598
      %v615 = vpack.c.bf16 %v599, %v599
      %v616 = vpack.c.bf16 %v600, %v600
      %v617 = vpack.c.bf16 %v601, %v601
      %v618 = vpack.c.bf16 %v602, %v602
      %v619 = vpack.c.bf16 %v603, %v603
      %v620 = vpack.c.bf16 %v604, %v604
      %v621 = vunpack.c.l.bf16 %v605
      %v622 = vunpack.c.l.bf16 %v606
      %v623 = vunpack.c.l.bf16 %v607
      %v624 = vunpack.c.l.bf16 %v608
      %v625 = vunpack.c.l.bf16 %v609
      %v626 = vunpack.c.l.bf16 %v610
      %v627 = vunpack.c.l.bf16 %v611
      %v628 = vunpack.c.l.bf16 %v612
      %v629 = vunpack.c.l.bf16 %v613
      %v630 = vunpack.c.l.bf16 %v614
      %v631 = vunpack.c.l.bf16 %v615
      %v632 = vunpack.c.l.bf16 %v616
      %v633 = vunpack.c.l.bf16 %v617
      %v634 = vunpack.c.l.bf16 %v618
      %v635 = vunpack.c.l.bf16 %v619
      %v636 = vunpack.c.l.bf16 %v620
      %vm653 = vcmask 1046528
      %v654 = vrot.slane %v621, 1
      %v655 = vrot.slane %v622, 1
      %v656 = vsel %vm653, %v654, %v655
      %v657 = vrot.slane %v623, 1
      %v658 = vrot.slane %v624, 1
      %v659 = vsel %vm653, %v657, %v658
      %v660 = vrot.slane %v625, 1
      %v661 = vrot.slane %v626, 1
      %v662 = vsel %vm653, %v660, %v661
      %v663 = vrot.slane %v627, 1
      %v664 = vrot.slane %v628, 1
      %v665 = vsel %vm653, %v663, %v664
      %v666 = vrot.slane %v629, 1
      %v667 = vrot.slane %v630, 1
      %v668 = vsel %vm653, %v666, %v667
      %v669 = vrot.slane %v631, 1
      %v670 = vrot.slane %v632, 1
      %v671 = vsel %vm653, %v669, %v670
      %v672 = vrot.slane %v633, 1
      %v673 = vrot.slane %v634, 1
      %v674 = vsel %vm653, %v672, %v673
      %v675 = vrot.slane %v635, 1
      %v676 = vrot.slane %v636, 1
      %v677 = vsel %vm653, %v675, %v676
      %v686 = vadd.f32 %v558, %v656
      %v687 = vadd.f32 %v559, %v659
      %v688 = vadd.f32 %v560, %v662
      %v689 = vadd.f32 %v561, %v665
      %v690 = vadd.f32 %v562, %v668
      %v691 = vadd.f32 %v563, %v671
      %v692 = vadd.f32 %v564, %v674
      %v693 = vadd.f32 %v565, %v677
      %v694 = vld [vmem:[#allocation2] sm:$0xe]
      %v695 = vld [vmem:[#allocation2 + $0x8] sm:$0xe]
      %v696 = vld [vmem:[#allocation2 + $0x10] sm:$0xe]
      %v697 = vld [vmem:[#allocation2 + $0x18] sm:$0xe]
      %v698 = vld [vmem:[#allocation2 + $0x20] sm:$0xe]
      %v699 = vld [vmem:[#allocation2 + $0x28] sm:$0xe]
      %v700 = vld [vmem:[#allocation2 + $0x30] sm:$0xe]
      %v701 = vld [vmem:[#allocation2 + $0x38] sm:$0xe]
      %s702 = scalar_lea.vmem %s1, 2
      %v703 = vld [vmem:[%s702] sm:$0x1]
      %v705 = vpack.i.b16 %v703, %v703
      %v707 = vperm.slane %v705, 0
      %v708 = vunpack.c.l.bf16 %v694
      %v709 = vunpack.c.l.bf16 %v695
      %v710 = vunpack.c.l.bf16 %v696
      %v711 = vunpack.c.l.bf16 %v697
      %v712 = vunpack.c.l.bf16 %v698
      %v713 = vunpack.c.l.bf16 %v699
      %v714 = vunpack.c.l.bf16 %v700
      %v715 = vunpack.c.l.bf16 %v701
      %v716 = vunpack.c.l.bf16 %v707
      %v717 = vmul.f32 %v708, %v716
      %v718 = vmul.f32 %v580, %v716
      %v719 = vmul.f32 %v709, %v716
      %v720 = vmul.f32 %v581, %v716
      %v721 = vmul.f32 %v710, %v716
      %v722 = vmul.f32 %v582, %v716
      %v723 = vmul.f32 %v711, %v716
      %v724 = vmul.f32 %v583, %v716
      %v725 = vmul.f32 %v712, %v716
      %v726 = vmul.f32 %v584, %v716
      %v727 = vmul.f32 %v713, %v716
      %v728 = vmul.f32 %v585, %v716
      %v729 = vmul.f32 %v714, %v716
      %v730 = vmul.f32 %v586, %v716
      %v731 = vmul.f32 %v715, %v716
      %v732 = vmul.f32 %v587, %v716
      %v733 = vpack.c.bf16 %v717, %v717
      %v734 = vpack.c.bf16 %v718, %v718
      %v735 = vpack.c.bf16 %v719, %v719
      %v736 = vpack.c.bf16 %v720, %v720
      %v737 = vpack.c.bf16 %v721, %v721
      %v738 = vpack.c.bf16 %v722, %v722
      %v739 = vpack.c.bf16 %v723, %v723
      %v740 = vpack.c.bf16 %v724, %v724
      %v741 = vpack.c.bf16 %v725, %v725
      %v742 = vpack.c.bf16 %v726, %v726
      %v743 = vpack.c.bf16 %v727, %v727
      %v744 = vpack.c.bf16 %v728, %v728
      %v745 = vpack.c.bf16 %v729, %v729
      %v746 = vpack.c.bf16 %v730, %v730
      %v747 = vpack.c.bf16 %v731, %v731
      %v748 = vpack.c.bf16 %v732, %v732
      %v749 = vunpack.c.l.bf16 %v733
      %v750 = vunpack.c.l.bf16 %v734
      %v751 = vunpack.c.l.bf16 %v735
      %v752 = vunpack.c.l.bf16 %v736
      %v753 = vunpack.c.l.bf16 %v737
      %v754 = vunpack.c.l.bf16 %v738
      %v755 = vunpack.c.l.bf16 %v739
      %v756 = vunpack.c.l.bf16 %v740
      %v757 = vunpack.c.l.bf16 %v741
      %v758 = vunpack.c.l.bf16 %v742
      %v759 = vunpack.c.l.bf16 %v743
      %v760 = vunpack.c.l.bf16 %v744
      %v761 = vunpack.c.l.bf16 %v745
      %v762 = vunpack.c.l.bf16 %v746
      %v763 = vunpack.c.l.bf16 %v747
      %v764 = vunpack.c.l.bf16 %v748
      %vm781 = vcmask 1045504
      %v782 = vrot.slane %v749, 2
      %v783 = vrot.slane %v750, 2
      %v784 = vsel %vm781, %v782, %v783
      %v785 = vrot.slane %v751, 2
      %v786 = vrot.slane %v752, 2
      %v787 = vsel %vm781, %v785, %v786
      %v788 = vrot.slane %v753, 2
      %v789 = vrot.slane %v754, 2
      %v790 = vsel %vm781, %v788, %v789
      %v791 = vrot.slane %v755, 2
      %v792 = vrot.slane %v756, 2
      %v793 = vsel %vm781, %v791, %v792
      %v794 = vrot.slane %v757, 2
      %v795 = vrot.slane %v758, 2
      %v796 = vsel %vm781, %v794, %v795
      %v797 = vrot.slane %v759, 2
      %v798 = vrot.slane %v760, 2
      %v799 = vsel %vm781, %v797, %v798
      %v800 = vrot.slane %v761, 2
      %v801 = vrot.slane %v762, 2
      %v802 = vsel %vm781, %v800, %v801
      %v803 = vrot.slane %v763, 2
      %v804 = vrot.slane %v764, 2
      %v805 = vsel %vm781, %v803, %v804
      %v814 = vadd.f32 %v686, %v784
      %v815 = vadd.f32 %v687, %v787
      %v816 = vadd.f32 %v688, %v790
      %v817 = vadd.f32 %v689, %v793
      %v818 = vadd.f32 %v690, %v796
      %v819 = vadd.f32 %v691, %v799
      %v820 = vadd.f32 %v692, %v802
      %v821 = vadd.f32 %v693, %v805
      %v822 = vld [vmem:[%s490] sm:$0xf]
      %v823 = vld [vmem:[%s490 + $0x8] sm:$0xf]
      %v824 = vld [vmem:[%s490 + $0x10] sm:$0xf]
      %v825 = vld [vmem:[%s490 + $0x18] sm:$0xf]
      %v826 = vld [vmem:[%s490 + $0x20] sm:$0xf]
      %v827 = vld [vmem:[%s490 + $0x28] sm:$0xf]
      %v828 = vld [vmem:[%s490 + $0x30] sm:$0xf]
      %v829 = vld [vmem:[%s490 + $0x38] sm:$0xf]
      %s830 = scalar_lea.vmem %s1, 3
      %v831 = vld [vmem:[%s830] sm:$0x1]
      %v833 = vpack.i.b16 %v831, %v831
      %v835 = vperm.slane %v833, 0
      %v836 = vunpack.c.l.bf16 %v822
      %v837 = vunpack.c.l.bf16 %v823
      %v838 = vunpack.c.l.bf16 %v824
      %v839 = vunpack.c.l.bf16 %v825
      %v840 = vunpack.c.l.bf16 %v826
      %v841 = vunpack.c.l.bf16 %v827
      %v842 = vunpack.c.l.bf16 %v828
      %v843 = vunpack.c.l.bf16 %v829
      %v844 = vunpack.c.l.bf16 %v835
      %v845 = vmul.f32 %v836, %v844
      %v846 = vmul.f32 %v837, %v844
      %v847 = vmul.f32 %v838, %v844
      %v848 = vmul.f32 %v839, %v844
      %v849 = vmul.f32 %v840, %v844
      %v850 = vmul.f32 %v841, %v844
      %v851 = vmul.f32 %v842, %v844
      %v852 = vmul.f32 %v843, %v844
      %v853 = vpack.c.bf16 %v845, %v845
      %v854 = vpack.c.bf16 %v846, %v846
      %v855 = vpack.c.bf16 %v847, %v847
      %v856 = vpack.c.bf16 %v848, %v848
      %v857 = vpack.c.bf16 %v849, %v849
      %v858 = vpack.c.bf16 %v850, %v850
      %v859 = vpack.c.bf16 %v851, %v851
      %v860 = vpack.c.bf16 %v852, %v852
      %v861 = vunpack.c.l.bf16 %v853
      %v862 = vunpack.c.l.bf16 %v854
      %v863 = vunpack.c.l.bf16 %v855
      %v864 = vunpack.c.l.bf16 %v856
      %v865 = vunpack.c.l.bf16 %v857
      %v866 = vunpack.c.l.bf16 %v858
      %v867 = vunpack.c.l.bf16 %v859
      %v868 = vunpack.c.l.bf16 %v860
      %v869 = vadd.f32 %v814, %v861
      %v870 = vadd.f32 %v815, %v862
      %v871 = vadd.f32 %v816, %v863
      %v872 = vadd.f32 %v817, %v864
      %v873 = vadd.f32 %v818, %v865
      %v874 = vadd.f32 %v819, %v866
      %v875 = vadd.f32 %v820, %v867
      %v876 = vadd.f32 %v821, %v868
      %v877 = vld [vmem:[%s490 + $0x4] sm:$0x1]
      %v878 = vld [vmem:[%s490 + $0xc] sm:$0x1]
      %v879 = vld [vmem:[%s490 + $0x14] sm:$0x1]
      %v880 = vld [vmem:[%s490 + $0x1c] sm:$0x1]
      %v881 = vld [vmem:[%s490 + $0x24] sm:$0x1]
      %v882 = vld [vmem:[%s490 + $0x2c] sm:$0x1]
      %v883 = vld [vmem:[%s490 + $0x34] sm:$0x1]
      %v884 = vld [vmem:[%s490 + $0x3c] sm:$0x1]
      %s885 = scalar_lea.vmem %s1, 4
      %v886 = vld [vmem:[%s885] sm:$0x1]
      %v888 = vpack.i.b16 %v886, %v886
      %v890 = vperm.slane %v888, 0
      %v891 = vunpack.c.l.bf16 %v877
      %v892 = vunpack.c.l.bf16 %v878
      %v893 = vunpack.c.l.bf16 %v879
      %v894 = vunpack.c.l.bf16 %v880
      %v895 = vunpack.c.l.bf16 %v881
      %v896 = vunpack.c.l.bf16 %v882
      %v897 = vunpack.c.l.bf16 %v883
      %v898 = vunpack.c.l.bf16 %v884
      %v899 = vunpack.c.l.bf16 %v890
      %v900 = vmul.f32 %v836, %v899
      %v901 = vmul.f32 %v891, %v899
      %v902 = vmul.f32 %v837, %v899
      %v903 = vmul.f32 %v892, %v899
      %v904 = vmul.f32 %v838, %v899
      %v905 = vmul.f32 %v893, %v899
      %v906 = vmul.f32 %v839, %v899
      %v907 = vmul.f32 %v894, %v899
      %v908 = vmul.f32 %v840, %v899
      %v909 = vmul.f32 %v895, %v899
      %v910 = vmul.f32 %v841, %v899
      %v911 = vmul.f32 %v896, %v899
      %v912 = vmul.f32 %v842, %v899
      %v913 = vmul.f32 %v897, %v899
      %v914 = vmul.f32 %v843, %v899
      %v915 = vmul.f32 %v898, %v899
      %v916 = vpack.c.bf16 %v900, %v900
      %v917 = vpack.c.bf16 %v901, %v901
      %v918 = vpack.c.bf16 %v902, %v902
      %v919 = vpack.c.bf16 %v903, %v903
      %v920 = vpack.c.bf16 %v904, %v904
      %v921 = vpack.c.bf16 %v905, %v905
      %v922 = vpack.c.bf16 %v906, %v906
      %v923 = vpack.c.bf16 %v907, %v907
      %v924 = vpack.c.bf16 %v908, %v908
      %v925 = vpack.c.bf16 %v909, %v909
      %v926 = vpack.c.bf16 %v910, %v910
      %v927 = vpack.c.bf16 %v911, %v911
      %v928 = vpack.c.bf16 %v912, %v912
      %v929 = vpack.c.bf16 %v913, %v913
      %v930 = vpack.c.bf16 %v914, %v914
      %v931 = vpack.c.bf16 %v915, %v915
      %v932 = vunpack.c.l.bf16 %v916
      %v933 = vunpack.c.l.bf16 %v917
      %v934 = vunpack.c.l.bf16 %v918
      %v935 = vunpack.c.l.bf16 %v919
      %v936 = vunpack.c.l.bf16 %v920
      %v937 = vunpack.c.l.bf16 %v921
      %v938 = vunpack.c.l.bf16 %v922
      %v939 = vunpack.c.l.bf16 %v923
      %v940 = vunpack.c.l.bf16 %v924
      %v941 = vunpack.c.l.bf16 %v925
      %v942 = vunpack.c.l.bf16 %v926
      %v943 = vunpack.c.l.bf16 %v927
      %v944 = vunpack.c.l.bf16 %v928
      %v945 = vunpack.c.l.bf16 %v929
      %v946 = vunpack.c.l.bf16 %v930
      %v947 = vunpack.c.l.bf16 %v931
      %v964 = vrot.slane %v932, 1
      %v965 = vrot.slane %v933, 1
      %v966 = vsel %vm653, %v964, %v965
      %v967 = vrot.slane %v934, 1
      %v968 = vrot.slane %v935, 1
      %v969 = vsel %vm653, %v967, %v968
      %v970 = vrot.slane %v936, 1
      %v971 = vrot.slane %v937, 1
      %v972 = vsel %vm653, %v970, %v971
      %v973 = vrot.slane %v938, 1
      %v974 = vrot.slane %v939, 1
      %v975 = vsel %vm653, %v973, %v974
      %v976 = vrot.slane %v940, 1
      %v977 = vrot.slane %v941, 1
      %v978 = vsel %vm653, %v976, %v977
      %v979 = vrot.slane %v942, 1
      %v980 = vrot.slane %v943, 1
      %v981 = vsel %vm653, %v979, %v980
      %v982 = vrot.slane %v944, 1
      %v983 = vrot.slane %v945, 1
      %v984 = vsel %vm653, %v982, %v983
      %v985 = vrot.slane %v946, 1
      %v986 = vrot.slane %v947, 1
      %v987 = vsel %vm653, %v985, %v986
      %v996 = vadd.f32 %v869, %v966
      %v997 = vadd.f32 %v870, %v969
      %v998 = vadd.f32 %v871, %v972
      %v999 = vadd.f32 %v872, %v975
      %v1000 = vadd.f32 %v873, %v978
      %v1001 = vadd.f32 %v874, %v981
      %v1002 = vadd.f32 %v875, %v984
      %v1003 = vadd.f32 %v876, %v987
      %v1004 = vld [vmem:[%s490] sm:$0xe]
      %v1005 = vld [vmem:[%s490 + $0x8] sm:$0xe]
      %v1006 = vld [vmem:[%s490 + $0x10] sm:$0xe]
      %v1007 = vld [vmem:[%s490 + $0x18] sm:$0xe]
      %v1008 = vld [vmem:[%s490 + $0x20] sm:$0xe]
      %v1009 = vld [vmem:[%s490 + $0x28] sm:$0xe]
      %v1010 = vld [vmem:[%s490 + $0x30] sm:$0xe]
      %v1011 = vld [vmem:[%s490 + $0x38] sm:$0xe]
      %s1012 = scalar_lea.vmem %s1, 5
      %v1013 = vld [vmem:[%s1012] sm:$0x1]
      %v1015 = vpack.i.b16 %v1013, %v1013
      %v1017 = vperm.slane %v1015, 0
      %v1018 = vunpack.c.l.bf16 %v1004
      %v1019 = vunpack.c.l.bf16 %v1005
      %v1020 = vunpack.c.l.bf16 %v1006
      %v1021 = vunpack.c.l.bf16 %v1007
      %v1022 = vunpack.c.l.bf16 %v1008
      %v1023 = vunpack.c.l.bf16 %v1009
      %v1024 = vunpack.c.l.bf16 %v1010
      %v1025 = vunpack.c.l.bf16 %v1011
      %v1026 = vunpack.c.l.bf16 %v1017
      %v1027 = vmul.f32 %v1018, %v1026
      %v1028 = vmul.f32 %v891, %v1026
      %v1029 = vmul.f32 %v1019, %v1026
      %v1030 = vmul.f32 %v892, %v1026
      %v1031 = vmul.f32 %v1020, %v1026
      %v1032 = vmul.f32 %v893, %v1026
      %v1033 = vmul.f32 %v1021, %v1026
      %v1034 = vmul.f32 %v894, %v1026
      %v1035 = vmul.f32 %v1022, %v1026
      %v1036 = vmul.f32 %v895, %v1026
      %v1037 = vmul.f32 %v1023, %v1026
      %v1038 = vmul.f32 %v896, %v1026
      %v1039 = vmul.f32 %v1024, %v1026
      %v1040 = vmul.f32 %v897, %v1026
      %v1041 = vmul.f32 %v1025, %v1026
      %v1042 = vmul.f32 %v898, %v1026
      %v1043 = vpack.c.bf16 %v1027, %v1027
      %v1044 = vpack.c.bf16 %v1028, %v1028
      %v1045 = vpack.c.bf16 %v1029, %v1029
      %v1046 = vpack.c.bf16 %v1030, %v1030
      %v1047 = vpack.c.bf16 %v1031, %v1031
      %v1048 = vpack.c.bf16 %v1032, %v1032
      %v1049 = vpack.c.bf16 %v1033, %v1033
      %v1050 = vpack.c.bf16 %v1034, %v1034
      %v1051 = vpack.c.bf16 %v1035, %v1035
      %v1052 = vpack.c.bf16 %v1036, %v1036
      %v1053 = vpack.c.bf16 %v1037, %v1037
      %v1054 = vpack.c.bf16 %v1038, %v1038
      %v1055 = vpack.c.bf16 %v1039, %v1039
      %v1056 = vpack.c.bf16 %v1040, %v1040
      %v1057 = vpack.c.bf16 %v1041, %v1041
      %v1058 = vpack.c.bf16 %v1042, %v1042
      %v1059 = vunpack.c.l.bf16 %v1043
      %v1060 = vunpack.c.l.bf16 %v1044
      %v1061 = vunpack.c.l.bf16 %v1045
      %v1062 = vunpack.c.l.bf16 %v1046
      %v1063 = vunpack.c.l.bf16 %v1047
      %v1064 = vunpack.c.l.bf16 %v1048
      %v1065 = vunpack.c.l.bf16 %v1049
      %v1066 = vunpack.c.l.bf16 %v1050
      %v1067 = vunpack.c.l.bf16 %v1051
      %v1068 = vunpack.c.l.bf16 %v1052
      %v1069 = vunpack.c.l.bf16 %v1053
      %v1070 = vunpack.c.l.bf16 %v1054
      %v1071 = vunpack.c.l.bf16 %v1055
      %v1072 = vunpack.c.l.bf16 %v1056
      %v1073 = vunpack.c.l.bf16 %v1057
      %v1074 = vunpack.c.l.bf16 %v1058
      %v1091 = vrot.slane %v1059, 2
      %v1092 = vrot.slane %v1060, 2
      %v1093 = vsel %vm781, %v1091, %v1092
      %v1094 = vrot.slane %v1061, 2
      %v1095 = vrot.slane %v1062, 2
      %v1096 = vsel %vm781, %v1094, %v1095
      %v1097 = vrot.slane %v1063, 2
      %v1098 = vrot.slane %v1064, 2
      %v1099 = vsel %vm781, %v1097, %v1098
      %v1100 = vrot.slane %v1065, 2
      %v1101 = vrot.slane %v1066, 2
      %v1102 = vsel %vm781, %v1100, %v1101
      %v1103 = vrot.slane %v1067, 2
      %v1104 = vrot.slane %v1068, 2
      %v1105 = vsel %vm781, %v1103, %v1104
      %v1106 = vrot.slane %v1069, 2
      %v1107 = vrot.slane %v1070, 2
      %v1108 = vsel %vm781, %v1106, %v1107
      %v1109 = vrot.slane %v1071, 2
      %v1110 = vrot.slane %v1072, 2
      %v1111 = vsel %vm781, %v1109, %v1110
      %v1112 = vrot.slane %v1073, 2
      %v1113 = vrot.slane %v1074, 2
      %v1114 = vsel %vm781, %v1112, %v1113
      %v1123 = vadd.f32 %v996, %v1093
      %v1124 = vadd.f32 %v997, %v1096
      %v1125 = vadd.f32 %v998, %v1099
      %v1126 = vadd.f32 %v999, %v1102
      %v1127 = vadd.f32 %v1000, %v1105
      %v1128 = vadd.f32 %v1001, %v1108
      %v1129 = vadd.f32 %v1002, %v1111
      %v1130 = vadd.f32 %v1003, %v1114
      %s1131 = scalar_lea.vmem [#allocation2], 16
      %v1132 = vld [vmem:[%s1131] sm:$0xf]
      %v1133 = vld [vmem:[%s1131 + $0x8] sm:$0xf]
      %v1134 = vld [vmem:[%s1131 + $0x10] sm:$0xf]
      %v1135 = vld [vmem:[%s1131 + $0x18] sm:$0xf]
      %v1136 = vld [vmem:[%s1131 + $0x20] sm:$0xf]
      %v1137 = vld [vmem:[%s1131 + $0x28] sm:$0xf]
      %v1138 = vld [vmem:[%s1131 + $0x30] sm:$0xf]
      %v1139 = vld [vmem:[%s1131 + $0x38] sm:$0xf]
      %s1140 = scalar_lea.vmem %s1, 6
      %v1141 = vld [vmem:[%s1140] sm:$0x1]
      %v1143 = vpack.i.b16 %v1141, %v1141
      %v1145 = vperm.slane %v1143, 0
      %v1146 = vunpack.c.l.bf16 %v1132
      %v1147 = vunpack.c.l.bf16 %v1133
      %v1148 = vunpack.c.l.bf16 %v1134
      %v1149 = vunpack.c.l.bf16 %v1135
      %v1150 = vunpack.c.l.bf16 %v1136
      %v1151 = vunpack.c.l.bf16 %v1137
      %v1152 = vunpack.c.l.bf16 %v1138
      %v1153 = vunpack.c.l.bf16 %v1139
      %v1154 = vunpack.c.l.bf16 %v1145
      %v1155 = vmul.f32 %v1146, %v1154
      %v1156 = vmul.f32 %v1147, %v1154
      %v1157 = vmul.f32 %v1148, %v1154
      %v1158 = vmul.f32 %v1149, %v1154
      %v1159 = vmul.f32 %v1150, %v1154
      %v1160 = vmul.f32 %v1151, %v1154
      %v1161 = vmul.f32 %v1152, %v1154
      %v1162 = vmul.f32 %v1153, %v1154
      %v1163 = vpack.c.bf16 %v1155, %v1155
      %v1164 = vpack.c.bf16 %v1156, %v1156
      %v1165 = vpack.c.bf16 %v1157, %v1157
      %v1166 = vpack.c.bf16 %v1158, %v1158
      %v1167 = vpack.c.bf16 %v1159, %v1159
      %v1168 = vpack.c.bf16 %v1160, %v1160
      %v1169 = vpack.c.bf16 %v1161, %v1161
      %v1170 = vpack.c.bf16 %v1162, %v1162
      %v1171 = vunpack.c.l.bf16 %v1163
      %v1172 = vunpack.c.l.bf16 %v1164
      %v1173 = vunpack.c.l.bf16 %v1165
      %v1174 = vunpack.c.l.bf16 %v1166
      %v1175 = vunpack.c.l.bf16 %v1167
      %v1176 = vunpack.c.l.bf16 %v1168
      %v1177 = vunpack.c.l.bf16 %v1169
      %v1178 = vunpack.c.l.bf16 %v1170
      %v1179 = vadd.f32 %v1123, %v1171
      %v1180 = vadd.f32 %v1124, %v1172
      %v1181 = vadd.f32 %v1125, %v1173
      %v1182 = vadd.f32 %v1126, %v1174
      %v1183 = vadd.f32 %v1127, %v1175
      %v1184 = vadd.f32 %v1128, %v1176
      %v1185 = vadd.f32 %v1129, %v1177
      %v1186 = vadd.f32 %v1130, %v1178
      %v1187 = vld [vmem:[%s1131 + $0x4] sm:$0x1]
      %v1188 = vld [vmem:[%s1131 + $0xc] sm:$0x1]
      %v1189 = vld [vmem:[%s1131 + $0x14] sm:$0x1]
      %v1190 = vld [vmem:[%s1131 + $0x1c] sm:$0x1]
      %v1191 = vld [vmem:[%s1131 + $0x24] sm:$0x1]
      %v1192 = vld [vmem:[%s1131 + $0x2c] sm:$0x1]
      %v1193 = vld [vmem:[%s1131 + $0x34] sm:$0x1]
      %v1194 = vld [vmem:[%s1131 + $0x3c] sm:$0x1]
      %s1195 = scalar_lea.vmem %s1, 7
      %v1196 = vld [vmem:[%s1195] sm:$0x1]
      %v1198 = vpack.i.b16 %v1196, %v1196
      %v1200 = vperm.slane %v1198, 0
      %v1201 = vunpack.c.l.bf16 %v1187
      %v1202 = vunpack.c.l.bf16 %v1188
      %v1203 = vunpack.c.l.bf16 %v1189
      %v1204 = vunpack.c.l.bf16 %v1190
      %v1205 = vunpack.c.l.bf16 %v1191
      %v1206 = vunpack.c.l.bf16 %v1192
      %v1207 = vunpack.c.l.bf16 %v1193
      %v1208 = vunpack.c.l.bf16 %v1194
      %v1209 = vunpack.c.l.bf16 %v1200
      %v1210 = vmul.f32 %v1146, %v1209
      %v1211 = vmul.f32 %v1201, %v1209
      %v1212 = vmul.f32 %v1147, %v1209
      %v1213 = vmul.f32 %v1202, %v1209
      %v1214 = vmul.f32 %v1148, %v1209
      %v1215 = vmul.f32 %v1203, %v1209
      %v1216 = vmul.f32 %v1149, %v1209
      %v1217 = vmul.f32 %v1204, %v1209
      %v1218 = vmul.f32 %v1150, %v1209
      %v1219 = vmul.f32 %v1205, %v1209
      %v1220 = vmul.f32 %v1151, %v1209
      %v1221 = vmul.f32 %v1206, %v1209
      %v1222 = vmul.f32 %v1152, %v1209
      %v1223 = vmul.f32 %v1207, %v1209
      %v1224 = vmul.f32 %v1153, %v1209
      %v1225 = vmul.f32 %v1208, %v1209
      %v1226 = vpack.c.bf16 %v1210, %v1210
      %v1227 = vpack.c.bf16 %v1211, %v1211
      %v1228 = vpack.c.bf16 %v1212, %v1212
      %v1229 = vpack.c.bf16 %v1213, %v1213
      %v1230 = vpack.c.bf16 %v1214, %v1214
      %v1231 = vpack.c.bf16 %v1215, %v1215
      %v1232 = vpack.c.bf16 %v1216, %v1216
      %v1233 = vpack.c.bf16 %v1217, %v1217
      %v1234 = vpack.c.bf16 %v1218, %v1218
      %v1235 = vpack.c.bf16 %v1219, %v1219
      %v1236 = vpack.c.bf16 %v1220, %v1220
      %v1237 = vpack.c.bf16 %v1221, %v1221
      %v1238 = vpack.c.bf16 %v1222, %v1222
      %v1239 = vpack.c.bf16 %v1223, %v1223
      %v1240 = vpack.c.bf16 %v1224, %v1224
      %v1241 = vpack.c.bf16 %v1225, %v1225
      %v1242 = vunpack.c.l.bf16 %v1226
      %v1243 = vunpack.c.l.bf16 %v1227
      %v1244 = vunpack.c.l.bf16 %v1228
      %v1245 = vunpack.c.l.bf16 %v1229
      %v1246 = vunpack.c.l.bf16 %v1230
      %v1247 = vunpack.c.l.bf16 %v1231
      %v1248 = vunpack.c.l.bf16 %v1232
      %v1249 = vunpack.c.l.bf16 %v1233
      %v1250 = vunpack.c.l.bf16 %v1234
      %v1251 = vunpack.c.l.bf16 %v1235
      %v1252 = vunpack.c.l.bf16 %v1236
      %v1253 = vunpack.c.l.bf16 %v1237
      %v1254 = vunpack.c.l.bf16 %v1238
      %v1255 = vunpack.c.l.bf16 %v1239
      %v1256 = vunpack.c.l.bf16 %v1240
      %v1257 = vunpack.c.l.bf16 %v1241
      %v1274 = vrot.slane %v1242, 1
      %v1275 = vrot.slane %v1243, 1
      %v1276 = vsel %vm653, %v1274, %v1275
      %v1277 = vrot.slane %v1244, 1
      %v1278 = vrot.slane %v1245, 1
      %v1279 = vsel %vm653, %v1277, %v1278
      %v1280 = vrot.slane %v1246, 1
      %v1281 = vrot.slane %v1247, 1
      %v1282 = vsel %vm653, %v1280, %v1281
      %v1283 = vrot.slane %v1248, 1
      %v1284 = vrot.slane %v1249, 1
      %v1285 = vsel %vm653, %v1283, %v1284
      %v1286 = vrot.slane %v1250, 1
      %v1287 = vrot.slane %v1251, 1
      %v1288 = vsel %vm653, %v1286, %v1287
      %v1289 = vrot.slane %v1252, 1
      %v1290 = vrot.slane %v1253, 1
      %v1291 = vsel %vm653, %v1289, %v1290
      %v1292 = vrot.slane %v1254, 1
      %v1293 = vrot.slane %v1255, 1
      %v1294 = vsel %vm653, %v1292, %v1293
      %v1295 = vrot.slane %v1256, 1
      %v1296 = vrot.slane %v1257, 1
      %v1297 = vsel %vm653, %v1295, %v1296
      %v1306 = vadd.f32 %v1179, %v1276
      %v1307 = vadd.f32 %v1180, %v1279
      %v1308 = vadd.f32 %v1181, %v1282
      %v1309 = vadd.f32 %v1182, %v1285
      %v1310 = vadd.f32 %v1183, %v1288
      %v1311 = vadd.f32 %v1184, %v1291
      %v1312 = vadd.f32 %v1185, %v1294
      %v1313 = vadd.f32 %v1186, %v1297
      %v1314 = vld [vmem:[%s1131] sm:$0xe]
      %v1315 = vld [vmem:[%s1131 + $0x8] sm:$0xe]
      %v1316 = vld [vmem:[%s1131 + $0x10] sm:$0xe]
      %v1317 = vld [vmem:[%s1131 + $0x18] sm:$0xe]
      %v1318 = vld [vmem:[%s1131 + $0x20] sm:$0xe]
      %v1319 = vld [vmem:[%s1131 + $0x28] sm:$0xe]
      %v1320 = vld [vmem:[%s1131 + $0x30] sm:$0xe]
      %v1321 = vld [vmem:[%s1131 + $0x38] sm:$0xe]
      %s1322 = scalar_lea.vmem %s1, 8
      %v1323 = vld [vmem:[%s1322] sm:$0x1]
      %v1325 = vpack.i.b16 %v1323, %v1323
      %v1327 = vperm.slane %v1325, 0
      %v1328 = vunpack.c.l.bf16 %v1314
      %v1329 = vunpack.c.l.bf16 %v1315
      %v1330 = vunpack.c.l.bf16 %v1316
      %v1331 = vunpack.c.l.bf16 %v1317
      %v1332 = vunpack.c.l.bf16 %v1318
      %v1333 = vunpack.c.l.bf16 %v1319
      %v1334 = vunpack.c.l.bf16 %v1320
      %v1335 = vunpack.c.l.bf16 %v1321
      %v1336 = vunpack.c.l.bf16 %v1327
      %v1337 = vmul.f32 %v1328, %v1336
      %v1338 = vmul.f32 %v1201, %v1336
      %v1339 = vmul.f32 %v1329, %v1336
      %v1340 = vmul.f32 %v1202, %v1336
      %v1341 = vmul.f32 %v1330, %v1336
      %v1342 = vmul.f32 %v1203, %v1336
      %v1343 = vmul.f32 %v1331, %v1336
      %v1344 = vmul.f32 %v1204, %v1336
      %v1345 = vmul.f32 %v1332, %v1336
      %v1346 = vmul.f32 %v1205, %v1336
      %v1347 = vmul.f32 %v1333, %v1336
      %v1348 = vmul.f32 %v1206, %v1336
      %v1349 = vmul.f32 %v1334, %v1336
      %v1350 = vmul.f32 %v1207, %v1336
      %v1351 = vmul.f32 %v1335, %v1336
      %v1352 = vmul.f32 %v1208, %v1336
      %v1353 = vpack.c.bf16 %v1337, %v1337
      %v1354 = vpack.c.bf16 %v1338, %v1338
      %v1355 = vpack.c.bf16 %v1339, %v1339
      %v1356 = vpack.c.bf16 %v1340, %v1340
      %v1357 = vpack.c.bf16 %v1341, %v1341
      %v1358 = vpack.c.bf16 %v1342, %v1342
      %v1359 = vpack.c.bf16 %v1343, %v1343
      %v1360 = vpack.c.bf16 %v1344, %v1344
      %v1361 = vpack.c.bf16 %v1345, %v1345
      %v1362 = vpack.c.bf16 %v1346, %v1346
      %v1363 = vpack.c.bf16 %v1347, %v1347
      %v1364 = vpack.c.bf16 %v1348, %v1348
      %v1365 = vpack.c.bf16 %v1349, %v1349
      %v1366 = vpack.c.bf16 %v1350, %v1350
      %v1367 = vpack.c.bf16 %v1351, %v1351
      %v1368 = vpack.c.bf16 %v1352, %v1352
      %v1369 = vunpack.c.l.bf16 %v1353
      %v1370 = vunpack.c.l.bf16 %v1354
      %v1371 = vunpack.c.l.bf16 %v1355
      %v1372 = vunpack.c.l.bf16 %v1356
      %v1373 = vunpack.c.l.bf16 %v1357
      %v1374 = vunpack.c.l.bf16 %v1358
      %v1375 = vunpack.c.l.bf16 %v1359
      %v1376 = vunpack.c.l.bf16 %v1360
      %v1377 = vunpack.c.l.bf16 %v1361
      %v1378 = vunpack.c.l.bf16 %v1362
      %v1379 = vunpack.c.l.bf16 %v1363
      %v1380 = vunpack.c.l.bf16 %v1364
      %v1381 = vunpack.c.l.bf16 %v1365
      %v1382 = vunpack.c.l.bf16 %v1366
      %v1383 = vunpack.c.l.bf16 %v1367
      %v1384 = vunpack.c.l.bf16 %v1368
      %v1401 = vrot.slane %v1369, 2
      %v1402 = vrot.slane %v1370, 2
      %v1403 = vsel %vm781, %v1401, %v1402
      %v1404 = vrot.slane %v1371, 2
      %v1405 = vrot.slane %v1372, 2
      %v1406 = vsel %vm781, %v1404, %v1405
      %v1407 = vrot.slane %v1373, 2
      %v1408 = vrot.slane %v1374, 2
      %v1409 = vsel %vm781, %v1407, %v1408
      %v1410 = vrot.slane %v1375, 2
      %v1411 = vrot.slane %v1376, 2
      %v1412 = vsel %vm781, %v1410, %v1411
      %v1413 = vrot.slane %v1377, 2
      %v1414 = vrot.slane %v1378, 2
      %v1415 = vsel %vm781, %v1413, %v1414
      %v1416 = vrot.slane %v1379, 2
      %v1417 = vrot.slane %v1380, 2
      %v1418 = vsel %vm781, %v1416, %v1417
      %v1419 = vrot.slane %v1381, 2
      %v1420 = vrot.slane %v1382, 2
      %v1421 = vsel %vm781, %v1419, %v1420
      %v1422 = vrot.slane %v1383, 2
      %v1423 = vrot.slane %v1384, 2
      %v1424 = vsel %vm781, %v1422, %v1423
      %v1433 = vadd.f32 %v1306, %v1403
      %v1434 = vadd.f32 %v1307, %v1406
      %v1435 = vadd.f32 %v1308, %v1409
      %v1436 = vadd.f32 %v1309, %v1412
      %v1437 = vadd.f32 %v1310, %v1415
      %v1438 = vadd.f32 %v1311, %v1418
      %v1439 = vadd.f32 %v1312, %v1421
      %v1440 = vadd.f32 %v1313, %v1424
      %v1441 = vld [vmem:[%s2] sm:$0x1]
      %v1443 = vperm.slane %v1441, 0
      %v1445 = vadd.f32 %v1433, %v1443
      %v1446 = vadd.f32 %v1434, %v1443
      %v1447 = vadd.f32 %v1435, %v1443
      %v1448 = vadd.f32 %v1436, %v1443
      %v1449 = vadd.f32 %v1437, %v1443
      %v1450 = vadd.f32 %v1438, %v1443
      %v1451 = vadd.f32 %v1439, %v1443
      %v1452 = vadd.f32 %v1440, %v1443
      %v1453 = vxor.u32 %v1445, 2147483648
      %v1454 = vxor.u32 %v1446, 2147483648
      %v1455 = vxor.u32 %v1447, 2147483648
      %v1456 = vxor.u32 %v1448, 2147483648
      %v1457 = vxor.u32 %v1449, 2147483648
      %v1458 = vxor.u32 %v1450, 2147483648
      %v1459 = vxor.u32 %v1451, 2147483648
      %v1460 = vxor.u32 %v1452, 2147483648
      %v1461 = vmul.f32 %v1453, 1.442695
      %v1462 = vpow.pop %v1461
      %v1463 = vmul.f32 %v1454, 1.442695
      %v1464 = vpow.pop %v1463
      %v1465 = vmul.f32 %v1455, 1.442695
      %v1466 = vpow.pop %v1465
      %v1467 = vmul.f32 %v1456, 1.442695
      %v1468 = vpow.pop %v1467
      %v1469 = vmul.f32 %v1457, 1.442695
      %v1470 = vpow.pop %v1469
      %v1471 = vmul.f32 %v1458, 1.442695
      %v1472 = vpow.pop %v1471
      %v1473 = vmul.f32 %v1459, 1.442695
      %v1474 = vpow.pop %v1473
      %v1475 = vmul.f32 %v1460, 1.442695
      %v1476 = vpow.pop %v1475
      %v1477 = vadd.f32 %v1462, 1.0
      %v1478 = vadd.f32 %v1464, 1.0
      %v1479 = vadd.f32 %v1466, 1.0
      %v1480 = vadd.f32 %v1468, 1.0
      %v1481 = vadd.f32 %v1470, 1.0
      %v1482 = vadd.f32 %v1472, 1.0
      %v1483 = vadd.f32 %v1474, 1.0
      %v1484 = vadd.f32 %v1476, 1.0
      %v1485 = vrcp.pop %v1477
      %v1486 = vmul.f32 %v1477, %v1485
      %v1487 = vsub.f32 1.0, %v1486
      %v1488 = vmul.f32 %v1485, %v1487
      %v1489 = vadd.f32 %v1485, %v1488
      %vm1490 = vweird.f32 %v1477
      %vm1491 = vweird.f32 %v1485
      %vm1492 = vmor %vm1490, %vm1491
      %v1493 = vsel %vm1492, %v1485, %v1489
      %v1494 = vand.u32 2147483647, %v1477
      %vm1495 = vcmp.eq.f32.partialorder %v1494, 8.507059e+37
      %v1496 = vand.u32 %v1477, 2147483648
      %v1497 = vor.u32 1.1754944e-38, %v1496
      %v1498 = vsel %vm1495, %v1497, %v1493
      %v1499 = vmul.f32 1.0, %v1498
      %v1500 = vrcp.pop %v1478
      %v1501 = vmul.f32 %v1478, %v1500
      %v1502 = vsub.f32 1.0, %v1501
      %v1503 = vmul.f32 %v1500, %v1502
      %v1504 = vadd.f32 %v1500, %v1503
      %vm1505 = vweird.f32 %v1478
      %vm1506 = vweird.f32 %v1500
      %vm1507 = vmor %vm1505, %vm1506
      %v1508 = vsel %vm1507, %v1500, %v1504
      %v1509 = vand.u32 2147483647, %v1478
      %vm1510 = vcmp.eq.f32.partialorder %v1509, 8.507059e+37
      %v1511 = vand.u32 %v1478, 2147483648
      %v1512 = vor.u32 1.1754944e-38, %v1511
      %v1513 = vsel %vm1510, %v1512, %v1508
      %v1514 = vmul.f32 1.0, %v1513
      %v1515 = vrcp.pop %v1479
      %v1516 = vmul.f32 %v1479, %v1515
      %v1517 = vsub.f32 1.0, %v1516
      %v1518 = vmul.f32 %v1515, %v1517
      %v1519 = vadd.f32 %v1515, %v1518
      %vm1520 = vweird.f32 %v1479
      %vm1521 = vweird.f32 %v1515
      %vm1522 = vmor %vm1520, %vm1521
      %v1523 = vsel %vm1522, %v1515, %v1519
      %v1524 = vand.u32 2147483647, %v1479
      %vm1525 = vcmp.eq.f32.partialorder %v1524, 8.507059e+37
      %v1526 = vand.u32 %v1479, 2147483648
      %v1527 = vor.u32 1.1754944e-38, %v1526
      %v1528 = vsel %vm1525, %v1527, %v1523
      %v1529 = vmul.f32 1.0, %v1528
      %v1530 = vrcp.pop %v1480
      %v1531 = vmul.f32 %v1480, %v1530
      %v1532 = vsub.f32 1.0, %v1531
      %v1533 = vmul.f32 %v1530, %v1532
      %v1534 = vadd.f32 %v1530, %v1533
      %vm1535 = vweird.f32 %v1480
      %vm1536 = vweird.f32 %v1530
      %vm1537 = vmor %vm1535, %vm1536
      %v1538 = vsel %vm1537, %v1530, %v1534
      %v1539 = vand.u32 2147483647, %v1480
      %vm1540 = vcmp.eq.f32.partialorder %v1539, 8.507059e+37
      %v1541 = vand.u32 %v1480, 2147483648
      %v1542 = vor.u32 1.1754944e-38, %v1541
      %v1543 = vsel %vm1540, %v1542, %v1538
      %v1544 = vmul.f32 1.0, %v1543
      %v1545 = vrcp.pop %v1481
      %v1546 = vmul.f32 %v1481, %v1545
      %v1547 = vsub.f32 1.0, %v1546
      %v1548 = vmul.f32 %v1545, %v1547
      %v1549 = vadd.f32 %v1545, %v1548
      %vm1550 = vweird.f32 %v1481
      %vm1551 = vweird.f32 %v1545
      %vm1552 = vmor %vm1550, %vm1551
      %v1553 = vsel %vm1552, %v1545, %v1549
      %v1554 = vand.u32 2147483647, %v1481
      %vm1555 = vcmp.eq.f32.partialorder %v1554, 8.507059e+37
      %v1556 = vand.u32 %v1481, 2147483648
      %v1557 = vor.u32 1.1754944e-38, %v1556
      %v1558 = vsel %vm1555, %v1557, %v1553
      %v1559 = vmul.f32 1.0, %v1558
      %v1560 = vrcp.pop %v1482
      %v1561 = vmul.f32 %v1482, %v1560
      %v1562 = vsub.f32 1.0, %v1561
      %v1563 = vmul.f32 %v1560, %v1562
      %v1564 = vadd.f32 %v1560, %v1563
      %vm1565 = vweird.f32 %v1482
      %vm1566 = vweird.f32 %v1560
      %vm1567 = vmor %vm1565, %vm1566
      %v1568 = vsel %vm1567, %v1560, %v1564
      %v1569 = vand.u32 2147483647, %v1482
      %vm1570 = vcmp.eq.f32.partialorder %v1569, 8.507059e+37
      %v1571 = vand.u32 %v1482, 2147483648
      %v1572 = vor.u32 1.1754944e-38, %v1571
      %v1573 = vsel %vm1570, %v1572, %v1568
      %v1574 = vmul.f32 1.0, %v1573
      %v1575 = vrcp.pop %v1483
      %v1576 = vmul.f32 %v1483, %v1575
      %v1577 = vsub.f32 1.0, %v1576
      %v1578 = vmul.f32 %v1575, %v1577
      %v1579 = vadd.f32 %v1575, %v1578
      %vm1580 = vweird.f32 %v1483
      %vm1581 = vweird.f32 %v1575
      %vm1582 = vmor %vm1580, %vm1581
      %v1583 = vsel %vm1582, %v1575, %v1579
      %v1584 = vand.u32 2147483647, %v1483
      %vm1585 = vcmp.eq.f32.partialorder %v1584, 8.507059e+37
      %v1586 = vand.u32 %v1483, 2147483648
      %v1587 = vor.u32 1.1754944e-38, %v1586
      %v1588 = vsel %vm1585, %v1587, %v1583
      %v1589 = vmul.f32 1.0, %v1588
      %v1590 = vrcp.pop %v1484
      %v1591 = vmul.f32 %v1484, %v1590
      %v1592 = vsub.f32 1.0, %v1591
      %v1593 = vmul.f32 %v1590, %v1592
      %v1594 = vadd.f32 %v1590, %v1593
      %vm1595 = vweird.f32 %v1484
      %vm1596 = vweird.f32 %v1590
      %vm1597 = vmor %vm1595, %vm1596
      %v1598 = vsel %vm1597, %v1590, %v1594
      %v1599 = vand.u32 2147483647, %v1484
      %vm1600 = vcmp.eq.f32.partialorder %v1599, 8.507059e+37
      %v1601 = vand.u32 %v1484, 2147483648
      %v1602 = vor.u32 1.1754944e-38, %v1601
      %v1603 = vsel %vm1600, %v1602, %v1598
      %v1604 = vmul.f32 1.0, %v1603
      %v1605 = vmul.f32 %v1445, %v1499
      %v1606 = vmul.f32 %v1446, %v1514
      %v1607 = vmul.f32 %v1447, %v1529
      %v1608 = vmul.f32 %v1448, %v1544
      %v1609 = vmul.f32 %v1449, %v1559
      %v1610 = vmul.f32 %v1450, %v1574
      %v1611 = vmul.f32 %v1451, %v1589
      %v1612 = vmul.f32 %v1452, %v1604
      %v1613 = vpack.c.bf16 %v1605, %v1605
      %v1614 = vpack.c.bf16 %v1606, %v1606
      %v1615 = vpack.c.bf16 %v1607, %v1607
      %v1616 = vpack.c.bf16 %v1608, %v1608
      %v1617 = vpack.c.bf16 %v1609, %v1609
      %v1618 = vpack.c.bf16 %v1610, %v1610
      %v1619 = vpack.c.bf16 %v1611, %v1611
      %v1620 = vpack.c.bf16 %v1612, %v1612
      %1621 = vst [vmem:[%s311] sm:$0xf] %v1613
      %1622 = vst [vmem:[%s311 + $0x4] sm:$0xf] %v1614
      %1623 = vst [vmem:[%s311 + $0x8] sm:$0xf] %v1615
      %1624 = vst [vmem:[%s311 + $0xc] sm:$0xf] %v1616
      %1625 = vst [vmem:[%s311 + $0x10] sm:$0xf] %v1617
      %1626 = vst [vmem:[%s311 + $0x14] sm:$0xf] %v1618
      %1627 = vst [vmem:[%s311 + $0x18] sm:$0xf] %v1619
      %1628 = vst [vmem:[%s311 + $0x1c] sm:$0xf] %v1620
      %v1629 = vadd.f32 %v1605, %v1606
      %v1630 = vadd.f32 %v1629, %v1607
      %v1631 = vadd.f32 %v1630, %v1608
      %v1632 = vadd.f32 %v1631, %v1609
      %v1633 = vadd.f32 %v1632, %v1610
      %v1634 = vadd.f32 %v1633, %v1611
      %v1635 = vadd.f32 %v1634, %v1612
      %v1636 = vrot.slane %v1635, 4
      %v1637 = vadd.f32 %v1635, %v1636
      %v1638 = vrot.slane %v1637, 2
      %v1639 = vadd.f32 %v1637, %v1638
      %v1640 = vrot.slane %v1639, 1
      %v1641 = vadd.f32 %v1639, %v1640
      %v1642 = vrcp.pop 64.0
      %v1643 = vmul.f32 64.0, %v1642
      %v1644 = vsub.f32 1.0, %v1643
      %v1645 = vmul.f32 %v1642, %v1644
      %v1646 = vadd.f32 %v1642, %v1645
      %vm1647 = vweird.f32 %v1642
      %v1648 = vsel %vm1647, %v1642, %v1646
      %v1649 = vmul.f32 %v1641, %v1648
      %v1650 = vpack.c.bf16 %v1649, %v1649
      %v1651 = vld [vmem:[%s3] sm:$0xf]
      %v1652 = vld [vmem:[%s3 + $0x4] sm:$0xf]
      %v1653 = vld [vmem:[%s3 + $0x8] sm:$0xf]
      %v1654 = vld [vmem:[%s3 + $0xc] sm:$0xf]
      %v1655 = vld [vmem:[%s3 + $0x10] sm:$0xf]
      %v1656 = vld [vmem:[%s3 + $0x14] sm:$0xf]
      %v1657 = vld [vmem:[%s3 + $0x18] sm:$0xf]
      %v1658 = vld [vmem:[%s3 + $0x1c] sm:$0xf]
      %v1659 = vld [vmem:[%s3 + $0x20] sm:$0xf]
      %v1660 = vld [vmem:[%s3 + $0x24] sm:$0xf]
      %v1661 = vld [vmem:[%s3 + $0x28] sm:$0xf]
      %v1662 = vld [vmem:[%s3 + $0x2c] sm:$0xf]
      %v1663 = vld [vmem:[%s3 + $0x30] sm:$0xf]
      %v1664 = vld [vmem:[%s3 + $0x34] sm:$0xf]
      %v1665 = vld [vmem:[%s3 + $0x38] sm:$0xf]
      %v1666 = vld [vmem:[%s3 + $0x3c] sm:$0xf]
      %v1667 = vld [vmem:[%s4] sm:$0x1]
      %v1684 = vunpack.c.l.b16 %v1651
      %v1685 = vunpack.c.l.b16 %v1652
      %v1686 = vunpack.c.l.b16 %v1653
      %v1687 = vunpack.c.l.b16 %v1654
      %v1688 = vunpack.c.l.b16 %v1655
      %v1689 = vunpack.c.l.b16 %v1656
      %v1690 = vunpack.c.l.b16 %v1657
      %v1691 = vunpack.c.l.b16 %v1658
      %v1692 = vunpack.c.l.b16 %v1659
      %v1693 = vunpack.c.l.b16 %v1660
      %v1694 = vunpack.c.l.b16 %v1661
      %v1695 = vunpack.c.l.b16 %v1662
      %v1696 = vunpack.c.l.b16 %v1663
      %v1697 = vunpack.c.l.b16 %v1664
      %v1698 = vunpack.c.l.b16 %v1665
      %v1699 = vunpack.c.l.b16 %v1666
      %v1700 = vpack.c.b16 %v1685, %v1684
      %v1701 = vpack.c.b16 %v1687, %v1686
      %v1702 = vpack.c.b16 %v1689, %v1688
      %v1703 = vpack.c.b16 %v1691, %v1690
      %v1704 = vpack.c.b16 %v1693, %v1692
      %v1705 = vpack.c.b16 %v1695, %v1694
      %v1706 = vpack.c.b16 %v1697, %v1696
      %v1707 = vpack.c.b16 %v1699, %v1698
      %1716 = vmatpush.bf16.msra.mxu0 %v1707
      %1717 = vmatpush.bf16.msra.mxu0 %v1706
      %1718 = vmatpush.bf16.msra.mxu0 %v1705
      %1719 = vmatpush.bf16.msra.mxu0 %v1704
      %1720 = vmatpush.bf16.msra.mxu0 %v1703
      %1721 = vmatpush.bf16.msra.mxu0 %v1702
      %1722 = vmatpush.bf16.msra.mxu0 %v1701
      %1723 = vmatpush.bf16.msra.mxu0 %v1700
      %1724 = vmatmul.bf16.gmra.mxu0 %v1650
      %v1725 = vpop.f32.mrf.mxu0
      %v1726 = vadd.f32 %v1667, %v1725
      %v1727 = vpop.f32.mrf.mxu0
      %1728 = vdwg.mxu0
      %v1729 = vxor.u32 %v1726, 2147483648
      %v1730 = vmul.f32 %v1729, 1.442695
      %v1731 = vpow.pop %v1730
      %v1732 = vadd.f32 %v1731, 1.0
      %v1733 = vrcp.pop %v1732
      %v1734 = vmul.f32 %v1732, %v1733
      %v1735 = vsub.f32 1.0, %v1734
      %v1736 = vmul.f32 %v1733, %v1735
      %v1737 = vadd.f32 %v1733, %v1736
      %vm1738 = vweird.f32 %v1732
      %vm1739 = vweird.f32 %v1733
      %vm1740 = vmor %vm1738, %vm1739
      %v1741 = vsel %vm1740, %v1733, %v1737
      %v1742 = vand.u32 2147483647, %v1732
      %vm1743 = vcmp.eq.f32.partialorder %v1742, 8.507059e+37
      %v1744 = vand.u32 %v1732, 2147483648
      %v1745 = vor.u32 1.1754944e-38, %v1744
      %v1746 = vsel %vm1743, %v1745, %v1741
      %v1747 = vmul.f32 1.0, %v1746
      %v1748 = vmul.f32 %v1726, %v1747
      %v1749 = vpack.c.bf16 %v1748, %v1748
      %v1750 = vld [vmem:[%s5] sm:$0xf]
      %v1751 = vld [vmem:[%s5 + $0x4] sm:$0xf]
      %v1752 = vld [vmem:[%s5 + $0x8] sm:$0xf]
      %v1753 = vld [vmem:[%s5 + $0xc] sm:$0xf]
      %v1754 = vld [vmem:[%s5 + $0x10] sm:$0xf]
      %v1755 = vld [vmem:[%s5 + $0x14] sm:$0xf]
      %v1756 = vld [vmem:[%s5 + $0x18] sm:$0xf]
      %v1757 = vld [vmem:[%s5 + $0x1c] sm:$0xf]
      %v1758 = vld [vmem:[%s5 + $0x20] sm:$0xf]
      %v1759 = vld [vmem:[%s5 + $0x24] sm:$0xf]
      %v1760 = vld [vmem:[%s5 + $0x28] sm:$0xf]
      %v1761 = vld [vmem:[%s5 + $0x2c] sm:$0xf]
      %v1762 = vld [vmem:[%s5 + $0x30] sm:$0xf]
      %v1763 = vld [vmem:[%s5 + $0x34] sm:$0xf]
      %v1764 = vld [vmem:[%s5 + $0x38] sm:$0xf]
      %v1765 = vld [vmem:[%s5 + $0x3c] sm:$0xf]
      %v1766 = vld [vmem:[%s6] sm:$0x1]
      %v1783 = vunpack.c.l.b16 %v1750
      %v1784 = vunpack.c.l.b16 %v1751
      %v1785 = vunpack.c.l.b16 %v1752
      %v1786 = vunpack.c.l.b16 %v1753
      %v1787 = vunpack.c.l.b16 %v1754
      %v1788 = vunpack.c.l.b16 %v1755
      %v1789 = vunpack.c.l.b16 %v1756
      %v1790 = vunpack.c.l.b16 %v1757
      %v1791 = vunpack.c.l.b16 %v1758
      %v1792 = vunpack.c.l.b16 %v1759
      %v1793 = vunpack.c.l.b16 %v1760
      %v1794 = vunpack.c.l.b16 %v1761
      %v1795 = vunpack.c.l.b16 %v1762
      %v1796 = vunpack.c.l.b16 %v1763
      %v1797 = vunpack.c.l.b16 %v1764
      %v1798 = vunpack.c.l.b16 %v1765
      %v1799 = vpack.c.b16 %v1784, %v1783
      %v1800 = vpack.c.b16 %v1786, %v1785
      %v1801 = vpack.c.b16 %v1788, %v1787
      %v1802 = vpack.c.b16 %v1790, %v1789
      %v1803 = vpack.c.b16 %v1792, %v1791
      %v1804 = vpack.c.b16 %v1794, %v1793
      %v1805 = vpack.c.b16 %v1796, %v1795
      %v1806 = vpack.c.b16 %v1798, %v1797
      %1815 = vmatpush.bf16.msra.mxu0 %v1806
      %1816 = vmatpush.bf16.msra.mxu0 %v1805
      %1817 = vmatpush.bf16.msra.mxu0 %v1804
      %1818 = vmatpush.bf16.msra.mxu0 %v1803
      %1819 = vmatpush.bf16.msra.mxu0 %v1802
      %1820 = vmatpush.bf16.msra.mxu0 %v1801
      %1821 = vmatpush.bf16.msra.mxu0 %v1800
      %1822 = vmatpush.bf16.msra.mxu0 %v1799
      %1823 = vmatmul.bf16.gmra.mxu0 %v1749
      %v1824 = vpop.f32.mrf.mxu0
      %v1825 = vadd.f32 %v1766, %v1824
      %v1826 = vpop.f32.mrf.mxu0
      %1827 = vdwg.mxu0
      %v1828 = vxor.u32 %v1825, 2147483648
      %v1829 = vmul.f32 %v1828, 1.442695
      %v1830 = vpow.pop %v1829
      %v1831 = vadd.f32 %v1830, 1.0
      %v1832 = vrcp.pop %v1831
      %v1833 = vmul.f32 %v1831, %v1832
      %v1834 = vsub.f32 1.0, %v1833
      %v1835 = vmul.f32 %v1832, %v1834
      %v1836 = vadd.f32 %v1832, %v1835
      %vm1837 = vweird.f32 %v1831
      %vm1838 = vweird.f32 %v1832
      %vm1839 = vmor %vm1837, %vm1838
      %v1840 = vsel %vm1839, %v1832, %v1836
      %v1841 = vand.u32 2147483647, %v1831
      %vm1842 = vcmp.eq.f32.partialorder %v1841, 8.507059e+37
      %v1843 = vand.u32 %v1831, 2147483648
      %v1844 = vor.u32 1.1754944e-38, %v1843
      %v1845 = vsel %vm1842, %v1844, %v1840
      %v1846 = vmul.f32 1.0, %v1845
      %v1847 = vpack.c.bf16 %v1846, %v1846
      %v1848 = vld [vmem:[%s314] sm:$0x1]
      %v1849 = vsel %vm414, %v1847, %v1848
      %1850 = vst [vmem:[%s314] sm:$0x1] %v1849
      %p1851 = scmp.lt.s32.totalorder %s20, 1
      %s1852 = scalar_select %p1851, %s20, 1
      %s1853 = smul.addr %s1852, 8
      %s1854 = smul.addr %s1853, 4
      %s1855 = scalar_lea.vmem %s7, %s1854
      %p1856 = scmp.lt.s32.totalorder %s20, 1
      %s1857 = scalar_select %p1856, %s20, 1
      %s1858 = scalar_lea.vmem %s8, %s1857
      // Predicated region
      $region49: #{forward.7} parent=47 // pred_check
        %p1859 = pneg %p190
      $region50: #{forward.7} parent=47 // pred_check_branch
        %1861 = sbr.rel (%p1859) target = $region52
      $region51: #{forward.7} parent=47 // pred_region
        _
      $region52: #{forward.7} parent=47 // pred_fallthru
        _
      // Predicated region
      $region53: #{forward.7} parent=47 // pred_check
        %p1862 = pneg %p216
      $region54: #{forward.7} parent=47 // pred_check_branch
        %1864 = sbr.rel (%p1862) target = $region56
      $region55: #{forward.7} parent=47 // pred_region
        _
      $region56: #{forward.7} parent=47 // pred_fallthru
        _
    $region48: #{forward.7} parent=5 // pred_fallthru
      _
    %p1865 = scmp.le.s32.totalorder 2, %s15
    // Predicated region
    $region57: #{forward.7} parent=5 // pred_check
      %p1866 = pneg %p1865
    $region58: #{forward.7} parent=5 // pred_check_branch
      %1868 = sbr.rel (%p1866) target = $region60
    $region59: #{forward.7} parent=5 // pred_region
      %s1869 = ssub.s32 %s15, 2
      // Predicated region
      $region61: #{forward.7} parent=59 // pred_check
        %p1870 = pneg %p196
      $region62: #{forward.7} parent=59 // pred_check_branch
        %1872 = sbr.rel (%p1870) target = $region64
      $region63: #{forward.7} parent=59 // pred_region
        %p1873 = scmp.lt.s32.totalorder %s21, 1
        %s1874 = scalar_select %p1873, %s21, 1
        %s1875 = smul.addr %s1874, 8
        %s1876 = smul.addr %s1875, 4
        %s1877 = scalar_lea.vmem %s7, %s1876
      $region64: #{forward.7} parent=59 // pred_fallthru
        _
      // Predicated region
      $region65: #{forward.7} parent=59 // pred_check
        %p1878 = pneg %p222
      $region66: #{forward.7} parent=59 // pred_check_branch
        %1880 = sbr.rel (%p1878) target = $region68
      $region67: #{forward.7} parent=59 // pred_region
        %p1881 = scmp.lt.s32.totalorder %s21, 1
        %s1882 = scalar_select %p1881, %s21, 1
        %s1883 = scalar_lea.vmem %s8, %s1882
      $region68: #{forward.7} parent=59 // pred_fallthru
        _
    $region60: #{forward.7} parent=5 // pred_fallthru
      _
  $region6: #{forward.7} parent=0 // loop_footer
    %s19 = sadd.s32 1, %s15
  $region7: #{forward.7} parent=0 // loop_footer_branch
    %14 = sbr.rel target = $region3
  $region8: #{forward.7} parent=0 // loop_exit
    _

</llo_original>
